<compile_context>
chip_gen: v7x
topology: tpu7x:2x2x1
jax: 0.10.0
libtpu: 0.0.40
codegen_flags: <defaults>
</compile_context>

<pallas_src>
import functools

import jax
import jax.numpy as jnp
from jax.experimental import pallas as pl
from jax.experimental.pallas import tpu as pltpu


# ------------------------------ fused kernel --------------------------------

def _encoder_kernel(
    # inputs
    x_ref, bds_ref, bdr_ref, bdrt_ref,
    w1_ref, b1_ref, w2_ref, b2_ref, wp_ref, bp_ref,
    m1w1_ref, m1b1_ref, m1w2_ref, m1b2_ref,
    m2w1_ref, m2b1_ref, m2w2_ref, m2b2_ref,
    m3w1_ref, m3b1_ref, m3w2_ref, m3b2_ref,
    fcw_ref, fcb_ref,
    # output
    out_ref,
    # VMEM scratch
    ea_ref, eb_ref, ic1_ref, ic2_ref,
    *, n_nodes, seq_len, in_dims, ksize,
):
    N, T, D, K = n_nodes, seq_len, in_dims, ksize
    BE = bds_ref.shape[0]          # batch * edges
    H = w1_ref.shape[1]
    L1 = T - K + 1                 # conv1 valid length
    Lp = L1 // 2                   # after MaxPool1d(kernel=2, stride=2)
    L2 = Lp - K + 1                # conv2 valid length
    KD = K * D

    def mm(a, b):
        return jnp.dot(a, b, preferred_element_type=jnp.float32)

    def elu(v):
        return jnp.where(v > 0.0, v, jnp.exp(jnp.minimum(v, 0.0)) - 1.0)

    def bnorm(v, eps=1e-5):
        # training-mode BatchNorm1d with gamma=1 / beta=0 (init_weights); biased var.
        mu = jnp.mean(v, axis=0, keepdims=True)
        var = jnp.mean((v - mu) ** 2, axis=0, keepdims=True)
        return (v - mu) * jax.lax.rsqrt(var + eps)

    def mlp_block(v, w1, b1, w2, b2):
        h = elu(mm(v, w1) + b1)    # Linear -> ELU
        h = elu(mm(h, w2) + b2)    # Dropout(p=0)==id, Linear -> ELU
        return bnorm(h)            # BatchNorm1d over flattened rows

    x = x_ref[...]                                          # (B*N, T*D)

    # ---- node2edge_init (the forward() call swaps the mask arguments) ------
    # first D conv-input channels  <- rec_mask  @ x
    # second D conv-input channels <- send_mask @ x
    ea_ref[...] = mm(bdr_ref[...], x)                       # (BE, T*D)
    eb_ref[...] = mm(bds_ref[...], x)                       # (BE, T*D)

    # ---- conv1 (valid, k=K) + ReLU as ONE im2col matmul ---------------------
    # position-major: output rows [l*BE:(l+1)*BE] hold time-step l.
    for l in range(L1):
        ic1_ref[l * BE:(l + 1) * BE, 0:KD] = ea_ref[:, l * D:l * D + KD]
        ic1_ref[l * BE:(l + 1) * BE, KD:2 * KD] = eb_ref[:, l * D:l * D + KD]
    h1 = jnp.maximum(mm(ic1_ref[...], w1_ref[...]) + b1_ref[...], 0.0)
    h1 = bnorm(h1)                                          # bn1 (dropout p=0 -> id)

    # ---- MaxPool1d(kernel=2, stride=2): contiguous row blocks ---------------
    pooled = [jnp.maximum(h1[(2 * p) * BE:(2 * p + 1) * BE, :],
                          h1[(2 * p + 1) * BE:(2 * p + 2) * BE, :])
              for p in range(Lp)]

    # ---- conv2 (valid, k=K) + ReLU as ONE im2col matmul ---------------------
    for l in range(L2):
        for k in range(K):
            ic2_ref[l * BE:(l + 1) * BE, k * H:(k + 1) * H] = pooled[l + k]
    h2 = jnp.maximum(mm(ic2_ref[...], w2_ref[...]) + b2_ref[...], 0.0)
    h2 = bnorm(h2)                                          # bn2

    # ---- head: attention == 1 (softmax over size-1 dim) -> pred.mean(time) --
    # conv_predict is 1x1, so mean_t(x @ Wp + bp) == mean_t(x) @ Wp + bp.
    xm = h2[0:BE, :]
    for l in range(1, L2):
        xm = xm + h2[l * BE:(l + 1) * BE, :]
    feat = mm(xm * (1.0 / L2), wp_ref[...]) + bp_ref[...]   # (BE, H)

    # ---- mlp1 (its output is also the skip connection) ----------------------
    feat = mlp_block(feat, m1w1_ref[...], m1b1_ref[...], m1w2_ref[...], m1b2_ref[...])

    # ---- edge2node: (rec_mask.T @ feat) / N, then mlp2 -----------------------
    nodes = mm(bdrt_ref[...], feat) * (1.0 / N)             # (B*N, H)
    nodes = mlp_block(nodes, m2w1_ref[...], m2b1_ref[...], m2w2_ref[...], m2b2_ref[...])

    # ---- node2edge + skip concat folded into mlp3's first layer --------------
    se = mm(bds_ref[...], nodes)                            # send_mask @ nodes
    re = mm(bdr_ref[...], nodes)                            # rec_mask  @ nodes
    w3 = m3w1_ref[...]                                      # (3H, H) rows: [send | rec | skip]
    g = elu(mm(se, w3[0:H, :]) + mm(re, w3[H:2 * H, :]) + mm(feat, w3[2 * H:3 * H, :])
            + m3b1_ref[...])
    g = elu(mm(g, m3w2_ref[...]) + m3b2_ref[...])
    g = bnorm(g)

    # ---- fc_out (fused epilogue) ----------------------------------------------
    out_ref[...] = mm(g, fcw_ref[...]) + fcb_ref[...]


# ------------------------------ forward wrapper ------------------------------

def cnn_encoder_forward(x, send_mask, rec_mask, params):
    """CNNEncoder forward; x:(B,N,T,D), send_mask/rec_mask:(E,N) -> (B,E,out_dims)."""
    B, N, T, D = x.shape
    E = send_mask.shape[0]
    K, cin2, H = params["conv1_w"].shape
    assert cin2 == 2 * D
    OUT = params["fc_w"].shape[1]
    BE, BN = B * E, B * N
    L1 = T - K + 1
    Lp = L1 // 2
    L2 = Lp - K + 1
    assert L2 >= 1, "sequence too short for two valid k=5 convolutions + pool"

    # One-time layout prep (tiny XLA ops, fused under jit): flatten x, build
    # block-diagonal masks, and flatten conv weights for the im2col matmuls.
    x2 = x.reshape(BN, T * D)
    eye_b = jnp.eye(B, dtype=jnp.float32)
    bds = jnp.kron(eye_b, send_mask)                        # (BE, BN)
    bdr = jnp.kron(eye_b, rec_mask)                         # (BE, BN)
    bdrt = bdr.T                                            # (BN, BE)

    w1 = params["conv1_w"]                                  # (K, 2D, H)
    w1_flat = jnp.concatenate([w1[:, :D, :].reshape(K * D, H),
                               w1[:, D:, :].reshape(K * D, H)], axis=0)  # (2KD, H)
    w2_flat = params["conv2_w"].reshape(K * H, H)           # (K*H, H)
    row = lambda b: b.reshape(1, -1)

    args = (
        x2, bds, bdr, bdrt,
        w1_flat, row(params["conv1_b"]), w2_flat, row(params["conv2_b"]),
        params["convp_w"], row(params["convp_b"]),
        params["mlp1_w1"], row(params["mlp1_b1"]), params["mlp1_w2"], row(params["mlp1_b2"]),
        params["mlp2_w1"], row(params["mlp2_b1"]), params["mlp2_w2"], row(params["mlp2_b2"]),
        params["mlp3_w1"], row(params["mlp3_b1"]), params["mlp3_w2"], row(params["mlp3_b2"]),
        params["fc_w"], row(params["fc_b"]),
    )
    in_specs = [pl.BlockSpec(a.shape, lambda i: (0, 0)) for a in args]

    out = pl.pallas_call(
        functools.partial(_encoder_kernel, n_nodes=N, seq_len=T, in_dims=D, ksize=K),
        out_shape=jax.ShapeDtypeStruct((BE, OUT), jnp.float32),
        grid=(1,),
        in_specs=in_specs,
        out_specs=pl.BlockSpec((BE, OUT), lambda i: (0, 0)),
        scratch_shapes=[
            pltpu.VMEM((BE, T * D), jnp.float32),           # edges, rec_mask path
            pltpu.VMEM((BE, T * D), jnp.float32),           # edges, send_mask path
            pltpu.VMEM((L1 * BE, 2 * K * D), jnp.float32),  # conv1 im2col
            pltpu.VMEM((L2 * BE, K * H), jnp.float32),      # conv2 im2col
        ],
        compiler_params=pltpu.CompilerParams(dimension_semantics=("arbitrary",)),
    )(*args)
    return out.reshape(B, E, OUT)


# -------------------------------- parameters ---------------------------------

def init_params(key, in_dims, hidden_dims, out_dims):
    H = hidden_dims
    keys = jax.random.split(key, 10)

    def conv_w(k, ksize, cin, cout):
        # PyTorch init: normal(0, sqrt(2 / (kernel_size * out_channels))); stored (K,Cin,Cout)
        return jax.random.normal(k, (ksize, cin, cout), jnp.float32) * jnp.sqrt(2.0 / (ksize * cout))

    def lin_w(k, fin, fout):
        # Xavier normal, stored (in, out) so the kernel computes x @ W
        return jax.random.normal(k, (fin, fout), jnp.float32) * jnp.sqrt(2.0 / (fin + fout))

    b = lambda n: jnp.full((n,), 0.1, jnp.float32)
    return {
        "conv1_w": conv_w(keys[0], 5, in_dims * 2, H), "conv1_b": b(H),
        "conv2_w": conv_w(keys[1], 5, H, H),           "conv2_b": b(H),
        "convp_w": conv_w(keys[2], 1, H, H)[0],        "convp_b": b(H),
        # conv_attention weights are not materialized: its softmax collapses to constant 1.
        "mlp1_w1": lin_w(keys[3], H, H), "mlp1_b1": b(H),
        "mlp1_w2": lin_w(keys[4], H, H), "mlp1_b2": b(H),
        "mlp2_w1": lin_w(keys[5], H, H), "mlp2_b1": b(H),
        "mlp2_w2": lin_w(keys[6], H, H), "mlp2_b2": b(H),
        "mlp3_w1": lin_w(keys[7], 3 * H, H), "mlp3_b1": b(H),
        "mlp3_w2": lin_w(keys[8], H, H),     "mlp3_b2": b(H),
        "fc_w": lin_w(keys[9], H, out_dims), "fc_b": b(out_dims),
        # BatchNorm1d params are gamma=1 / beta=0 from init_weights -> identity affine.
    }


# ----------------------------------- main -------------------------------------

if __name__ == "__main__":
    B, N, T, D = 2, 4, 16, 8          # batch, nodes, timesteps, feature dims (in_dims=D)
    H, OUT = 32, 8                    # hidden_dims, out_dims
    E = N * (N - 1)

    key = jax.random.PRNGKey(0)
    k_x, k_p = jax.random.split(key)
    x = jax.random.normal(k_x, (B, N, T, D), jnp.float32)

    # Fully-connected directed graph without self-loops: E = N*(N-1) edges.
    recv_idx = jnp.array([r for r in range(N) for s in range(N) if r != s])
    send_idx = jnp.array([s for r in range(N) for s in range(N) if r != s])
    rec_mask = jax.nn.one_hot(recv_idx, N, dtype=jnp.float32)   # (E, N)
    send_mask = jax.nn.one_hot(send_idx, N, dtype=jnp.float32)  # (E, N)

    params = init_params(k_p, D, H, OUT)

    fwd = jax.jit(cnn_encoder_forward)
    out = fwd(x, send_mask, rec_mask, params)
    jax.block_until_ready(out)
    assert out.shape == (B, E, OUT), out.shape
    print("KERNEL_OK")
</pallas_src>

<mosaic_0001>
module attributes {stable_mosaic.version = 11 : i64} {
  func.func @_encoder_kernel(%arg0: i32, %arg1: memref<8x128xf32, #tpu.memory_space<vmem>>, %arg2: memref<24x8xf32, #tpu.memory_space<vmem>>, %arg3: memref<24x8xf32, #tpu.memory_space<vmem>>, %arg4: memref<8x24xf32, #tpu.memory_space<vmem>>, %arg5: memref<80x32xf32, #tpu.memory_space<vmem>>, %arg6: memref<1x32xf32, #tpu.memory_space<vmem>>, %arg7: memref<160x32xf32, #tpu.memory_space<vmem>>, %arg8: memref<1x32xf32, #tpu.memory_space<vmem>>, %arg9: memref<32x32xf32, #tpu.memory_space<vmem>>, %arg10: memref<1x32xf32, #tpu.memory_space<vmem>>, %arg11: memref<32x32xf32, #tpu.memory_space<vmem>>, %arg12: memref<1x32xf32, #tpu.memory_space<vmem>>, %arg13: memref<32x32xf32, #tpu.memory_space<vmem>>, %arg14: memref<1x32xf32, #tpu.memory_space<vmem>>, %arg15: memref<32x32xf32, #tpu.memory_space<vmem>>, %arg16: memref<1x32xf32, #tpu.memory_space<vmem>>, %arg17: memref<32x32xf32, #tpu.memory_space<vmem>>, %arg18: memref<1x32xf32, #tpu.memory_space<vmem>>, %arg19: memref<96x32xf32, #tpu.memory_space<vmem>>, %arg20: memref<1x32xf32, #tpu.memory_space<vmem>>, %arg21: memref<32x32xf32, #tpu.memory_space<vmem>>, %arg22: memref<1x32xf32, #tpu.memory_space<vmem>>, %arg23: memref<32x8xf32, #tpu.memory_space<vmem>>, %arg24: memref<1x8xf32, #tpu.memory_space<vmem>>, %arg25: memref<24x8xf32, #tpu.memory_space<vmem>>, %arg26: memref<24x128xf32, #tpu.memory_space<vmem>>, %arg27: memref<24x128xf32, #tpu.memory_space<vmem>>, %arg28: memref<288x80xf32, #tpu.memory_space<vmem>>, %arg29: memref<48x160xf32, #tpu.memory_space<vmem>>) attributes {dimension_semantics = [#tpu.dimension_semantics<arbitrary>], iteration_bounds = array<i64: 1>, scalar_prefetch = 0 : i64, scratch_operands = 4 : i64, tpu.core_type = #tpu.core_type<tc>, window_params = [{pipeline_mode = #tpu.pipeline_mode<synchronous>, transform_indices = @transform_0, window_bounds = array<i64: 8, 128>}, {pipeline_mode = #tpu.pipeline_mode<synchronous>, transform_indices = @transform_1, window_bounds = array<i64: 24, 8>}, {pipeline_mode = #tpu.pipeline_mode<synchronous>, transform_indices = @transform_2, window_bounds = array<i64: 24, 8>}, {pipeline_mode = #tpu.pipeline_mode<synchronous>, transform_indices = @transform_3, window_bounds = array<i64: 8, 24>}, {pipeline_mode = #tpu.pipeline_mode<synchronous>, transform_indices = @transform_4, window_bounds = array<i64: 80, 32>}, {pipeline_mode = #tpu.pipeline_mode<synchronous>, transform_indices = @transform_5, window_bounds = array<i64: 1, 32>}, {pipeline_mode = #tpu.pipeline_mode<synchronous>, transform_indices = @transform_6, window_bounds = array<i64: 160, 32>}, {pipeline_mode = #tpu.pipeline_mode<synchronous>, transform_indices = @transform_7, window_bounds = array<i64: 1, 32>}, {pipeline_mode = #tpu.pipeline_mode<synchronous>, transform_indices = @transform_8, window_bounds = array<i64: 32, 32>}, {pipeline_mode = #tpu.pipeline_mode<synchronous>, transform_indices = @transform_9, window_bounds = array<i64: 1, 32>}, {pipeline_mode = #tpu.pipeline_mode<synchronous>, transform_indices = @transform_10, window_bounds = array<i64: 32, 32>}, {pipeline_mode = #tpu.pipeline_mode<synchronous>, transform_indices = @transform_11, window_bounds = array<i64: 1, 32>}, {pipeline_mode = #tpu.pipeline_mode<synchronous>, transform_indices = @transform_12, window_bounds = array<i64: 32, 32>}, {pipeline_mode = #tpu.pipeline_mode<synchronous>, transform_indices = @transform_13, window_bounds = array<i64: 1, 32>}, {pipeline_mode = #tpu.pipeline_mode<synchronous>, transform_indices = @transform_14, window_bounds = array<i64: 32, 32>}, {pipeline_mode = #tpu.pipeline_mode<synchronous>, transform_indices = @transform_15, window_bounds = array<i64: 1, 32>}, {pipeline_mode = #tpu.pipeline_mode<synchronous>, transform_indices = @transform_16, window_bounds = array<i64: 32, 32>}, {pipeline_mode = #tpu.pipeline_mode<synchronous>, transform_indices = @transform_17, window_bounds = array<i64: 1, 32>}, {pipeline_mode = #tpu.pipeline_mode<synchronous>, transform_indices = @transform_18, window_bounds = array<i64: 96, 32>}, {pipeline_mode = #tpu.pipeline_mode<synchronous>, transform_indices = @transform_19, window_bounds = array<i64: 1, 32>}, {pipeline_mode = #tpu.pipeline_mode<synchronous>, transform_indices = @transform_20, window_bounds = array<i64: 32, 32>}, {pipeline_mode = #tpu.pipeline_mode<synchronous>, transform_indices = @transform_21, window_bounds = array<i64: 1, 32>}, {pipeline_mode = #tpu.pipeline_mode<synchronous>, transform_indices = @transform_22, window_bounds = array<i64: 32, 8>}, {pipeline_mode = #tpu.pipeline_mode<synchronous>, transform_indices = @transform_23, window_bounds = array<i64: 1, 8>}, {pipeline_mode = #tpu.pipeline_mode<synchronous>, transform_indices = @transform_24, window_bounds = array<i64: 24, 8>}]} {
    %c0 = arith.constant 0 : index
    %c0_0 = arith.constant 0 : index
    %0 = vector.load %arg1[%c0, %c0_0] : memref<8x128xf32, #tpu.memory_space<vmem>>, vector<8x128xf32>
    %c0_1 = arith.constant 0 : index
    %c0_2 = arith.constant 0 : index
    %1 = vector.load %arg3[%c0_1, %c0_2] : memref<24x8xf32, #tpu.memory_space<vmem>>, vector<24x8xf32>
    %cst = arith.constant dense<0.000000e+00> : vector<24x128xf32>
    %2 = tpu.matmul %1, %0, %cst {dimension_numbers = #tpu.dot_dimension_numbers<[1], [0], [0], [1], [0, 0, 1, 1], [], []>} : vector<24x8xf32>, vector<8x128xf32>, vector<24x128xf32> -> vector<24x128xf32>
    %c0_3 = arith.constant 0 : index
    %c0_4 = arith.constant 0 : index
    %3 = vector.load %arg26[%c0_3, %c0_4] : memref<24x128xf32, #tpu.memory_space<vmem>>, vector<24x128xf32>
    tpu.vector_store %arg26[%c0_3, %c0_4], %2 {strides = array<i32>} : memref<24x128xf32, #tpu.memory_space<vmem>>, vector<24x128xf32>,
    %c0_5 = arith.constant 0 : index
    %c0_6 = arith.constant 0 : index
    %4 = vector.load %arg2[%c0_5, %c0_6] : memref<24x8xf32, #tpu.memory_space<vmem>>, vector<24x8xf32>
    %cst_7 = arith.constant dense<0.000000e+00> : vector<24x128xf32>
    %5 = tpu.matmul %4, %0, %cst_7 {dimension_numbers = #tpu.dot_dimension_numbers<[1], [0], [0], [1], [0, 0, 1, 1], [], []>} : vector<24x8xf32>, vector<8x128xf32>, vector<24x128xf32> -> vector<24x128xf32>
    %c0_8 = arith.constant 0 : index
    %c0_9 = arith.constant 0 : index
    %6 = vector.load %arg27[%c0_8, %c0_9] : memref<24x128xf32, #tpu.memory_space<vmem>>, vector<24x128xf32>
    tpu.vector_store %arg27[%c0_8, %c0_9], %5 {strides = array<i32>} : memref<24x128xf32, #tpu.memory_space<vmem>>, vector<24x128xf32>,
    %c0_10 = arith.constant 0 : index
    %c0_11 = arith.constant 0 : index
    %7 = vector.load %arg26[%c0_10, %c0_11] : memref<24x128xf32, #tpu.memory_space<vmem>>, vector<24x40xf32>
    %c0_12 = arith.constant 0 : index
    %c0_13 = arith.constant 0 : index
    %8 = vector.load %arg28[%c0_12, %c0_13] : memref<288x80xf32, #tpu.memory_space<vmem>>, vector<24x40xf32>
    tpu.vector_store %arg28[%c0_12, %c0_13], %7 {strides = array<i32>} : memref<288x80xf32, #tpu.memory_space<vmem>>, vector<24x40xf32>,
    %c0_14 = arith.constant 0 : index
    %c0_15 = arith.constant 0 : index
    %9 = vector.load %arg27[%c0_14, %c0_15] : memref<24x128xf32, #tpu.memory_space<vmem>>, vector<24x40xf32>
    %c0_16 = arith.constant 0 : index
    %c40 = arith.constant 40 : index
    %10 = vector.load %arg28[%c0_16, %c40] : memref<288x80xf32, #tpu.memory_space<vmem>>, vector<24x40xf32>
    tpu.vector_store %arg28[%c0_16, %c40], %9 {strides = array<i32>} : memref<288x80xf32, #tpu.memory_space<vmem>>, vector<24x40xf32>,
    %c0_17 = arith.constant 0 : index
    %c8 = arith.constant 8 : index
    %11 = vector.load %arg26[%c0_17, %c8] : memref<24x128xf32, #tpu.memory_space<vmem>>, vector<24x40xf32>
    %c24 = arith.constant 24 : index
    %c0_18 = arith.constant 0 : index
    %12 = vector.load %arg28[%c24, %c0_18] : memref<288x80xf32, #tpu.memory_space<vmem>>, vector<24x40xf32>
    tpu.vector_store %arg28[%c24, %c0_18], %11 {strides = array<i32>} : memref<288x80xf32, #tpu.memory_space<vmem>>, vector<24x40xf32>,
    %c0_19 = arith.constant 0 : index
    %c8_20 = arith.constant 8 : index
    %13 = vector.load %arg27[%c0_19, %c8_20] : memref<24x128xf32, #tpu.memory_space<vmem>>, vector<24x40xf32>
    %c24_21 = arith.constant 24 : index
    %c40_22 = arith.constant 40 : index
    %14 = vector.load %arg28[%c24_21, %c40_22] : memref<288x80xf32, #tpu.memory_space<vmem>>, vector<24x40xf32>
    tpu.vector_store %arg28[%c24_21, %c40_22], %13 {strides = array<i32>} : memref<288x80xf32, #tpu.memory_space<vmem>>, vector<24x40xf32>,
    %c0_23 = arith.constant 0 : index
    %c16 = arith.constant 16 : index
    %15 = vector.load %arg26[%c0_23, %c16] : memref<24x128xf32, #tpu.memory_space<vmem>>, vector<24x40xf32>
    %c48 = arith.constant 48 : index
    %c0_24 = arith.constant 0 : index
    %16 = vector.load %arg28[%c48, %c0_24] : memref<288x80xf32, #tpu.memory_space<vmem>>, vector<24x40xf32>
    tpu.vector_store %arg28[%c48, %c0_24], %15 {strides = array<i32>} : memref<288x80xf32, #tpu.memory_space<vmem>>, vector<24x40xf32>,
    %c0_25 = arith.constant 0 : index
    %c16_26 = arith.constant 16 : index
    %17 = vector.load %arg27[%c0_25, %c16_26] : memref<24x128xf32, #tpu.memory_space<vmem>>, vector<24x40xf32>
    %c48_27 = arith.constant 48 : index
    %c40_28 = arith.constant 40 : index
    %18 = vector.load %arg28[%c48_27, %c40_28] : memref<288x80xf32, #tpu.memory_space<vmem>>, vector<24x40xf32>
    tpu.vector_store %arg28[%c48_27, %c40_28], %17 {strides = array<i32>} : memref<288x80xf32, #tpu.memory_space<vmem>>, vector<24x40xf32>,
    %c0_29 = arith.constant 0 : index
    %c24_30 = arith.constant 24 : index
    %19 = vector.load %arg26[%c0_29, %c24_30] : memref<24x128xf32, #tpu.memory_space<vmem>>, vector<24x40xf32>
    %c72 = arith.constant 72 : index
    %c0_31 = arith.constant 0 : index
    %20 = vector.load %arg28[%c72, %c0_31] : memref<288x80xf32, #tpu.memory_space<vmem>>, vector<24x40xf32>
    tpu.vector_store %arg28[%c72, %c0_31], %19 {strides = array<i32>} : memref<288x80xf32, #tpu.memory_space<vmem>>, vector<24x40xf32>,
    %c0_32 = arith.constant 0 : index
    %c24_33 = arith.constant 24 : index
    %21 = vector.load %arg27[%c0_32, %c24_33] : memref<24x128xf32, #tpu.memory_space<vmem>>, vector<24x40xf32>
    %c72_34 = arith.constant 72 : index
    %c40_35 = arith.constant 40 : index
    %22 = vector.load %arg28[%c72_34, %c40_35] : memref<288x80xf32, #tpu.memory_space<vmem>>, vector<24x40xf32>
    tpu.vector_store %arg28[%c72_34, %c40_35], %21 {strides = array<i32>} : memref<288x80xf32, #tpu.memory_space<vmem>>, vector<24x40xf32>,
    %c0_36 = arith.constant 0 : index
    %c32 = arith.constant 32 : index
    %23 = vector.load %arg26[%c0_36, %c32] : memref<24x128xf32, #tpu.memory_space<vmem>>, vector<24x40xf32>
    %c96 = arith.constant 96 : index
    %c0_37 = arith.constant 0 : index
    %24 = vector.load %arg28[%c96, %c0_37] : memref<288x80xf32, #tpu.memory_space<vmem>>, vector<24x40xf32>
    tpu.vector_store %arg28[%c96, %c0_37], %23 {strides = array<i32>} : memref<288x80xf32, #tpu.memory_space<vmem>>, vector<24x40xf32>,
    %c0_38 = arith.constant 0 : index
    %c32_39 = arith.constant 32 : index
    %25 = vector.load %arg27[%c0_38, %c32_39] : memref<24x128xf32, #tpu.memory_space<vmem>>, vector<24x40xf32>
    %c96_40 = arith.constant 96 : index
    %c40_41 = arith.constant 40 : index
    %26 = vector.load %arg28[%c96_40, %c40_41] : memref<288x80xf32, #tpu.memory_space<vmem>>, vector<24x40xf32>
    tpu.vector_store %arg28[%c96_40, %c40_41], %25 {strides = array<i32>} : memref<288x80xf32, #tpu.memory_space<vmem>>, vector<24x40xf32>,
    %c0_42 = arith.constant 0 : index
    %c40_43 = arith.constant 40 : index
    %27 = vector.load %arg26[%c0_42, %c40_43] : memref<24x128xf32, #tpu.memory_space<vmem>>, vector<24x40xf32>
    %c120 = arith.constant 120 : index
    %c0_44 = arith.constant 0 : index
    %28 = vector.load %arg28[%c120, %c0_44] : memref<288x80xf32, #tpu.memory_space<vmem>>, vector<24x40xf32>
    tpu.vector_store %arg28[%c120, %c0_44], %27 {strides = array<i32>} : memref<288x80xf32, #tpu.memory_space<vmem>>, vector<24x40xf32>,
    %c0_45 = arith.constant 0 : index
    %c40_46 = arith.constant 40 : index
    %29 = vector.load %arg27[%c0_45, %c40_46] : memref<24x128xf32, #tpu.memory_space<vmem>>, vector<24x40xf32>
    %c120_47 = arith.constant 120 : index
    %c40_48 = arith.constant 40 : index
    %30 = vector.load %arg28[%c120_47, %c40_48] : memref<288x80xf32, #tpu.memory_space<vmem>>, vector<24x40xf32>
    tpu.vector_store %arg28[%c120_47, %c40_48], %29 {strides = array<i32>} : memref<288x80xf32, #tpu.memory_space<vmem>>, vector<24x40xf32>,
    %c0_49 = arith.constant 0 : index
    %c48_50 = arith.constant 48 : index
    %31 = vector.load %arg26[%c0_49, %c48_50] : memref<24x128xf32, #tpu.memory_space<vmem>>, vector<24x40xf32>
    %c144 = arith.constant 144 : index
    %c0_51 = arith.constant 0 : index
    %32 = vector.load %arg28[%c144, %c0_51] : memref<288x80xf32, #tpu.memory_space<vmem>>, vector<24x40xf32>
    tpu.vector_store %arg28[%c144, %c0_51], %31 {strides = array<i32>} : memref<288x80xf32, #tpu.memory_space<vmem>>, vector<24x40xf32>,
    %c0_52 = arith.constant 0 : index
    %c48_53 = arith.constant 48 : index
    %33 = vector.load %arg27[%c0_52, %c48_53] : memref<24x128xf32, #tpu.memory_space<vmem>>, vector<24x40xf32>
    %c144_54 = arith.constant 144 : index
    %c40_55 = arith.constant 40 : index
    %34 = vector.load %arg28[%c144_54, %c40_55] : memref<288x80xf32, #tpu.memory_space<vmem>>, vector<24x40xf32>
    tpu.vector_store %arg28[%c144_54, %c40_55], %33 {strides = array<i32>} : memref<288x80xf32, #tpu.memory_space<vmem>>, vector<24x40xf32>,
    %c0_56 = arith.constant 0 : index
    %c56 = arith.constant 56 : index
    %35 = vector.load %arg26[%c0_56, %c56] : memref<24x128xf32, #tpu.memory_space<vmem>>, vector<24x40xf32>
    %c168 = arith.constant 168 : index
    %c0_57 = arith.constant 0 : index
    %36 = vector.load %arg28[%c168, %c0_57] : memref<288x80xf32, #tpu.memory_space<vmem>>, vector<24x40xf32>
    tpu.vector_store %arg28[%c168, %c0_57], %35 {strides = array<i32>} : memref<288x80xf32, #tpu.memory_space<vmem>>, vector<24x40xf32>,
    %c0_58 = arith.constant 0 : index
    %c56_59 = arith.constant 56 : index
    %37 = vector.load %arg27[%c0_58, %c56_59] : memref<24x128xf32, #tpu.memory_space<vmem>>, vector<24x40xf32>
    %c168_60 = arith.constant 168 : index
    %c40_61 = arith.constant 40 : index
    %38 = vector.load %arg28[%c168_60, %c40_61] : memref<288x80xf32, #tpu.memory_space<vmem>>, vector<24x40xf32>
    tpu.vector_store %arg28[%c168_60, %c40_61], %37 {strides = array<i32>} : memref<288x80xf32, #tpu.memory_space<vmem>>, vector<24x40xf32>,
    %c0_62 = arith.constant 0 : index
    %c64 = arith.constant 64 : index
    %39 = vector.load %arg26[%c0_62, %c64] : memref<24x128xf32, #tpu.memory_space<vmem>>, vector<24x40xf32>
    %c192 = arith.constant 192 : index
    %c0_63 = arith.constant 0 : index
    %40 = vector.load %arg28[%c192, %c0_63] : memref<288x80xf32, #tpu.memory_space<vmem>>, vector<24x40xf32>
    tpu.vector_store %arg28[%c192, %c0_63], %39 {strides = array<i32>} : memref<288x80xf32, #tpu.memory_space<vmem>>, vector<24x40xf32>,
    %c0_64 = arith.constant 0 : index
    %c64_65 = arith.constant 64 : index
    %41 = vector.load %arg27[%c0_64, %c64_65] : memref<24x128xf32, #tpu.memory_space<vmem>>, vector<24x40xf32>
    %c192_66 = arith.constant 192 : index
    %c40_67 = arith.constant 40 : index
    %42 = vector.load %arg28[%c192_66, %c40_67] : memref<288x80xf32, #tpu.memory_space<vmem>>, vector<24x40xf32>
    tpu.vector_store %arg28[%c192_66, %c40_67], %41 {strides = array<i32>} : memref<288x80xf32, #tpu.memory_space<vmem>>, vector<24x40xf32>,
    %c0_68 = arith.constant 0 : index
    %c72_69 = arith.constant 72 : index
    %43 = vector.load %arg26[%c0_68, %c72_69] : memref<24x128xf32, #tpu.memory_space<vmem>>, vector<24x40xf32>
    %c216 = arith.constant 216 : index
    %c0_70 = arith.constant 0 : index
    %44 = vector.load %arg28[%c216, %c0_70] : memref<288x80xf32, #tpu.memory_space<vmem>>, vector<24x40xf32>
    tpu.vector_store %arg28[%c216, %c0_70], %43 {strides = array<i32>} : memref<288x80xf32, #tpu.memory_space<vmem>>, vector<24x40xf32>,
    %c0_71 = arith.constant 0 : index
    %c72_72 = arith.constant 72 : index
    %45 = vector.load %arg27[%c0_71, %c72_72] : memref<24x128xf32, #tpu.memory_space<vmem>>, vector<24x40xf32>
    %c216_73 = arith.constant 216 : index
    %c40_74 = arith.constant 40 : index
    %46 = vector.load %arg28[%c216_73, %c40_74] : memref<288x80xf32, #tpu.memory_space<vmem>>, vector<24x40xf32>
    tpu.vector_store %arg28[%c216_73, %c40_74], %45 {strides = array<i32>} : memref<288x80xf32, #tpu.memory_space<vmem>>, vector<24x40xf32>,
    %c0_75 = arith.constant 0 : index
    %c80 = arith.constant 80 : index
    %47 = vector.load %arg26[%c0_75, %c80] : memref<24x128xf32, #tpu.memory_space<vmem>>, vector<24x40xf32>
    %c240 = arith.constant 240 : index
    %c0_76 = arith.constant 0 : index
    %48 = vector.load %arg28[%c240, %c0_76] : memref<288x80xf32, #tpu.memory_space<vmem>>, vector<24x40xf32>
    tpu.vector_store %arg28[%c240, %c0_76], %47 {strides = array<i32>} : memref<288x80xf32, #tpu.memory_space<vmem>>, vector<24x40xf32>,
    %c0_77 = arith.constant 0 : index
    %c80_78 = arith.constant 80 : index
    %49 = vector.load %arg27[%c0_77, %c80_78] : memref<24x128xf32, #tpu.memory_space<vmem>>, vector<24x40xf32>
    %c240_79 = arith.constant 240 : index
    %c40_80 = arith.constant 40 : index
    %50 = vector.load %arg28[%c240_79, %c40_80] : memref<288x80xf32, #tpu.memory_space<vmem>>, vector<24x40xf32>
    tpu.vector_store %arg28[%c240_79, %c40_80], %49 {strides = array<i32>} : memref<288x80xf32, #tpu.memory_space<vmem>>, vector<24x40xf32>,
    %c0_81 = arith.constant 0 : index
    %c88 = arith.constant 88 : index
    %51 = vector.load %arg26[%c0_81, %c88] : memref<24x128xf32, #tpu.memory_space<vmem>>, vector<24x40xf32>
    %c264 = arith.constant 264 : index
    %c0_82 = arith.constant 0 : index
    %52 = vector.load %arg28[%c264, %c0_82] : memref<288x80xf32, #tpu.memory_space<vmem>>, vector<24x40xf32>
    tpu.vector_store %arg28[%c264, %c0_82], %51 {strides = array<i32>} : memref<288x80xf32, #tpu.memory_space<vmem>>, vector<24x40xf32>,
    %c0_83 = arith.constant 0 : index
    %c88_84 = arith.constant 88 : index
    %53 = vector.load %arg27[%c0_83, %c88_84] : memref<24x128xf32, #tpu.memory_space<vmem>>, vector<24x40xf32>
    %c264_85 = arith.constant 264 : index
    %c40_86 = arith.constant 40 : index
    %54 = vector.load %arg28[%c264_85, %c40_86] : memref<288x80xf32, #tpu.memory_space<vmem>>, vector<24x40xf32>
    tpu.vector_store %arg28[%c264_85, %c40_86], %53 {strides = array<i32>} : memref<288x80xf32, #tpu.memory_space<vmem>>, vector<24x40xf32>,
    %c0_87 = arith.constant 0 : index
    %c0_88 = arith.constant 0 : index
    %55 = vector.load %arg28[%c0_87, %c0_88] : memref<288x80xf32, #tpu.memory_space<vmem>>, vector<288x80xf32>
    %c0_89 = arith.constant 0 : index
    %c0_90 = arith.constant 0 : index
    %56 = vector.load %arg5[%c0_89, %c0_90] : memref<80x32xf32, #tpu.memory_space<vmem>>, vector<80x32xf32>
    %cst_91 = arith.constant dense<0.000000e+00> : vector<288x32xf32>
    %57 = tpu.matmul %55, %56, %cst_91 {dimension_numbers = #tpu.dot_dimension_numbers<[1], [0], [0], [1], [0, 0, 1, 1], [], []>} : vector<288x80xf32>, vector<80x32xf32>, vector<288x32xf32> -> vector<288x32xf32>
    %c0_92 = arith.constant 0 : index
    %c0_93 = arith.constant 0 : index
    %58 = vector.load %arg6[%c0_92, %c0_93] : memref<1x32xf32, #tpu.memory_space<vmem>>, vector<1x32xf32>
    %59 = vector.broadcast %58 : vector<1x32xf32> to vector<288x32xf32>
    %60 = arith.addf %57, %59 : vector<288x32xf32>
    %cst_94 = arith.constant 0.000000e+00 : f32
    %61 = vector.broadcast %cst_94 : f32 to vector<288x32xf32>
    %62 = arith.maximumf %60, %61 : vector<288x32xf32>
    %cst_95 = arith.constant dense<0.000000e+00> : vector<32xf32>
    %63 = vector.multi_reduction <add>, %62, %cst_95 [0] : vector<288x32xf32> to vector<32xf32>
    %64 = vector.shape_cast %63 : vector<32xf32> to vector<1x32xf32>
    %cst_96 = arith.constant 2.880000e+02 : f32
    %65 = vector.broadcast %cst_96 : f32 to vector<1x32xf32>
    %66 = arith.divf %64, %65 : vector<1x32xf32>
    %67 = vector.broadcast %66 : vector<1x32xf32> to vector<288x32xf32>
    %68 = arith.subf %62, %67 : vector<288x32xf32>
    %69 = arith.mulf %68, %68 : vector<288x32xf32>
    %cst_97 = arith.constant dense<0.000000e+00> : vector<32xf32>
    %70 = vector.multi_reduction <add>, %69, %cst_97 [0] : vector<288x32xf32> to vector<32xf32>
    %71 = vector.shape_cast %70 : vector<32xf32> to vector<1x32xf32>
    %cst_98 = arith.constant 2.880000e+02 : f32
    %72 = vector.broadcast %cst_98 : f32 to vector<1x32xf32>
    %73 = arith.divf %71, %72 : vector<1x32xf32>
    %74 = vector.broadcast %66 : vector<1x32xf32> to vector<288x32xf32>
    %75 = arith.subf %62, %74 : vector<288x32xf32>
    %cst_99 = arith.constant 9.99999974E-6 : f32
    %76 = vector.broadcast %cst_99 : f32 to vector<1x32xf32>
    %77 = arith.addf %73, %76 : vector<1x32xf32>
    %78 = math.rsqrt %77 : vector<1x32xf32>
    %79 = vector.broadcast %78 : vector<1x32xf32> to vector<288x32xf32>
    %80 = arith.mulf %75, %79 : vector<288x32xf32>
    %81 = vector.extract_strided_slice %80 {offsets = [0, 0], sizes = [24, 32], strides = [1, 1]} : vector<288x32xf32> to vector<24x32xf32>
    %82 = vector.extract_strided_slice %80 {offsets = [24, 0], sizes = [24, 32], strides = [1, 1]} : vector<288x32xf32> to vector<24x32xf32>
    %83 = arith.maximumf %81, %82 : vector<24x32xf32>
    %84 = vector.extract_strided_slice %80 {offsets = [48, 0], sizes = [24, 32], strides = [1, 1]} : vector<288x32xf32> to vector<24x32xf32>
    %85 = vector.extract_strided_slice %80 {offsets = [72, 0], sizes = [24, 32], strides = [1, 1]} : vector<288x32xf32> to vector<24x32xf32>
    %86 = arith.maximumf %84, %85 : vector<24x32xf32>
    %87 = vector.extract_strided_slice %80 {offsets = [96, 0], sizes = [24, 32], strides = [1, 1]} : vector<288x32xf32> to vector<24x32xf32>
    %88 = vector.extract_strided_slice %80 {offsets = [120, 0], sizes = [24, 32], strides = [1, 1]} : vector<288x32xf32> to vector<24x32xf32>
    %89 = arith.maximumf %87, %88 : vector<24x32xf32>
    %90 = vector.extract_strided_slice %80 {offsets = [144, 0], sizes = [24, 32], strides = [1, 1]} : vector<288x32xf32> to vector<24x32xf32>
    %91 = vector.extract_strided_slice %80 {offsets = [168, 0], sizes = [24, 32], strides = [1, 1]} : vector<288x32xf32> to vector<24x32xf32>
    %92 = arith.maximumf %90, %91 : vector<24x32xf32>
    %93 = vector.extract_strided_slice %80 {offsets = [192, 0], sizes = [24, 32], strides = [1, 1]} : vector<288x32xf32> to vector<24x32xf32>
    %94 = vector.extract_strided_slice %80 {offsets = [216, 0], sizes = [24, 32], strides = [1, 1]} : vector<288x32xf32> to vector<24x32xf32>
    %95 = arith.maximumf %93, %94 : vector<24x32xf32>
    %96 = vector.extract_strided_slice %80 {offsets = [240, 0], sizes = [24, 32], strides = [1, 1]} : vector<288x32xf32> to vector<24x32xf32>
    %97 = vector.extract_strided_slice %80 {offsets = [264, 0], sizes = [24, 32], strides = [1, 1]} : vector<288x32xf32> to vector<24x32xf32>
    %98 = arith.maximumf %96, %97 : vector<24x32xf32>
    %c0_100 = arith.constant 0 : index
    %c0_101 = arith.constant 0 : index
    %99 = vector.load %arg29[%c0_100, %c0_101] : memref<48x160xf32, #tpu.memory_space<vmem>>, vector<24x32xf32>
    tpu.vector_store %arg29[%c0_100, %c0_101], %83 {strides = array<i32>} : memref<48x160xf32, #tpu.memory_space<vmem>>, vector<24x32xf32>,
    %c0_102 = arith.constant 0 : index
    %c32_103 = arith.constant 32 : index
    %100 = vector.load %arg29[%c0_102, %c32_103] : memref<48x160xf32, #tpu.memory_space<vmem>>, vector<24x32xf32>
    tpu.vector_store %arg29[%c0_102, %c32_103], %86 {strides = array<i32>} : memref<48x160xf32, #tpu.memory_space<vmem>>, vector<24x32xf32>,
    %c0_104 = arith.constant 0 : index
    %c64_105 = arith.constant 64 : index
    %101 = vector.load %arg29[%c0_104, %c64_105] : memref<48x160xf32, #tpu.memory_space<vmem>>, vector<24x32xf32>
    tpu.vector_store %arg29[%c0_104, %c64_105], %89 {strides = array<i32>} : memref<48x160xf32, #tpu.memory_space<vmem>>, vector<24x32xf32>,
    %c0_106 = arith.constant 0 : index
    %c96_107 = arith.constant 96 : index
    %102 = vector.load %arg29[%c0_106, %c96_107] : memref<48x160xf32, #tpu.memory_space<vmem>>, vector<24x32xf32>
    tpu.vector_store %arg29[%c0_106, %c96_107], %92 {strides = array<i32>} : memref<48x160xf32, #tpu.memory_space<vmem>>, vector<24x32xf32>,
    %c0_108 = arith.constant 0 : index
    %c128 = arith.constant 128 : index
    %103 = vector.load %arg29[%c0_108, %c128] : memref<48x160xf32, #tpu.memory_space<vmem>>, vector<24x32xf32>
    tpu.vector_store %arg29[%c0_108, %c128], %95 {strides = array<i32>} : memref<48x160xf32, #tpu.memory_space<vmem>>, vector<24x32xf32>,
    %c24_109 = arith.constant 24 : index
    %c0_110 = arith.constant 0 : index
    %104 = vector.load %arg29[%c24_109, %c0_110] : memref<48x160xf32, #tpu.memory_space<vmem>>, vector<24x32xf32>
    tpu.vector_store %arg29[%c24_109, %c0_110], %86 {strides = array<i32>} : memref<48x160xf32, #tpu.memory_space<vmem>>, vector<24x32xf32>,
    %c24_111 = arith.constant 24 : index
    %c32_112 = arith.constant 32 : index
    %105 = vector.load %arg29[%c24_111, %c32_112] : memref<48x160xf32, #tpu.memory_space<vmem>>, vector<24x32xf32>
    tpu.vector_store %arg29[%c24_111, %c32_112], %89 {strides = array<i32>} : memref<48x160xf32, #tpu.memory_space<vmem>>, vector<24x32xf32>,
    %c24_113 = arith.constant 24 : index
    %c64_114 = arith.constant 64 : index
    %106 = vector.load %arg29[%c24_113, %c64_114] : memref<48x160xf32, #tpu.memory_space<vmem>>, vector<24x32xf32>
    tpu.vector_store %arg29[%c24_113, %c64_114], %92 {strides = array<i32>} : memref<48x160xf32, #tpu.memory_space<vmem>>, vector<24x32xf32>,
    %c24_115 = arith.constant 24 : index
    %c96_116 = arith.constant 96 : index
    %107 = vector.load %arg29[%c24_115, %c96_116] : memref<48x160xf32, #tpu.memory_space<vmem>>, vector<24x32xf32>
    tpu.vector_store %arg29[%c24_115, %c96_116], %95 {strides = array<i32>} : memref<48x160xf32, #tpu.memory_space<vmem>>, vector<24x32xf32>,
    %c24_117 = arith.constant 24 : index
    %c128_118 = arith.constant 128 : index
    %108 = vector.load %arg29[%c24_117, %c128_118] : memref<48x160xf32, #tpu.memory_space<vmem>>, vector<24x32xf32>
    tpu.vector_store %arg29[%c24_117, %c128_118], %98 {strides = array<i32>} : memref<48x160xf32, #tpu.memory_space<vmem>>, vector<24x32xf32>,
    %c0_119 = arith.constant 0 : index
    %c0_120 = arith.constant 0 : index
    %109 = vector.load %arg29[%c0_119, %c0_120] : memref<48x160xf32, #tpu.memory_space<vmem>>, vector<48x160xf32>
    %c0_121 = arith.constant 0 : index
    %c0_122 = arith.constant 0 : index
    %110 = vector.load %arg7[%c0_121, %c0_122] : memref<160x32xf32, #tpu.memory_space<vmem>>, vector<160x32xf32>
    %cst_123 = arith.constant dense<0.000000e+00> : vector<48x32xf32>
    %111 = tpu.matmul %109, %110, %cst_123 {dimension_numbers = #tpu.dot_dimension_numbers<[1], [0], [0], [1], [0, 0, 1, 1], [], []>} : vector<48x160xf32>, vector<160x32xf32>, vector<48x32xf32> -> vector<48x32xf32>
    %c0_124 = arith.constant 0 : index
    %c0_125 = arith.constant 0 : index
    %112 = vector.load %arg8[%c0_124, %c0_125] : memref<1x32xf32, #tpu.memory_space<vmem>>, vector<1x32xf32>
    %113 = vector.broadcast %112 : vector<1x32xf32> to vector<48x32xf32>
    %114 = arith.addf %111, %113 : vector<48x32xf32>
    %cst_126 = arith.constant 0.000000e+00 : f32
    %115 = vector.broadcast %cst_126 : f32 to vector<48x32xf32>
    %116 = arith.maximumf %114, %115 : vector<48x32xf32>
    %cst_127 = arith.constant dense<0.000000e+00> : vector<32xf32>
    %117 = vector.multi_reduction <add>, %116, %cst_127 [0] : vector<48x32xf32> to vector<32xf32>
    %118 = vector.shape_cast %117 : vector<32xf32> to vector<1x32xf32>
    %cst_128 = arith.constant 4.800000e+01 : f32
    %119 = vector.broadcast %cst_128 : f32 to vector<1x32xf32>
    %120 = arith.divf %118, %119 : vector<1x32xf32>
    %121 = vector.broadcast %120 : vector<1x32xf32> to vector<48x32xf32>
    %122 = arith.subf %116, %121 : vector<48x32xf32>
    %123 = arith.mulf %122, %122 : vector<48x32xf32>
    %cst_129 = arith.constant dense<0.000000e+00> : vector<32xf32>
    %124 = vector.multi_reduction <add>, %123, %cst_129 [0] : vector<48x32xf32> to vector<32xf32>
    %125 = vector.shape_cast %124 : vector<32xf32> to vector<1x32xf32>
    %cst_130 = arith.constant 4.800000e+01 : f32
    %126 = vector.broadcast %cst_130 : f32 to vector<1x32xf32>
    %127 = arith.divf %125, %126 : vector<1x32xf32>
    %128 = vector.broadcast %120 : vector<1x32xf32> to vector<48x32xf32>
    %129 = arith.subf %116, %128 : vector<48x32xf32>
    %cst_131 = arith.constant 9.99999974E-6 : f32
    %130 = vector.broadcast %cst_131 : f32 to vector<1x32xf32>
    %131 = arith.addf %127, %130 : vector<1x32xf32>
    %132 = math.rsqrt %131 : vector<1x32xf32>
    %133 = vector.broadcast %132 : vector<1x32xf32> to vector<48x32xf32>
    %134 = arith.mulf %129, %133 : vector<48x32xf32>
    %135 = vector.extract_strided_slice %134 {offsets = [0, 0], sizes = [24, 32], strides = [1, 1]} : vector<48x32xf32> to vector<24x32xf32>
    %136 = vector.extract_strided_slice %134 {offsets = [24, 0], sizes = [24, 32], strides = [1, 1]} : vector<48x32xf32> to vector<24x32xf32>
    %137 = arith.addf %135, %136 : vector<24x32xf32>
    %cst_132 = arith.constant 5.000000e-01 : f32
    %138 = vector.broadcast %cst_132 : f32 to vector<24x32xf32>
    %139 = arith.mulf %137, %138 : vector<24x32xf32>
    %c0_133 = arith.constant 0 : index
    %c0_134 = arith.constant 0 : index
    %140 = vector.load %arg9[%c0_133, %c0_134] : memref<32x32xf32, #tpu.memory_space<vmem>>, vector<32x32xf32>
    %cst_135 = arith.constant dense<0.000000e+00> : vector<24x32xf32>
    %141 = tpu.matmul %139, %140, %cst_135 {dimension_numbers = #tpu.dot_dimension_numbers<[1], [0], [0], [1], [0, 0, 1, 1], [], []>} : vector<24x32xf32>, vector<32x32xf32>, vector<24x32xf32> -> vector<24x32xf32>
    %c0_136 = arith.constant 0 : index
    %c0_137 = arith.constant 0 : index
    %142 = vector.load %arg10[%c0_136, %c0_137] : memref<1x32xf32, #tpu.memory_space<vmem>>, vector<1x32xf32>
    %143 = vector.broadcast %142 : vector<1x32xf32> to vector<24x32xf32>
    %144 = arith.addf %141, %143 : vector<24x32xf32>
    %c0_138 = arith.constant 0 : index
    %c0_139 = arith.constant 0 : index
    %145 = vector.load %arg11[%c0_138, %c0_139] : memref<32x32xf32, #tpu.memory_space<vmem>>, vector<32x32xf32>
    %c0_140 = arith.constant 0 : index
    %c0_141 = arith.constant 0 : index
    %146 = vector.load %arg12[%c0_140, %c0_141] : memref<1x32xf32, #tpu.memory_space<vmem>>, vector<1x32xf32>
    %c0_142 = arith.constant 0 : index
    %c0_143 = arith.constant 0 : index
    %147 = vector.load %arg13[%c0_142, %c0_143] : memref<32x32xf32, #tpu.memory_space<vmem>>, vector<32x32xf32>
    %c0_144 = arith.constant 0 : index
    %c0_145 = arith.constant 0 : index
    %148 = vector.load %arg14[%c0_144, %c0_145] : memref<1x32xf32, #tpu.memory_space<vmem>>, vector<1x32xf32>
    %cst_146 = arith.constant dense<0.000000e+00> : vector<24x32xf32>
    %149 = tpu.matmul %144, %145, %cst_146 {dimension_numbers = #tpu.dot_dimension_numbers<[1], [0], [0], [1], [0, 0, 1, 1], [], []>} : vector<24x32xf32>, vector<32x32xf32>, vector<24x32xf32> -> vector<24x32xf32>
    %150 = vector.broadcast %146 : vector<1x32xf32> to vector<24x32xf32>
    %151 = arith.addf %149, %150 : vector<24x32xf32>
    %cst_147 = arith.constant 0.000000e+00 : f32
    %152 = vector.broadcast %cst_147 : f32 to vector<24x32xf32>
    %153 = arith.cmpf ogt, %151, %152 : vector<24x32xf32>
    %cst_148 = arith.constant 0.000000e+00 : f32
    %154 = vector.broadcast %cst_148 : f32 to vector<24x32xf32>
    %155 = arith.minimumf %151, %154 : vector<24x32xf32>
    %156 = math.exp %155 : vector<24x32xf32>
    %cst_149 = arith.constant 1.000000e+00 : f32
    %157 = vector.broadcast %cst_149 : f32 to vector<24x32xf32>
    %158 = arith.subf %156, %157 : vector<24x32xf32>
    %159 = arith.select %153, %151, %158 : vector<24x32xi1>, vector<24x32xf32>
    %cst_150 = arith.constant dense<0.000000e+00> : vector<24x32xf32>
    %160 = tpu.matmul %159, %147, %cst_150 {dimension_numbers = #tpu.dot_dimension_numbers<[1], [0], [0], [1], [0, 0, 1, 1], [], []>} : vector<24x32xf32>, vector<32x32xf32>, vector<24x32xf32> -> vector<24x32xf32>
    %161 = vector.broadcast %148 : vector<1x32xf32> to vector<24x32xf32>
    %162 = arith.addf %160, %161 : vector<24x32xf32>
    %cst_151 = arith.constant 0.000000e+00 : f32
    %163 = vector.broadcast %cst_151 : f32 to vector<24x32xf32>
    %164 = arith.cmpf ogt, %162, %163 : vector<24x32xf32>
    %cst_152 = arith.constant 0.000000e+00 : f32
    %165 = vector.broadcast %cst_152 : f32 to vector<24x32xf32>
    %166 = arith.minimumf %162, %165 : vector<24x32xf32>
    %167 = math.exp %166 : vector<24x32xf32>
    %cst_153 = arith.constant 1.000000e+00 : f32
    %168 = vector.broadcast %cst_153 : f32 to vector<24x32xf32>
    %169 = arith.subf %167, %168 : vector<24x32xf32>
    %170 = arith.select %164, %162, %169 : vector<24x32xi1>, vector<24x32xf32>
    %cst_154 = arith.constant dense<0.000000e+00> : vector<32xf32>
    %171 = vector.multi_reduction <add>, %170, %cst_154 [0] : vector<24x32xf32> to vector<32xf32>
    %172 = vector.shape_cast %171 : vector<32xf32> to vector<1x32xf32>
    %cst_155 = arith.constant 2.400000e+01 : f32
    %173 = vector.broadcast %cst_155 : f32 to vector<1x32xf32>
    %174 = arith.divf %172, %173 : vector<1x32xf32>
    %175 = vector.broadcast %174 : vector<1x32xf32> to vector<24x32xf32>
    %176 = arith.subf %170, %175 : vector<24x32xf32>
    %177 = arith.mulf %176, %176 : vector<24x32xf32>
    %cst_156 = arith.constant dense<0.000000e+00> : vector<32xf32>
    %178 = vector.multi_reduction <add>, %177, %cst_156 [0] : vector<24x32xf32> to vector<32xf32>
    %179 = vector.shape_cast %178 : vector<32xf32> to vector<1x32xf32>
    %cst_157 = arith.constant 2.400000e+01 : f32
    %180 = vector.broadcast %cst_157 : f32 to vector<1x32xf32>
    %181 = arith.divf %179, %180 : vector<1x32xf32>
    %182 = vector.broadcast %174 : vector<1x32xf32> to vector<24x32xf32>
    %183 = arith.subf %170, %182 : vector<24x32xf32>
    %cst_158 = arith.constant 9.99999974E-6 : f32
    %184 = vector.broadcast %cst_158 : f32 to vector<1x32xf32>
    %185 = arith.addf %181, %184 : vector<1x32xf32>
    %186 = math.rsqrt %185 : vector<1x32xf32>
    %187 = vector.broadcast %186 : vector<1x32xf32> to vector<24x32xf32>
    %188 = arith.mulf %183, %187 : vector<24x32xf32>
    %c0_159 = arith.constant 0 : index
    %c0_160 = arith.constant 0 : index
    %189 = vector.load %arg4[%c0_159, %c0_160] : memref<8x24xf32, #tpu.memory_space<vmem>>, vector<8x24xf32>
    %cst_161 = arith.constant dense<0.000000e+00> : vector<8x32xf32>
    %190 = tpu.matmul %189, %188, %cst_161 {dimension_numbers = #tpu.dot_dimension_numbers<[1], [0], [0], [1], [0, 0, 1, 1], [], []>} : vector<8x24xf32>, vector<24x32xf32>, vector<8x32xf32> -> vector<8x32xf32>
    %cst_162 = arith.constant 2.500000e-01 : f32
    %191 = vector.broadcast %cst_162 : f32 to vector<8x32xf32>
    %192 = arith.mulf %190, %191 : vector<8x32xf32>
    %c0_163 = arith.constant 0 : index
    %c0_164 = arith.constant 0 : index
    %193 = vector.load %arg15[%c0_163, %c0_164] : memref<32x32xf32, #tpu.memory_space<vmem>>, vector<32x32xf32>
    %c0_165 = arith.constant 0 : index
    %c0_166 = arith.constant 0 : index
    %194 = vector.load %arg16[%c0_165, %c0_166] : memref<1x32xf32, #tpu.memory_space<vmem>>, vector<1x32xf32>
    %c0_167 = arith.constant 0 : index
    %c0_168 = arith.constant 0 : index
    %195 = vector.load %arg17[%c0_167, %c0_168] : memref<32x32xf32, #tpu.memory_space<vmem>>, vector<32x32xf32>
    %c0_169 = arith.constant 0 : index
    %c0_170 = arith.constant 0 : index
    %196 = vector.load %arg18[%c0_169, %c0_170] : memref<1x32xf32, #tpu.memory_space<vmem>>, vector<1x32xf32>
    %cst_171 = arith.constant dense<0.000000e+00> : vector<8x32xf32>
    %197 = tpu.matmul %192, %193, %cst_171 {dimension_numbers = #tpu.dot_dimension_numbers<[1], [0], [0], [1], [0, 0, 1, 1], [], []>} : vector<8x32xf32>, vector<32x32xf32>, vector<8x32xf32> -> vector<8x32xf32>
    %198 = vector.broadcast %194 : vector<1x32xf32> to vector<8x32xf32>
    %199 = arith.addf %197, %198 : vector<8x32xf32>
    %cst_172 = arith.constant 0.000000e+00 : f32
    %200 = vector.broadcast %cst_172 : f32 to vector<8x32xf32>
    %201 = arith.cmpf ogt, %199, %200 : vector<8x32xf32>
    %cst_173 = arith.constant 0.000000e+00 : f32
    %202 = vector.broadcast %cst_173 : f32 to vector<8x32xf32>
    %203 = arith.minimumf %199, %202 : vector<8x32xf32>
    %204 = math.exp %203 : vector<8x32xf32>
    %cst_174 = arith.constant 1.000000e+00 : f32
    %205 = vector.broadcast %cst_174 : f32 to vector<8x32xf32>
    %206 = arith.subf %204, %205 : vector<8x32xf32>
    %207 = arith.select %201, %199, %206 : vector<8x32xi1>, vector<8x32xf32>
    %cst_175 = arith.constant dense<0.000000e+00> : vector<8x32xf32>
    %208 = tpu.matmul %207, %195, %cst_175 {dimension_numbers = #tpu.dot_dimension_numbers<[1], [0], [0], [1], [0, 0, 1, 1], [], []>} : vector<8x32xf32>, vector<32x32xf32>, vector<8x32xf32> -> vector<8x32xf32>
    %209 = vector.broadcast %196 : vector<1x32xf32> to vector<8x32xf32>
    %210 = arith.addf %208, %209 : vector<8x32xf32>
    %cst_176 = arith.constant 0.000000e+00 : f32
    %211 = vector.broadcast %cst_176 : f32 to vector<8x32xf32>
    %212 = arith.cmpf ogt, %210, %211 : vector<8x32xf32>
    %cst_177 = arith.constant 0.000000e+00 : f32
    %213 = vector.broadcast %cst_177 : f32 to vector<8x32xf32>
    %214 = arith.minimumf %210, %213 : vector<8x32xf32>
    %215 = math.exp %214 : vector<8x32xf32>
    %cst_178 = arith.constant 1.000000e+00 : f32
    %216 = vector.broadcast %cst_178 : f32 to vector<8x32xf32>
    %217 = arith.subf %215, %216 : vector<8x32xf32>
    %218 = arith.select %212, %210, %217 : vector<8x32xi1>, vector<8x32xf32>
    %cst_179 = arith.constant dense<0.000000e+00> : vector<32xf32>
    %219 = vector.multi_reduction <add>, %218, %cst_179 [0] : vector<8x32xf32> to vector<32xf32>
    %220 = vector.shape_cast %219 : vector<32xf32> to vector<1x32xf32>
    %cst_180 = arith.constant 8.000000e+00 : f32
    %221 = vector.broadcast %cst_180 : f32 to vector<1x32xf32>
    %222 = arith.divf %220, %221 : vector<1x32xf32>
    %223 = vector.broadcast %222 : vector<1x32xf32> to vector<8x32xf32>
    %224 = arith.subf %218, %223 : vector<8x32xf32>
    %225 = arith.mulf %224, %224 : vector<8x32xf32>
    %cst_181 = arith.constant dense<0.000000e+00> : vector<32xf32>
    %226 = vector.multi_reduction <add>, %225, %cst_181 [0] : vector<8x32xf32> to vector<32xf32>
    %227 = vector.shape_cast %226 : vector<32xf32> to vector<1x32xf32>
    %cst_182 = arith.constant 8.000000e+00 : f32
    %228 = vector.broadcast %cst_182 : f32 to vector<1x32xf32>
    %229 = arith.divf %227, %228 : vector<1x32xf32>
    %230 = vector.broadcast %222 : vector<1x32xf32> to vector<8x32xf32>
    %231 = arith.subf %218, %230 : vector<8x32xf32>
    %cst_183 = arith.constant 9.99999974E-6 : f32
    %232 = vector.broadcast %cst_183 : f32 to vector<1x32xf32>
    %233 = arith.addf %229, %232 : vector<1x32xf32>
    %234 = math.rsqrt %233 : vector<1x32xf32>
    %235 = vector.broadcast %234 : vector<1x32xf32> to vector<8x32xf32>
    %236 = arith.mulf %231, %235 : vector<8x32xf32>
    %c0_184 = arith.constant 0 : index
    %c0_185 = arith.constant 0 : index
    %237 = vector.load %arg2[%c0_184, %c0_185] : memref<24x8xf32, #tpu.memory_space<vmem>>, vector<24x8xf32>
    %cst_186 = arith.constant dense<0.000000e+00> : vector<24x32xf32>
    %238 = tpu.matmul %237, %236, %cst_186 {dimension_numbers = #tpu.dot_dimension_numbers<[1], [0], [0], [1], [0, 0, 1, 1], [], []>} : vector<24x8xf32>, vector<8x32xf32>, vector<24x32xf32> -> vector<24x32xf32>
    %c0_187 = arith.constant 0 : index
    %c0_188 = arith.constant 0 : index
    %239 = vector.load %arg3[%c0_187, %c0_188] : memref<24x8xf32, #tpu.memory_space<vmem>>, vector<24x8xf32>
    %cst_189 = arith.constant dense<0.000000e+00> : vector<24x32xf32>
    %240 = tpu.matmul %239, %236, %cst_189 {dimension_numbers = #tpu.dot_dimension_numbers<[1], [0], [0], [1], [0, 0, 1, 1], [], []>} : vector<24x8xf32>, vector<8x32xf32>, vector<24x32xf32> -> vector<24x32xf32>
    %c0_190 = arith.constant 0 : index
    %c0_191 = arith.constant 0 : index
    %241 = vector.load %arg19[%c0_190, %c0_191] : memref<96x32xf32, #tpu.memory_space<vmem>>, vector<96x32xf32>
    %242 = vector.extract_strided_slice %241 {offsets = [0, 0], sizes = [32, 32], strides = [1, 1]} : vector<96x32xf32> to vector<32x32xf32>
    %cst_192 = arith.constant dense<0.000000e+00> : vector<24x32xf32>
    %243 = tpu.matmul %238, %242, %cst_192 {dimension_numbers = #tpu.dot_dimension_numbers<[1], [0], [0], [1], [0, 0, 1, 1], [], []>} : vector<24x32xf32>, vector<32x32xf32>, vector<24x32xf32> -> vector<24x32xf32>
    %244 = vector.extract_strided_slice %241 {offsets = [32, 0], sizes = [32, 32], strides = [1, 1]} : vector<96x32xf32> to vector<32x32xf32>
    %cst_193 = arith.constant dense<0.000000e+00> : vector<24x32xf32>
    %245 = tpu.matmul %240, %244, %cst_193 {dimension_numbers = #tpu.dot_dimension_numbers<[1], [0], [0], [1], [0, 0, 1, 1], [], []>} : vector<24x32xf32>, vector<32x32xf32>, vector<24x32xf32> -> vector<24x32xf32>
    %246 = arith.addf %243, %245 : vector<24x32xf32>
    %247 = vector.extract_strided_slice %241 {offsets = [64, 0], sizes = [32, 32], strides = [1, 1]} : vector<96x32xf32> to vector<32x32xf32>
    %cst_194 = arith.constant dense<0.000000e+00> : vector<24x32xf32>
    %248 = tpu.matmul %188, %247, %cst_194 {dimension_numbers = #tpu.dot_dimension_numbers<[1], [0], [0], [1], [0, 0, 1, 1], [], []>} : vector<24x32xf32>, vector<32x32xf32>, vector<24x32xf32> -> vector<24x32xf32>
    %249 = arith.addf %246, %248 : vector<24x32xf32>
    %c0_195 = arith.constant 0 : index
    %c0_196 = arith.constant 0 : index
    %250 = vector.load %arg20[%c0_195, %c0_196] : memref<1x32xf32, #tpu.memory_space<vmem>>, vector<1x32xf32>
    %251 = vector.broadcast %250 : vector<1x32xf32> to vector<24x32xf32>
    %252 = arith.addf %249, %251 : vector<24x32xf32>
    %cst_197 = arith.constant 0.000000e+00 : f32
    %253 = vector.broadcast %cst_197 : f32 to vector<24x32xf32>
    %254 = arith.cmpf ogt, %252, %253 : vector<24x32xf32>
    %cst_198 = arith.constant 0.000000e+00 : f32
    %255 = vector.broadcast %cst_198 : f32 to vector<24x32xf32>
    %256 = arith.minimumf %252, %255 : vector<24x32xf32>
    %257 = math.exp %256 : vector<24x32xf32>
    %cst_199 = arith.constant 1.000000e+00 : f32
    %258 = vector.broadcast %cst_199 : f32 to vector<24x32xf32>
    %259 = arith.subf %257, %258 : vector<24x32xf32>
    %260 = arith.select %254, %252, %259 : vector<24x32xi1>, vector<24x32xf32>
    %c0_200 = arith.constant 0 : index
    %c0_201 = arith.constant 0 : index
    %261 = vector.load %arg21[%c0_200, %c0_201] : memref<32x32xf32, #tpu.memory_space<vmem>>, vector<32x32xf32>
    %cst_202 = arith.constant dense<0.000000e+00> : vector<24x32xf32>
    %262 = tpu.matmul %260, %261, %cst_202 {dimension_numbers = #tpu.dot_dimension_numbers<[1], [0], [0], [1], [0, 0, 1, 1], [], []>} : vector<24x32xf32>, vector<32x32xf32>, vector<24x32xf32> -> vector<24x32xf32>
    %c0_203 = arith.constant 0 : index
    %c0_204 = arith.constant 0 : index
    %263 = vector.load %arg22[%c0_203, %c0_204] : memref<1x32xf32, #tpu.memory_space<vmem>>, vector<1x32xf32>
    %264 = vector.broadcast %263 : vector<1x32xf32> to vector<24x32xf32>
    %265 = arith.addf %262, %264 : vector<24x32xf32>
    %cst_205 = arith.constant 0.000000e+00 : f32
    %266 = vector.broadcast %cst_205 : f32 to vector<24x32xf32>
    %267 = arith.cmpf ogt, %265, %266 : vector<24x32xf32>
    %cst_206 = arith.constant 0.000000e+00 : f32
    %268 = vector.broadcast %cst_206 : f32 to vector<24x32xf32>
    %269 = arith.minimumf %265, %268 : vector<24x32xf32>
    %270 = math.exp %269 : vector<24x32xf32>
    %cst_207 = arith.constant 1.000000e+00 : f32
    %271 = vector.broadcast %cst_207 : f32 to vector<24x32xf32>
    %272 = arith.subf %270, %271 : vector<24x32xf32>
    %273 = arith.select %267, %265, %272 : vector<24x32xi1>, vector<24x32xf32>
    %cst_208 = arith.constant dense<0.000000e+00> : vector<32xf32>
    %274 = vector.multi_reduction <add>, %273, %cst_208 [0] : vector<24x32xf32> to vector<32xf32>
    %275 = vector.shape_cast %274 : vector<32xf32> to vector<1x32xf32>
    %cst_209 = arith.constant 2.400000e+01 : f32
    %276 = vector.broadcast %cst_209 : f32 to vector<1x32xf32>
    %277 = arith.divf %275, %276 : vector<1x32xf32>
    %278 = vector.broadcast %277 : vector<1x32xf32> to vector<24x32xf32>
    %279 = arith.subf %273, %278 : vector<24x32xf32>
    %280 = arith.mulf %279, %279 : vector<24x32xf32>
    %cst_210 = arith.constant dense<0.000000e+00> : vector<32xf32>
    %281 = vector.multi_reduction <add>, %280, %cst_210 [0] : vector<24x32xf32> to vector<32xf32>
    %282 = vector.shape_cast %281 : vector<32xf32> to vector<1x32xf32>
    %cst_211 = arith.constant 2.400000e+01 : f32
    %283 = vector.broadcast %cst_211 : f32 to vector<1x32xf32>
    %284 = arith.divf %282, %283 : vector<1x32xf32>
    %285 = vector.broadcast %277 : vector<1x32xf32> to vector<24x32xf32>
    %286 = arith.subf %273, %285 : vector<24x32xf32>
    %cst_212 = arith.constant 9.99999974E-6 : f32
    %287 = vector.broadcast %cst_212 : f32 to vector<1x32xf32>
    %288 = arith.addf %284, %287 : vector<1x32xf32>
    %289 = math.rsqrt %288 : vector<1x32xf32>
    %290 = vector.broadcast %289 : vector<1x32xf32> to vector<24x32xf32>
    %291 = arith.mulf %286, %290 : vector<24x32xf32>
    %c0_213 = arith.constant 0 : index
    %c0_214 = arith.constant 0 : index
    %292 = vector.load %arg23[%c0_213, %c0_214] : memref<32x8xf32, #tpu.memory_space<vmem>>, vector<32x8xf32>
    %cst_215 = arith.constant dense<0.000000e+00> : vector<24x8xf32>
    %293 = tpu.matmul %291, %292, %cst_215 {dimension_numbers = #tpu.dot_dimension_numbers<[1], [0], [0], [1], [0, 0, 1, 1], [], []>} : vector<24x32xf32>, vector<32x8xf32>, vector<24x8xf32> -> vector<24x8xf32>
    %c0_216 = arith.constant 0 : index
    %c0_217 = arith.constant 0 : index
    %294 = vector.load %arg24[%c0_216, %c0_217] : memref<1x8xf32, #tpu.memory_space<vmem>>, vector<1x8xf32>
    %295 = vector.broadcast %294 : vector<1x8xf32> to vector<24x8xf32>
    %296 = arith.addf %293, %295 : vector<24x8xf32>
    %c0_218 = arith.constant 0 : index
    %c0_219 = arith.constant 0 : index
    %297 = vector.load %arg25[%c0_218, %c0_219] : memref<24x8xf32, #tpu.memory_space<vmem>>, vector<24x8xf32>
    tpu.vector_store %arg25[%c0_218, %c0_219], %296 {strides = array<i32>} : memref<24x8xf32, #tpu.memory_space<vmem>>, vector<24x8xf32>,
    return
  }
  func.func @transform_0(%arg0: i32) -> (i32, i32) {
    %c0_i32 = arith.constant 0 : i32
    %c0_i32_0 = arith.constant 0 : i32
    %c0_i32_1 = arith.constant 0 : i32
    return %c0_i32, %c0_i32_0 : i32, i32
  }
  func.func @transform_1(%arg0: i32) -> (i32, i32) {
    %c0_i32 = arith.constant 0 : i32
    %c0_i32_0 = arith.constant 0 : i32
    %c0_i32_1 = arith.constant 0 : i32
    return %c0_i32, %c0_i32_0 : i32, i32
  }
  func.func @transform_2(%arg0: i32) -> (i32, i32) {
    %c0_i32 = arith.constant 0 : i32
    %c0_i32_0 = arith.constant 0 : i32
    %c0_i32_1 = arith.constant 0 : i32
    return %c0_i32, %c0_i32_0 : i32, i32
  }
  func.func @transform_3(%arg0: i32) -> (i32, i32) {
    %c0_i32 = arith.constant 0 : i32
    %c0_i32_0 = arith.constant 0 : i32
    %c0_i32_1 = arith.constant 0 : i32
    return %c0_i32, %c0_i32_0 : i32, i32
  }
  func.func @transform_4(%arg0: i32) -> (i32, i32) {
    %c0_i32 = arith.constant 0 : i32
    %c0_i32_0 = arith.constant 0 : i32
    %c0_i32_1 = arith.constant 0 : i32
    return %c0_i32, %c0_i32_0 : i32, i32
  }
  func.func @transform_5(%arg0: i32) -> (i32, i32) {
    %c0_i32 = arith.constant 0 : i32
    %c0_i32_0 = arith.constant 0 : i32
    %c0_i32_1 = arith.constant 0 : i32
    return %c0_i32, %c0_i32_0 : i32, i32
  }
  func.func @transform_6(%arg0: i32) -> (i32, i32) {
    %c0_i32 = arith.constant 0 : i32
    %c0_i32_0 = arith.constant 0 : i32
    %c0_i32_1 = arith.constant 0 : i32
    return %c0_i32, %c0_i32_0 : i32, i32
  }
  func.func @transform_7(%arg0: i32) -> (i32, i32) {
    %c0_i32 = arith.constant 0 : i32
    %c0_i32_0 = arith.constant 0 : i32
    %c0_i32_1 = arith.constant 0 : i32
    return %c0_i32, %c0_i32_0 : i32, i32
  }
  func.func @transform_8(%arg0: i32) -> (i32, i32) {
    %c0_i32 = arith.constant 0 : i32
    %c0_i32_0 = arith.constant 0 : i32
    %c0_i32_1 = arith.constant 0 : i32
    return %c0_i32, %c0_i32_0 : i32, i32
  }
  func.func @transform_9(%arg0: i32) -> (i32, i32) {
    %c0_i32 = arith.constant 0 : i32
    %c0_i32_0 = arith.constant 0 : i32
    %c0_i32_1 = arith.constant 0 : i32
    return %c0_i32, %c0_i32_0 : i32, i32
  }
  func.func @transform_10(%arg0: i32) -> (i32, i32) {
    %c0_i32 = arith.constant 0 : i32
    %c0_i32_0 = arith.constant 0 : i32
    %c0_i32_1 = arith.constant 0 : i32
    return %c0_i32, %c0_i32_0 : i32, i32
  }
  func.func @transform_11(%arg0: i32) -> (i32, i32) {
    %c0_i32 = arith.constant 0 : i32
    %c0_i32_0 = arith.constant 0 : i32
    %c0_i32_1 = arith.constant 0 : i32
    return %c0_i32, %c0_i32_0 : i32, i32
  }
  func.func @transform_12(%arg0: i32) -> (i32, i32) {
    %c0_i32 = arith.constant 0 : i32
    %c0_i32_0 = arith.constant 0 : i32
    %c0_i32_1 = arith.constant 0 : i32
    return %c0_i32, %c0_i32_0 : i32, i32
  }
  func.func @transform_13(%arg0: i32) -> (i32, i32) {
    %c0_i32 = arith.constant 0 : i32
    %c0_i32_0 = arith.constant 0 : i32
    %c0_i32_1 = arith.constant 0 : i32
    return %c0_i32, %c0_i32_0 : i32, i32
  }
  func.func @transform_14(%arg0: i32) -> (i32, i32) {
    %c0_i32 = arith.constant 0 : i32
    %c0_i32_0 = arith.constant 0 : i32
    %c0_i32_1 = arith.constant 0 : i32
    return %c0_i32, %c0_i32_0 : i32, i32
  }
  func.func @transform_15(%arg0: i32) -> (i32, i32) {
    %c0_i32 = arith.constant 0 : i32
    %c0_i32_0 = arith.constant 0 : i32
    %c0_i32_1 = arith.constant 0 : i32
    return %c0_i32, %c0_i32_0 : i32, i32
  }
  func.func @transform_16(%arg0: i32) -> (i32, i32) {
    %c0_i32 = arith.constant 0 : i32
    %c0_i32_0 = arith.constant 0 : i32
    %c0_i32_1 = arith.constant 0 : i32
    return %c0_i32, %c0_i32_0 : i32, i32
  }
  func.func @transform_17(%arg0: i32) -> (i32, i32) {
    %c0_i32 = arith.constant 0 : i32
    %c0_i32_0 = arith.constant 0 : i32
    %c0_i32_1 = arith.constant 0 : i32
    return %c0_i32, %c0_i32_0 : i32, i32
  }
  func.func @transform_18(%arg0: i32) -> (i32, i32) {
    %c0_i32 = arith.constant 0 : i32
    %c0_i32_0 = arith.constant 0 : i32
    %c0_i32_1 = arith.constant 0 : i32
    return %c0_i32, %c0_i32_0 : i32, i32
  }
  func.func @transform_19(%arg0: i32) -> (i32, i32) {
    %c0_i32 = arith.constant 0 : i32
    %c0_i32_0 = arith.constant 0 : i32
    %c0_i32_1 = arith.constant 0 : i32
    return %c0_i32, %c0_i32_0 : i32, i32
  }
  func.func @transform_20(%arg0: i32) -> (i32, i32) {
    %c0_i32 = arith.constant 0 : i32
    %c0_i32_0 = arith.constant 0 : i32
    %c0_i32_1 = arith.constant 0 : i32
    return %c0_i32, %c0_i32_0 : i32, i32
  }
  func.func @transform_21(%arg0: i32) -> (i32, i32) {
    %c0_i32 = arith.constant 0 : i32
    %c0_i32_0 = arith.constant 0 : i32
    %c0_i32_1 = arith.constant 0 : i32
    return %c0_i32, %c0_i32_0 : i32, i32
  }
  func.func @transform_22(%arg0: i32) -> (i32, i32) {
    %c0_i32 = arith.constant 0 : i32
    %c0_i32_0 = arith.constant 0 : i32
    %c0_i32_1 = arith.constant 0 : i32
    return %c0_i32, %c0_i32_0 : i32, i32
  }
  func.func @transform_23(%arg0: i32) -> (i32, i32) {
    %c0_i32 = arith.constant 0 : i32
    %c0_i32_0 = arith.constant 0 : i32
    %c0_i32_1 = arith.constant 0 : i32
    return %c0_i32, %c0_i32_0 : i32, i32
  }
  func.func @transform_24(%arg0: i32) -> (i32, i32) {
    %c0_i32 = arith.constant 0 : i32
    %c0_i32_0 = arith.constant 0 : i32
    %c0_i32_1 = arith.constant 0 : i32
    return %c0_i32, %c0_i32_0 : i32, i32
  }
}

</mosaic_0001>

<llo_original>
// kernel: cnn_encoder_forward.1
$region0: #{cnn_encoder_forward.1}
  #allocation0 [shape = 'u32[]', space=smem, size = 0x4, offset = 0x4, fixed_abs, tag = 'smem constant byte address 0x4 - core index']
  #allocation1 [shape = 'u32[144,128]{1,0:T(1,128)}', space=vmem, size = 0x12000, scoped, tag = 'internal scratch']
  #allocation2 [shape = 'f32[24,128]{1,0:T(8,128)}', space=vmem, size = 0x3000, scoped, tag = 'scratch operand']
  #allocation3 [shape = 'f32[24,128]{1,0:T(8,128)}', space=vmem, size = 0x3000, scoped, tag = 'scratch operand']
  #allocation4 [shape = 'f32[288,80]{1,0:T(8,128)}', space=vmem, size = 0x24000, scoped, tag = 'scratch operand']
  #allocation5 [shape = 'f32[48,160]{1,0:T(8,128)}', space=vmem, size = 0xc000, scoped, tag = 'scratch operand']
  %s0 = inlined_call_operand.vmem [shape: f32[8,128], index: 0, kind: input, shape index: {}]
  %s1 = inlined_call_operand.vmem [shape: f32[24,8], index: 1, kind: input, shape index: {}]
  %s2 = inlined_call_operand.vmem [shape: f32[24,8], index: 2, kind: input, shape index: {}]
  %s3 = inlined_call_operand.vmem [shape: f32[8,24], index: 3, kind: input, shape index: {}]
  %s4 = inlined_call_operand.vmem [shape: f32[80,32], index: 4, kind: input, shape index: {}]
  %s5 = inlined_call_operand.vmem [shape: f32[1,32], index: 5, kind: input, shape index: {}]
  %s6 = inlined_call_operand.vmem [shape: f32[160,32], index: 6, kind: input, shape index: {}]
  %s7 = inlined_call_operand.vmem [shape: f32[1,32], index: 7, kind: input, shape index: {}]
  %s8 = inlined_call_operand.vmem [shape: f32[32,32], index: 8, kind: input, shape index: {}]
  %s9 = inlined_call_operand.vmem [shape: f32[1,32], index: 9, kind: input, shape index: {}]
  %s10 = inlined_call_operand.vmem [shape: f32[32,32], index: 10, kind: input, shape index: {}]
  %s11 = inlined_call_operand.vmem [shape: f32[1,32], index: 11, kind: input, shape index: {}]
  %s12 = inlined_call_operand.vmem [shape: f32[32,32], index: 12, kind: input, shape index: {}]
  %s13 = inlined_call_operand.vmem [shape: f32[1,32], index: 13, kind: input, shape index: {}]
  %s14 = inlined_call_operand.vmem [shape: f32[32,32], index: 14, kind: input, shape index: {}]
  %s15 = inlined_call_operand.vmem [shape: f32[1,32], index: 15, kind: input, shape index: {}]
  %s16 = inlined_call_operand.vmem [shape: f32[32,32], index: 16, kind: input, shape index: {}]
  %s17 = inlined_call_operand.vmem [shape: f32[1,32], index: 17, kind: input, shape index: {}]
  %s18 = inlined_call_operand.vmem [shape: f32[96,32], index: 18, kind: input, shape index: {}]
  %s19 = inlined_call_operand.vmem [shape: f32[1,32], index: 19, kind: input, shape index: {}]
  %s20 = inlined_call_operand.vmem [shape: f32[32,32], index: 20, kind: input, shape index: {}]
  %s21 = inlined_call_operand.vmem [shape: f32[1,32], index: 21, kind: input, shape index: {}]
  %s22 = inlined_call_operand.vmem [shape: f32[32,8], index: 22, kind: input, shape index: {}]
  %s23 = inlined_call_operand.vmem [shape: f32[1,8], index: 23, kind: input, shape index: {}]
  %s24 = inlined_call_operand.vmem [shape: f32[24,8], index: 24, kind: output, shape index: {}]
  %s25 = sld [smem:[#allocation0]]
  $region106: #{cnn_encoder_forward.1} parent=0
    _
  %s27 = ssub.s32 1, %s25
  %s28 = scalar_select 0, %s27, %s25
  // Predicated region
  $region2: #{cnn_encoder_forward.1} parent=0 // pred_check
    _
  $region3: #{cnn_encoder_forward.1} parent=0 // pred_check_branch
    %30 = sbr.rel (0) target = $region5
  $region4: #{cnn_encoder_forward.1} parent=0 // pred_region
    _
  $region5: #{cnn_encoder_forward.1} parent=0 // pred_fallthru
    _
  // Predicated region
  $region6: #{cnn_encoder_forward.1} parent=0 // pred_check
    _
  $region7: #{cnn_encoder_forward.1} parent=0 // pred_check_branch
    %32 = sbr.rel (0) target = $region9
  $region8: #{cnn_encoder_forward.1} parent=0 // pred_region
    _
  $region9: #{cnn_encoder_forward.1} parent=0 // pred_fallthru
    _
  // Predicated region
  $region10: #{cnn_encoder_forward.1} parent=0 // pred_check
    _
  $region11: #{cnn_encoder_forward.1} parent=0 // pred_check_branch
    %34 = sbr.rel (0) target = $region13
  $region12: #{cnn_encoder_forward.1} parent=0 // pred_region
    _
  $region13: #{cnn_encoder_forward.1} parent=0 // pred_fallthru
    _
  // Predicated region
  $region14: #{cnn_encoder_forward.1} parent=0 // pred_check
    _
  $region15: #{cnn_encoder_forward.1} parent=0 // pred_check_branch
    %36 = sbr.rel (0) target = $region17
  $region16: #{cnn_encoder_forward.1} parent=0 // pred_region
    _
  $region17: #{cnn_encoder_forward.1} parent=0 // pred_fallthru
    _
  // Predicated region
  $region18: #{cnn_encoder_forward.1} parent=0 // pred_check
    _
  $region19: #{cnn_encoder_forward.1} parent=0 // pred_check_branch
    %38 = sbr.rel (0) target = $region21
  $region20: #{cnn_encoder_forward.1} parent=0 // pred_region
    _
  $region21: #{cnn_encoder_forward.1} parent=0 // pred_fallthru
    _
  // Predicated region
  $region22: #{cnn_encoder_forward.1} parent=0 // pred_check
    _
  $region23: #{cnn_encoder_forward.1} parent=0 // pred_check_branch
    %40 = sbr.rel (0) target = $region25
  $region24: #{cnn_encoder_forward.1} parent=0 // pred_region
    _
  $region25: #{cnn_encoder_forward.1} parent=0 // pred_fallthru
    _
  // Predicated region
  $region26: #{cnn_encoder_forward.1} parent=0 // pred_check
    _
  $region27: #{cnn_encoder_forward.1} parent=0 // pred_check_branch
    %42 = sbr.rel (0) target = $region29
  $region28: #{cnn_encoder_forward.1} parent=0 // pred_region
    _
  $region29: #{cnn_encoder_forward.1} parent=0 // pred_fallthru
    _
  // Predicated region
  $region30: #{cnn_encoder_forward.1} parent=0 // pred_check
    _
  $region31: #{cnn_encoder_forward.1} parent=0 // pred_check_branch
    %44 = sbr.rel (0) target = $region33
  $region32: #{cnn_encoder_forward.1} parent=0 // pred_region
    _
  $region33: #{cnn_encoder_forward.1} parent=0 // pred_fallthru
    _
  // Predicated region
  $region34: #{cnn_encoder_forward.1} parent=0 // pred_check
    _
  $region35: #{cnn_encoder_forward.1} parent=0 // pred_check_branch
    %46 = sbr.rel (0) target = $region37
  $region36: #{cnn_encoder_forward.1} parent=0 // pred_region
    _
  $region37: #{cnn_encoder_forward.1} parent=0 // pred_fallthru
    _
  // Predicated region
  $region38: #{cnn_encoder_forward.1} parent=0 // pred_check
    _
  $region39: #{cnn_encoder_forward.1} parent=0 // pred_check_branch
    %48 = sbr.rel (0) target = $region41
  $region40: #{cnn_encoder_forward.1} parent=0 // pred_region
    _
  $region41: #{cnn_encoder_forward.1} parent=0 // pred_fallthru
    _
  // Predicated region
  $region42: #{cnn_encoder_forward.1} parent=0 // pred_check
    _
  $region43: #{cnn_encoder_forward.1} parent=0 // pred_check_branch
    %50 = sbr.rel (0) target = $region45
  $region44: #{cnn_encoder_forward.1} parent=0 // pred_region
    _
  $region45: #{cnn_encoder_forward.1} parent=0 // pred_fallthru
    _
  // Predicated region
  $region46: #{cnn_encoder_forward.1} parent=0 // pred_check
    _
  $region47: #{cnn_encoder_forward.1} parent=0 // pred_check_branch
    %52 = sbr.rel (0) target = $region49
  $region48: #{cnn_encoder_forward.1} parent=0 // pred_region
    _
  $region49: #{cnn_encoder_forward.1} parent=0 // pred_fallthru
    _
  // Predicated region
  $region50: #{cnn_encoder_forward.1} parent=0 // pred_check
    _
  $region51: #{cnn_encoder_forward.1} parent=0 // pred_check_branch
    %54 = sbr.rel (0) target = $region53
  $region52: #{cnn_encoder_forward.1} parent=0 // pred_region
    _
  $region53: #{cnn_encoder_forward.1} parent=0 // pred_fallthru
    _
  // Predicated region
  $region54: #{cnn_encoder_forward.1} parent=0 // pred_check
    _
  $region55: #{cnn_encoder_forward.1} parent=0 // pred_check_branch
    %56 = sbr.rel (0) target = $region57
  $region56: #{cnn_encoder_forward.1} parent=0 // pred_region
    _
  $region57: #{cnn_encoder_forward.1} parent=0 // pred_fallthru
    _
  // Predicated region
  $region58: #{cnn_encoder_forward.1} parent=0 // pred_check
    _
  $region59: #{cnn_encoder_forward.1} parent=0 // pred_check_branch
    %58 = sbr.rel (0) target = $region61
  $region60: #{cnn_encoder_forward.1} parent=0 // pred_region
    _
  $region61: #{cnn_encoder_forward.1} parent=0 // pred_fallthru
    _
  // Predicated region
  $region62: #{cnn_encoder_forward.1} parent=0 // pred_check
    _
  $region63: #{cnn_encoder_forward.1} parent=0 // pred_check_branch
    %60 = sbr.rel (0) target = $region65
  $region64: #{cnn_encoder_forward.1} parent=0 // pred_region
    _
  $region65: #{cnn_encoder_forward.1} parent=0 // pred_fallthru
    _
  // Predicated region
  $region66: #{cnn_encoder_forward.1} parent=0 // pred_check
    _
  $region67: #{cnn_encoder_forward.1} parent=0 // pred_check_branch
    %62 = sbr.rel (0) target = $region69
  $region68: #{cnn_encoder_forward.1} parent=0 // pred_region
    _
  $region69: #{cnn_encoder_forward.1} parent=0 // pred_fallthru
    _
  // Predicated region
  $region70: #{cnn_encoder_forward.1} parent=0 // pred_check
    _
  $region71: #{cnn_encoder_forward.1} parent=0 // pred_check_branch
    %64 = sbr.rel (0) target = $region73
  $region72: #{cnn_encoder_forward.1} parent=0 // pred_region
    _
  $region73: #{cnn_encoder_forward.1} parent=0 // pred_fallthru
    _
  // Predicated region
  $region74: #{cnn_encoder_forward.1} parent=0 // pred_check
    _
  $region75: #{cnn_encoder_forward.1} parent=0 // pred_check_branch
    %66 = sbr.rel (0) target = $region77
  $region76: #{cnn_encoder_forward.1} parent=0 // pred_region
    _
  $region77: #{cnn_encoder_forward.1} parent=0 // pred_fallthru
    _
  // Predicated region
  $region78: #{cnn_encoder_forward.1} parent=0 // pred_check
    _
  $region79: #{cnn_encoder_forward.1} parent=0 // pred_check_branch
    %68 = sbr.rel (0) target = $region81
  $region80: #{cnn_encoder_forward.1} parent=0 // pred_region
    _
  $region81: #{cnn_encoder_forward.1} parent=0 // pred_fallthru
    _
  // Predicated region
  $region82: #{cnn_encoder_forward.1} parent=0 // pred_check
    _
  $region83: #{cnn_encoder_forward.1} parent=0 // pred_check_branch
    %70 = sbr.rel (0) target = $region85
  $region84: #{cnn_encoder_forward.1} parent=0 // pred_region
    _
  $region85: #{cnn_encoder_forward.1} parent=0 // pred_fallthru
    _
  // Predicated region
  $region86: #{cnn_encoder_forward.1} parent=0 // pred_check
    _
  $region87: #{cnn_encoder_forward.1} parent=0 // pred_check_branch
    %72 = sbr.rel (0) target = $region89
  $region88: #{cnn_encoder_forward.1} parent=0 // pred_region
    _
  $region89: #{cnn_encoder_forward.1} parent=0 // pred_fallthru
    _
  // Predicated region
  $region90: #{cnn_encoder_forward.1} parent=0 // pred_check
    _
  $region91: #{cnn_encoder_forward.1} parent=0 // pred_check_branch
    %74 = sbr.rel (0) target = $region93
  $region92: #{cnn_encoder_forward.1} parent=0 // pred_region
    _
  $region93: #{cnn_encoder_forward.1} parent=0 // pred_fallthru
    _
  // Predicated region
  $region94: #{cnn_encoder_forward.1} parent=0 // pred_check
    _
  $region95: #{cnn_encoder_forward.1} parent=0 // pred_check_branch
    %76 = sbr.rel (0) target = $region97
  $region96: #{cnn_encoder_forward.1} parent=0 // pred_region
    _
  $region97: #{cnn_encoder_forward.1} parent=0 // pred_fallthru
    _
  %v77 = vld [vmem:[%s0] sm:$0xff]
  %v78 = vld [vmem:[%s2] sm:$0xff]
  %v79 = vld [vmem:[%s2 + $0x8] sm:$0xff]
  %v80 = vld [vmem:[%s2 + $0x10] sm:$0xff]
  %vm81 = vcmask 64512
  %v83 = vsel %vm81, %v78, 0
  %v86 = vsel %vm81, %v79, 0
  %v89 = vsel %vm81, %v80, 0
  %91 = vmatprep.subr.mxu0 0.0
  %92 = vmatpush1.msra.mxu0 %v77
  %93 = vmatprep.subr.mxu0 0.0
  %94 = vmatpush1.msra.mxu0 0.0
  %95 = vmatprep.subr.mxu0 0.0
  %96 = vmatpush1.msra.mxu0 0.0
  %97 = vmatprep.subr.mxu0 0.0
  %98 = vmatpush1.msra.mxu0 0.0
  %99 = vmatprep.subr.mxu0 0.0
  %100 = vmatpush1.msra.mxu0 0.0
  %101 = vmatprep.subr.mxu0 0.0
  %102 = vmatpush1.msra.mxu0 0.0
  %103 = vmatprep.subr.mxu0 0.0
  %104 = vmatpush1.msra.mxu0 0.0
  %105 = vmatprep.subr.mxu0 0.0
  %106 = vmatpush1.msra.mxu0 0.0
  %107 = vmatprep.subr.mxu0 0.0
  %108 = vmatpush1.msra.mxu0 0.0
  %109 = vmatprep.subr.mxu0 0.0
  %110 = vmatpush1.msra.mxu0 0.0
  %111 = vmatprep.subr.mxu0 0.0
  %112 = vmatpush1.msra.mxu0 0.0
  %113 = vmatprep.subr.mxu0 0.0
  %114 = vmatpush1.msra.mxu0 0.0
  %115 = vmatprep.subr.mxu0 0.0
  %116 = vmatpush1.msra.mxu0 0.0
  %117 = vmatprep.subr.mxu0 0.0
  %118 = vmatpush1.msra.mxu0 0.0
  %119 = vmatprep.subr.mxu0 0.0
  %120 = vmatpush1.msra.mxu0 0.0
  %121 = vmatprep.subr.mxu0 0.0
  %122 = vmatpush1.msra.mxu0 0.0
  %123 = vmatprep.subr.mxu0 0.0
  %124 = vmatpush1.msra.mxu0 0.0
  %125 = vmatprep.subr.mxu0 0.0
  %126 = vmatpush1.msra.mxu0 0.0
  %127 = vmatprep.subr.mxu0 0.0
  %128 = vmatpush1.msra.mxu0 0.0
  %129 = vmatprep.subr.mxu0 0.0
  %130 = vmatpush1.msra.mxu0 0.0
  %131 = vmatprep.subr.mxu0 0.0
  %132 = vmatpush1.msra.mxu0 0.0
  %133 = vmatprep.subr.mxu0 0.0
  %134 = vmatpush1.msra.mxu0 0.0
  %135 = vmatprep.subr.mxu0 0.0
  %136 = vmatpush1.msra.mxu0 0.0
  %137 = vmatprep.subr.mxu0 0.0
  %138 = vmatpush1.msra.mxu0 0.0
  %139 = vmatprep.subr.mxu0 0.0
  %140 = vmatpush1.msra.mxu0 0.0
  %141 = vmatprep.subr.mxu0 0.0
  %142 = vmatpush1.msra.mxu0 0.0
  %143 = vmatprep.subr.mxu0 0.0
  %144 = vmatpush1.msra.mxu0 0.0
  %145 = vmatprep.subr.mxu0 0.0
  %146 = vmatpush1.msra.mxu0 0.0
  %147 = vmatprep.subr.mxu0 0.0
  %148 = vmatpush1.msra.mxu0 0.0
  %149 = vmatprep.subr.mxu0 0.0
  %150 = vmatpush1.msra.mxu0 0.0
  %151 = vmatprep.subr.mxu0 0.0
  %152 = vmatpush1.msra.mxu0 0.0
  %153 = vmatprep.subr.mxu0 0.0
  %154 = vmatpush1.msra.mxu0 0.0
  %155 = vmatprep.mubr.f32.mxu0 0.0
  %156 = vmatmul.mubr.f32.gmra.mrb[0].mxu0 %v83
  %v157 = vpop.f32.mrb[0].mxu0
  %v158 = vadd.f32 0.0, %v157
  %v159 = vpop.f32.mrb[0].mxu0
  %160 = vmatprep.mubr.f32.mxu0 0.0
  %161 = vmatmul.mubr.f32.gmra.mrb[0].mxu0 %v86
  %v162 = vpop.f32.mrb[0].mxu0
  %v163 = vadd.f32 0.0, %v162
  %v164 = vpop.f32.mrb[0].mxu0
  %165 = vmatprep.mubr.f32.mxu0 0.0
  %166 = vmatmul.mubr.f32.gmra.mrb[0].mxu0 %v89
  %v167 = vpop.f32.mrb[0].mxu0
  %v168 = vadd.f32 0.0, %v167
  %v169 = vpop.f32.mrb[0].mxu0
  %170 = vdwg.mxu0
  %171 = vst [vmem:[#allocation2] sm:$0xff] %v158
  %172 = vst [vmem:[#allocation2 + $0x8] sm:$0xff] %v163
  %173 = vst [vmem:[#allocation2 + $0x10] sm:$0xff] %v168
  %v174 = vld [vmem:[%s1] sm:$0xff]
  %v175 = vld [vmem:[%s1 + $0x8] sm:$0xff]
  %v176 = vld [vmem:[%s1 + $0x10] sm:$0xff]
  %v178 = vsel %vm81, %v174, 0
  %v181 = vsel %vm81, %v175, 0
  %v184 = vsel %vm81, %v176, 0
  %186 = vmatprep.subr.mxu0 0.0
  %187 = vmatpush1.msra.mxu0 %v77
  %188 = vmatprep.subr.mxu0 0.0
  %189 = vmatpush1.msra.mxu0 0.0
  %190 = vmatprep.subr.mxu0 0.0
  %191 = vmatpush1.msra.mxu0 0.0
  %192 = vmatprep.subr.mxu0 0.0
  %193 = vmatpush1.msra.mxu0 0.0
  %194 = vmatprep.subr.mxu0 0.0
  %195 = vmatpush1.msra.mxu0 0.0
  %196 = vmatprep.subr.mxu0 0.0
  %197 = vmatpush1.msra.mxu0 0.0
  %198 = vmatprep.subr.mxu0 0.0
  %199 = vmatpush1.msra.mxu0 0.0
  %200 = vmatprep.subr.mxu0 0.0
  %201 = vmatpush1.msra.mxu0 0.0
  %202 = vmatprep.subr.mxu0 0.0
  %203 = vmatpush1.msra.mxu0 0.0
  %204 = vmatprep.subr.mxu0 0.0
  %205 = vmatpush1.msra.mxu0 0.0
  %206 = vmatprep.subr.mxu0 0.0
  %207 = vmatpush1.msra.mxu0 0.0
  %208 = vmatprep.subr.mxu0 0.0
  %209 = vmatpush1.msra.mxu0 0.0
  %210 = vmatprep.subr.mxu0 0.0
  %211 = vmatpush1.msra.mxu0 0.0
  %212 = vmatprep.subr.mxu0 0.0
  %213 = vmatpush1.msra.mxu0 0.0
  %214 = vmatprep.subr.mxu0 0.0
  %215 = vmatpush1.msra.mxu0 0.0
  %216 = vmatprep.subr.mxu0 0.0
  %217 = vmatpush1.msra.mxu0 0.0
  %218 = vmatprep.subr.mxu0 0.0
  %219 = vmatpush1.msra.mxu0 0.0
  %220 = vmatprep.subr.mxu0 0.0
  %221 = vmatpush1.msra.mxu0 0.0
  %222 = vmatprep.subr.mxu0 0.0
  %223 = vmatpush1.msra.mxu0 0.0
  %224 = vmatprep.subr.mxu0 0.0
  %225 = vmatpush1.msra.mxu0 0.0
  %226 = vmatprep.subr.mxu0 0.0
  %227 = vmatpush1.msra.mxu0 0.0
  %228 = vmatprep.subr.mxu0 0.0
  %229 = vmatpush1.msra.mxu0 0.0
  %230 = vmatprep.subr.mxu0 0.0
  %231 = vmatpush1.msra.mxu0 0.0
  %232 = vmatprep.subr.mxu0 0.0
  %233 = vmatpush1.msra.mxu0 0.0
  %234 = vmatprep.subr.mxu0 0.0
  %235 = vmatpush1.msra.mxu0 0.0
  %236 = vmatprep.subr.mxu0 0.0
  %237 = vmatpush1.msra.mxu0 0.0
  %238 = vmatprep.subr.mxu0 0.0
  %239 = vmatpush1.msra.mxu0 0.0
  %240 = vmatprep.subr.mxu0 0.0
  %241 = vmatpush1.msra.mxu0 0.0
  %242 = vmatprep.subr.mxu0 0.0
  %243 = vmatpush1.msra.mxu0 0.0
  %244 = vmatprep.subr.mxu0 0.0
  %245 = vmatpush1.msra.mxu0 0.0
  %246 = vmatprep.subr.mxu0 0.0
  %247 = vmatpush1.msra.mxu0 0.0
  %248 = vmatprep.subr.mxu0 0.0
  %249 = vmatpush1.msra.mxu0 0.0
  %250 = vmatprep.mubr.f32.mxu0 0.0
  %251 = vmatmul.mubr.f32.gmra.mrb[0].mxu0 %v178
  %v252 = vpop.f32.mrb[0].mxu0
  %v253 = vadd.f32 0.0, %v252
  %v254 = vpop.f32.mrb[0].mxu0
  %255 = vmatprep.mubr.f32.mxu0 0.0
  %256 = vmatmul.mubr.f32.gmra.mrb[0].mxu0 %v181
  %v257 = vpop.f32.mrb[0].mxu0
  %v258 = vadd.f32 0.0, %v257
  %v259 = vpop.f32.mrb[0].mxu0
  %260 = vmatprep.mubr.f32.mxu0 0.0
  %261 = vmatmul.mubr.f32.gmra.mrb[0].mxu0 %v184
  %v262 = vpop.f32.mrb[0].mxu0
  %v263 = vadd.f32 0.0, %v262
  %v264 = vpop.f32.mrb[0].mxu0
  %265 = vdwg.mxu0
  %266 = vst [vmem:[#allocation3] sm:$0xff] %v253
  %267 = vst [vmem:[#allocation3 + $0x8] sm:$0xff] %v258
  %268 = vst [vmem:[#allocation3 + $0x10] sm:$0xff] %v263
  %v269 = vld [vmem:[#allocation2] sm:$0xff]
  %v270 = vld [vmem:[#allocation2 + $0x8] sm:$0xff]
  %v271 = vld [vmem:[#allocation2 + $0x10] sm:$0xff]
  %vm272 = vcmask 326656
  %273 = vst.msk [vmem:[#allocation4] sm:$0xff] %vm272, %v269
  %274 = vst.msk [vmem:[#allocation4 + $0x8] sm:$0xff] %vm272, %v270
  %275 = vst.msk [vmem:[#allocation4 + $0x10] sm:$0xff] %vm272, %v271
  %v276 = vld [vmem:[#allocation3] sm:$0xff]
  %v277 = vld [vmem:[#allocation3 + $0x8] sm:$0xff]
  %v278 = vld [vmem:[#allocation3 + $0x10] sm:$0xff]
  %282 = vrot.lane.b32.xlu0 %v276, 40
  %v283 = vpop.permute.xlu0 %282
  %284 = vrot.lane.b32.xlu0 %v277, 40
  %v285 = vpop.permute.xlu0 %284
  %286 = vrot.lane.b32.xlu0 %v278, 40
  %v287 = vpop.permute.xlu0 %286
  %vm291 = vcmask 654656
  %292 = vst.msk [vmem:[#allocation4] sm:$0xff] %vm291, %v283
  %293 = vst.msk [vmem:[#allocation4 + $0x8] sm:$0xff] %vm291, %v285
  %294 = vst.msk [vmem:[#allocation4 + $0x10] sm:$0xff] %vm291, %v287
  %v295 = vld [vmem:[#allocation2] sm:$0xff]
  %v296 = vld [vmem:[#allocation2 + $0x8] sm:$0xff]
  %v297 = vld [vmem:[#allocation2 + $0x10] sm:$0xff]
  %301 = vrot.lane.b32.xlu0 %v295, 120
  %v302 = vpop.permute.xlu0 %301
  %303 = vrot.lane.b32.xlu0 %v296, 120
  %v304 = vpop.permute.xlu0 %303
  %305 = vrot.lane.b32.xlu0 %v297, 120
  %v306 = vpop.permute.xlu0 %305
  %310 = vst.msk [vmem:[#allocation4 + $0x18] sm:$0xff] %vm272, %v302
  %311 = vst.msk [vmem:[#allocation4 + $0x20] sm:$0xff] %vm272, %v304
  %312 = vst.msk [vmem:[#allocation4 + $0x28] sm:$0xff] %vm272, %v306
  %v313 = vld [vmem:[#allocation3] sm:$0xff]
  %v314 = vld [vmem:[#allocation3 + $0x8] sm:$0xff]
  %v315 = vld [vmem:[#allocation3 + $0x10] sm:$0xff]
  %319 = vrot.lane.b32.xlu0 %v313, 32
  %v320 = vpop.permute.xlu0 %319
  %321 = vrot.lane.b32.xlu0 %v314, 32
  %v322 = vpop.permute.xlu0 %321
  %323 = vrot.lane.b32.xlu0 %v315, 32
  %v324 = vpop.permute.xlu0 %323
  %328 = vst.msk [vmem:[#allocation4 + $0x18] sm:$0xff] %vm291, %v320
  %329 = vst.msk [vmem:[#allocation4 + $0x20] sm:$0xff] %vm291, %v322
  %330 = vst.msk [vmem:[#allocation4 + $0x28] sm:$0xff] %vm291, %v324
  %v331 = vld [vmem:[#allocation2] sm:$0xff]
  %v332 = vld [vmem:[#allocation2 + $0x8] sm:$0xff]
  %v333 = vld [vmem:[#allocation2 + $0x10] sm:$0xff]
  %337 = vrot.lane.b32.xlu0 %v331, 112
  %v338 = vpop.permute.xlu0 %337
  %339 = vrot.lane.b32.xlu0 %v332, 112
  %v340 = vpop.permute.xlu0 %339
  %341 = vrot.lane.b32.xlu0 %v333, 112
  %v342 = vpop.permute.xlu0 %341
  %346 = vst.msk [vmem:[#allocation4 + $0x30] sm:$0xff] %vm272, %v338
  %347 = vst.msk [vmem:[#allocation4 + $0x38] sm:$0xff] %vm272, %v340
  %348 = vst.msk [vmem:[#allocation4 + $0x40] sm:$0xff] %vm272, %v342
  %v349 = vld [vmem:[#allocation3] sm:$0xff]
  %v350 = vld [vmem:[#allocation3 + $0x8] sm:$0xff]
  %v351 = vld [vmem:[#allocation3 + $0x10] sm:$0xff]
  %355 = vrot.lane.b32.xlu0 %v349, 24
  %v356 = vpop.permute.xlu0 %355
  %357 = vrot.lane.b32.xlu0 %v350, 24
  %v358 = vpop.permute.xlu0 %357
  %359 = vrot.lane.b32.xlu0 %v351, 24
  %v360 = vpop.permute.xlu0 %359
  %364 = vst.msk [vmem:[#allocation4 + $0x30] sm:$0xff] %vm291, %v356
  %365 = vst.msk [vmem:[#allocation4 + $0x38] sm:$0xff] %vm291, %v358
  %366 = vst.msk [vmem:[#allocation4 + $0x40] sm:$0xff] %vm291, %v360
  %v367 = vld [vmem:[#allocation2] sm:$0xff]
  %v368 = vld [vmem:[#allocation2 + $0x8] sm:$0xff]
  %v369 = vld [vmem:[#allocation2 + $0x10] sm:$0xff]
  %373 = vrot.lane.b32.xlu0 %v367, 104
  %v374 = vpop.permute.xlu0 %373
  %375 = vrot.lane.b32.xlu0 %v368, 104
  %v376 = vpop.permute.xlu0 %375
  %377 = vrot.lane.b32.xlu0 %v369, 104
  %v378 = vpop.permute.xlu0 %377
  %382 = vst.msk [vmem:[#allocation4 + $0x48] sm:$0xff] %vm272, %v374
  %383 = vst.msk [vmem:[#allocation4 + $0x50] sm:$0xff] %vm272, %v376
  %384 = vst.msk [vmem:[#allocation4 + $0x58] sm:$0xff] %vm272, %v378
  %v385 = vld [vmem:[#allocation3] sm:$0xff]
  %v386 = vld [vmem:[#allocation3 + $0x8] sm:$0xff]
  %v387 = vld [vmem:[#allocation3 + $0x10] sm:$0xff]
  %391 = vrot.lane.b32.xlu0 %v385, 16
  %v392 = vpop.permute.xlu0 %391
  %393 = vrot.lane.b32.xlu0 %v386, 16
  %v394 = vpop.permute.xlu0 %393
  %395 = vrot.lane.b32.xlu0 %v387, 16
  %v396 = vpop.permute.xlu0 %395
  %400 = vst.msk [vmem:[#allocation4 + $0x48] sm:$0xff] %vm291, %v392
  %401 = vst.msk [vmem:[#allocation4 + $0x50] sm:$0xff] %vm291, %v394
  %402 = vst.msk [vmem:[#allocation4 + $0x58] sm:$0xff] %vm291, %v396
  %v403 = vld [vmem:[#allocation2] sm:$0xff]
  %v404 = vld [vmem:[#allocation2 + $0x8] sm:$0xff]
  %v405 = vld [vmem:[#allocation2 + $0x10] sm:$0xff]
  %409 = vrot.lane.b32.xlu0 %v403, 96
  %v410 = vpop.permute.xlu0 %409
  %411 = vrot.lane.b32.xlu0 %v404, 96
  %v412 = vpop.permute.xlu0 %411
  %413 = vrot.lane.b32.xlu0 %v405, 96
  %v414 = vpop.permute.xlu0 %413
  %418 = vst.msk [vmem:[#allocation4 + $0x60] sm:$0xff] %vm272, %v410
  %419 = vst.msk [vmem:[#allocation4 + $0x68] sm:$0xff] %vm272, %v412
  %420 = vst.msk [vmem:[#allocation4 + $0x70] sm:$0xff] %vm272, %v414
  %v421 = vld [vmem:[#allocation3] sm:$0xff]
  %v422 = vld [vmem:[#allocation3 + $0x8] sm:$0xff]
  %v423 = vld [vmem:[#allocation3 + $0x10] sm:$0xff]
  %427 = vrot.lane.b32.xlu0 %v421, 8
  %v428 = vpop.permute.xlu0 %427
  %429 = vrot.lane.b32.xlu0 %v422, 8
  %v430 = vpop.permute.xlu0 %429
  %431 = vrot.lane.b32.xlu0 %v423, 8
  %v432 = vpop.permute.xlu0 %431
  %436 = vst.msk [vmem:[#allocation4 + $0x60] sm:$0xff] %vm291, %v428
  %437 = vst.msk [vmem:[#allocation4 + $0x68] sm:$0xff] %vm291, %v430
  %438 = vst.msk [vmem:[#allocation4 + $0x70] sm:$0xff] %vm291, %v432
  %v439 = vld [vmem:[#allocation2] sm:$0xff]
  %v440 = vld [vmem:[#allocation2 + $0x8] sm:$0xff]
  %v441 = vld [vmem:[#allocation2 + $0x10] sm:$0xff]
  %445 = vrot.lane.b32.xlu0 %v439, 88
  %v446 = vpop.permute.xlu0 %445
  %447 = vrot.lane.b32.xlu0 %v440, 88
  %v448 = vpop.permute.xlu0 %447
  %449 = vrot.lane.b32.xlu0 %v441, 88
  %v450 = vpop.permute.xlu0 %449
  %454 = vst.msk [vmem:[#allocation4 + $0x78] sm:$0xff] %vm272, %v446
  %455 = vst.msk [vmem:[#allocation4 + $0x80] sm:$0xff] %vm272, %v448
  %456 = vst.msk [vmem:[#allocation4 + $0x88] sm:$0xff] %vm272, %v450
  %v457 = vld [vmem:[#allocation3] sm:$0xff]
  %v458 = vld [vmem:[#allocation3 + $0x8] sm:$0xff]
  %v459 = vld [vmem:[#allocation3 + $0x10] sm:$0xff]
  %460 = vst.msk [vmem:[#allocation4 + $0x78] sm:$0xff] %vm291, %v457
  %461 = vst.msk [vmem:[#allocation4 + $0x80] sm:$0xff] %vm291, %v458
  %462 = vst.msk [vmem:[#allocation4 + $0x88] sm:$0xff] %vm291, %v459
  %v463 = vld [vmem:[#allocation2] sm:$0xff]
  %v464 = vld [vmem:[#allocation2 + $0x8] sm:$0xff]
  %v465 = vld [vmem:[#allocation2 + $0x10] sm:$0xff]
  %469 = vrot.lane.b32.xlu0 %v463, 80
  %v470 = vpop.permute.xlu0 %469
  %471 = vrot.lane.b32.xlu0 %v464, 80
  %v472 = vpop.permute.xlu0 %471
  %473 = vrot.lane.b32.xlu0 %v465, 80
  %v474 = vpop.permute.xlu0 %473
  %478 = vst.msk [vmem:[#allocation4 + $0x90] sm:$0xff] %vm272, %v470
  %479 = vst.msk [vmem:[#allocation4 + $0x98] sm:$0xff] %vm272, %v472
  %480 = vst.msk [vmem:[#allocation4 + $0xa0] sm:$0xff] %vm272, %v474
  %v481 = vld [vmem:[#allocation3] sm:$0xff]
  %v482 = vld [vmem:[#allocation3 + $0x8] sm:$0xff]
  %v483 = vld [vmem:[#allocation3 + $0x10] sm:$0xff]
  %487 = vrot.lane.b32.xlu0 %v481, 120
  %v488 = vpop.permute.xlu0 %487
  %489 = vrot.lane.b32.xlu0 %v482, 120
  %v490 = vpop.permute.xlu0 %489
  %491 = vrot.lane.b32.xlu0 %v483, 120
  %v492 = vpop.permute.xlu0 %491
  %496 = vst.msk [vmem:[#allocation4 + $0x90] sm:$0xff] %vm291, %v488
  %497 = vst.msk [vmem:[#allocation4 + $0x98] sm:$0xff] %vm291, %v490
  %498 = vst.msk [vmem:[#allocation4 + $0xa0] sm:$0xff] %vm291, %v492
  %v499 = vld [vmem:[#allocation2] sm:$0xff]
  %v500 = vld [vmem:[#allocation2 + $0x8] sm:$0xff]
  %v501 = vld [vmem:[#allocation2 + $0x10] sm:$0xff]
  %505 = vrot.lane.b32.xlu0 %v499, 72
  %v506 = vpop.permute.xlu0 %505
  %507 = vrot.lane.b32.xlu0 %v500, 72
  %v508 = vpop.permute.xlu0 %507
  %509 = vrot.lane.b32.xlu0 %v501, 72
  %v510 = vpop.permute.xlu0 %509
  %514 = vst.msk [vmem:[#allocation4 + $0xa8] sm:$0xff] %vm272, %v506
  %515 = vst.msk [vmem:[#allocation4 + $0xb0] sm:$0xff] %vm272, %v508
  %516 = vst.msk [vmem:[#allocation4 + $0xb8] sm:$0xff] %vm272, %v510
  %v517 = vld [vmem:[#allocation3] sm:$0xff]
  %v518 = vld [vmem:[#allocation3 + $0x8] sm:$0xff]
  %v519 = vld [vmem:[#allocation3 + $0x10] sm:$0xff]
  %523 = vrot.lane.b32.xlu0 %v517, 112
  %v524 = vpop.permute.xlu0 %523
  %525 = vrot.lane.b32.xlu0 %v518, 112
  %v526 = vpop.permute.xlu0 %525
  %527 = vrot.lane.b32.xlu0 %v519, 112
  %v528 = vpop.permute.xlu0 %527
  %532 = vst.msk [vmem:[#allocation4 + $0xa8] sm:$0xff] %vm291, %v524
  %533 = vst.msk [vmem:[#allocation4 + $0xb0] sm:$0xff] %vm291, %v526
  %534 = vst.msk [vmem:[#allocation4 + $0xb8] sm:$0xff] %vm291, %v528
  %v535 = vld [vmem:[#allocation2] sm:$0xff]
  %v536 = vld [vmem:[#allocation2 + $0x8] sm:$0xff]
  %v537 = vld [vmem:[#allocation2 + $0x10] sm:$0xff]
  %541 = vrot.lane.b32.xlu0 %v535, 64
  %v542 = vpop.permute.xlu0 %541
  %543 = vrot.lane.b32.xlu0 %v536, 64
  %v544 = vpop.permute.xlu0 %543
  %545 = vrot.lane.b32.xlu0 %v537, 64
  %v546 = vpop.permute.xlu0 %545
  %550 = vst.msk [vmem:[#allocation4 + $0xc0] sm:$0xff] %vm272, %v542
  %551 = vst.msk [vmem:[#allocation4 + $0xc8] sm:$0xff] %vm272, %v544
  %552 = vst.msk [vmem:[#allocation4 + $0xd0] sm:$0xff] %vm272, %v546
  %v553 = vld [vmem:[#allocation3] sm:$0xff]
  %v554 = vld [vmem:[#allocation3 + $0x8] sm:$0xff]
  %v555 = vld [vmem:[#allocation3 + $0x10] sm:$0xff]
  %559 = vrot.lane.b32.xlu0 %v553, 104
  %v560 = vpop.permute.xlu0 %559
  %561 = vrot.lane.b32.xlu0 %v554, 104
  %v562 = vpop.permute.xlu0 %561
  %563 = vrot.lane.b32.xlu0 %v555, 104
  %v564 = vpop.permute.xlu0 %563
  %568 = vst.msk [vmem:[#allocation4 + $0xc0] sm:$0xff] %vm291, %v560
  %569 = vst.msk [vmem:[#allocation4 + $0xc8] sm:$0xff] %vm291, %v562
  %570 = vst.msk [vmem:[#allocation4 + $0xd0] sm:$0xff] %vm291, %v564
  %v571 = vld [vmem:[#allocation2] sm:$0xff]
  %v572 = vld [vmem:[#allocation2 + $0x8] sm:$0xff]
  %v573 = vld [vmem:[#allocation2 + $0x10] sm:$0xff]
  %577 = vrot.lane.b32.xlu0 %v571, 56
  %v578 = vpop.permute.xlu0 %577
  %579 = vrot.lane.b32.xlu0 %v572, 56
  %v580 = vpop.permute.xlu0 %579
  %581 = vrot.lane.b32.xlu0 %v573, 56
  %v582 = vpop.permute.xlu0 %581
  %586 = vst.msk [vmem:[#allocation4 + $0xd8] sm:$0xff] %vm272, %v578
  %587 = vst.msk [vmem:[#allocation4 + $0xe0] sm:$0xff] %vm272, %v580
  %588 = vst.msk [vmem:[#allocation4 + $0xe8] sm:$0xff] %vm272, %v582
  %v589 = vld [vmem:[#allocation3] sm:$0xff]
  %v590 = vld [vmem:[#allocation3 + $0x8] sm:$0xff]
  %v591 = vld [vmem:[#allocation3 + $0x10] sm:$0xff]
  %595 = vrot.lane.b32.xlu0 %v589, 96
  %v596 = vpop.permute.xlu0 %595
  %597 = vrot.lane.b32.xlu0 %v590, 96
  %v598 = vpop.permute.xlu0 %597
  %599 = vrot.lane.b32.xlu0 %v591, 96
  %v600 = vpop.permute.xlu0 %599
  %604 = vst.msk [vmem:[#allocation4 + $0xd8] sm:$0xff] %vm291, %v596
  %605 = vst.msk [vmem:[#allocation4 + $0xe0] sm:$0xff] %vm291, %v598
  %606 = vst.msk [vmem:[#allocation4 + $0xe8] sm:$0xff] %vm291, %v600
  %v607 = vld [vmem:[#allocation2] sm:$0xff]
  %v608 = vld [vmem:[#allocation2 + $0x8] sm:$0xff]
  %v609 = vld [vmem:[#allocation2 + $0x10] sm:$0xff]
  %613 = vrot.lane.b32.xlu0 %v607, 48
  %v614 = vpop.permute.xlu0 %613
  %615 = vrot.lane.b32.xlu0 %v608, 48
  %v616 = vpop.permute.xlu0 %615
  %617 = vrot.lane.b32.xlu0 %v609, 48
  %v618 = vpop.permute.xlu0 %617
  %622 = vst.msk [vmem:[#allocation4 + $0xf0] sm:$0xff] %vm272, %v614
  %623 = vst.msk [vmem:[#allocation4 + $0xf8] sm:$0xff] %vm272, %v616
  %624 = vst.msk [vmem:[#allocation4 + $0x100] sm:$0xff] %vm272, %v618
  %v625 = vld [vmem:[#allocation3] sm:$0xff]
  %v626 = vld [vmem:[#allocation3 + $0x8] sm:$0xff]
  %v627 = vld [vmem:[#allocation3 + $0x10] sm:$0xff]
  %631 = vrot.lane.b32.xlu0 %v625, 88
  %v632 = vpop.permute.xlu0 %631
  %633 = vrot.lane.b32.xlu0 %v626, 88
  %v634 = vpop.permute.xlu0 %633
  %635 = vrot.lane.b32.xlu0 %v627, 88
  %v636 = vpop.permute.xlu0 %635
  %640 = vst.msk [vmem:[#allocation4 + $0xf0] sm:$0xff] %vm291, %v632
  %641 = vst.msk [vmem:[#allocation4 + $0xf8] sm:$0xff] %vm291, %v634
  %642 = vst.msk [vmem:[#allocation4 + $0x100] sm:$0xff] %vm291, %v636
  %v643 = vld [vmem:[#allocation2] sm:$0xff]
  %v644 = vld [vmem:[#allocation2 + $0x8] sm:$0xff]
  %v645 = vld [vmem:[#allocation2 + $0x10] sm:$0xff]
  %649 = vrot.lane.b32.xlu0 %v643, 40
  %v650 = vpop.permute.xlu0 %649
  %651 = vrot.lane.b32.xlu0 %v644, 40
  %v652 = vpop.permute.xlu0 %651
  %653 = vrot.lane.b32.xlu0 %v645, 40
  %v654 = vpop.permute.xlu0 %653
  %658 = vst.msk [vmem:[#allocation4 + $0x108] sm:$0xff] %vm272, %v650
  %659 = vst.msk [vmem:[#allocation4 + $0x110] sm:$0xff] %vm272, %v652
  %660 = vst.msk [vmem:[#allocation4 + $0x118] sm:$0xff] %vm272, %v654
  %v661 = vld [vmem:[#allocation3] sm:$0xff]
  %v662 = vld [vmem:[#allocation3 + $0x8] sm:$0xff]
  %v663 = vld [vmem:[#allocation3 + $0x10] sm:$0xff]
  %667 = vrot.lane.b32.xlu0 %v661, 80
  %v668 = vpop.permute.xlu0 %667
  %669 = vrot.lane.b32.xlu0 %v662, 80
  %v670 = vpop.permute.xlu0 %669
  %671 = vrot.lane.b32.xlu0 %v663, 80
  %v672 = vpop.permute.xlu0 %671
  %676 = vst.msk [vmem:[#allocation4 + $0x108] sm:$0xff] %vm291, %v668
  %677 = vst.msk [vmem:[#allocation4 + $0x110] sm:$0xff] %vm291, %v670
  %678 = vst.msk [vmem:[#allocation4 + $0x118] sm:$0xff] %vm291, %v672
  %v679 = vld [vmem:[#allocation4] sm:$0xff]
  %v680 = vld [vmem:[#allocation4 + $0x8] sm:$0xff]
  %v681 = vld [vmem:[#allocation4 + $0x10] sm:$0xff]
  %v682 = vld [vmem:[#allocation4 + $0x18] sm:$0xff]
  %v683 = vld [vmem:[#allocation4 + $0x20] sm:$0xff]
  %v684 = vld [vmem:[#allocation4 + $0x28] sm:$0xff]
  %v685 = vld [vmem:[#allocation4 + $0x30] sm:$0xff]
  %v686 = vld [vmem:[#allocation4 + $0x38] sm:$0xff]
  %v687 = vld [vmem:[#allocation4 + $0x40] sm:$0xff]
  %v688 = vld [vmem:[#allocation4 + $0x48] sm:$0xff]
  %v689 = vld [vmem:[#allocation4 + $0x50] sm:$0xff]
  %v690 = vld [vmem:[#allocation4 + $0x58] sm:$0xff]
  %v691 = vld [vmem:[#allocation4 + $0x60] sm:$0xff]
  %v692 = vld [vmem:[#allocation4 + $0x68] sm:$0xff]
  %v693 = vld [vmem:[#allocation4 + $0x70] sm:$0xff]
  %v694 = vld [vmem:[#allocation4 + $0x78] sm:$0xff]
  %v695 = vld [vmem:[#allocation4 + $0x80] sm:$0xff]
  %v696 = vld [vmem:[#allocation4 + $0x88] sm:$0xff]
  %v697 = vld [vmem:[#allocation4 + $0x90] sm:$0xff]
  %v698 = vld [vmem:[#allocation4 + $0x98] sm:$0xff]
  %v699 = vld [vmem:[#allocation4 + $0xa0] sm:$0xff]
  %v700 = vld [vmem:[#allocation4 + $0xa8] sm:$0xff]
  %v701 = vld [vmem:[#allocation4 + $0xb0] sm:$0xff]
  %v702 = vld [vmem:[#allocation4 + $0xb8] sm:$0xff]
  %v703 = vld [vmem:[#allocation4 + $0xc0] sm:$0xff]
  %v704 = vld [vmem:[#allocation4 + $0xc8] sm:$0xff]
  %v705 = vld [vmem:[#allocation4 + $0xd0] sm:$0xff]
  %v706 = vld [vmem:[#allocation4 + $0xd8] sm:$0xff]
  %v707 = vld [vmem:[#allocation4 + $0xe0] sm:$0xff]
  %v708 = vld [vmem:[#allocation4 + $0xe8] sm:$0xff]
  %v709 = vld [vmem:[#allocation4 + $0xf0] sm:$0xff]
  %v710 = vld [vmem:[#allocation4 + $0xf8] sm:$0xff]
  %v711 = vld [vmem:[#allocation4 + $0x100] sm:$0xff]
  %v712 = vld [vmem:[#allocation4 + $0x108] sm:$0xff]
  %v713 = vld [vmem:[#allocation4 + $0x110] sm:$0xff]
  %v714 = vld [vmem:[#allocation4 + $0x118] sm:$0xff]
  %v715 = vld [vmem:[%s4] sm:$0xff]
  %v716 = vld [vmem:[%s4 + $0x8] sm:$0xff]
  %v717 = vld [vmem:[%s4 + $0x10] sm:$0xff]
  %v718 = vld [vmem:[%s4 + $0x18] sm:$0xff]
  %v719 = vld [vmem:[%s4 + $0x20] sm:$0xff]
  %v720 = vld [vmem:[%s4 + $0x28] sm:$0xff]
  %v721 = vld [vmem:[%s4 + $0x30] sm:$0xff]
  %v722 = vld [vmem:[%s4 + $0x38] sm:$0xff]
  %v723 = vld [vmem:[%s4 + $0x40] sm:$0xff]
  %v724 = vld [vmem:[%s4 + $0x48] sm:$0xff]
  %v725 = vld [vmem:[%s5] sm:$0x1]
  %v727 = vlaneseq
  %v728 = vshrl.u32 %v727, 7
  %v729 = vsub.s32 0, %v728
  %v730 = vrot.slane %v725, %v729
  %vm732 = vcmask 654336
  %v734 = vsel %vm732, %v679, 0
  %v737 = vsel %vm732, %v680, 0
  %v740 = vsel %vm732, %v681, 0
  %v743 = vsel %vm732, %v682, 0
  %v746 = vsel %vm732, %v683, 0
  %v749 = vsel %vm732, %v684, 0
  %v752 = vsel %vm732, %v685, 0
  %v755 = vsel %vm732, %v686, 0
  %v758 = vsel %vm732, %v687, 0
  %v761 = vsel %vm732, %v688, 0
  %v764 = vsel %vm732, %v689, 0
  %v767 = vsel %vm732, %v690, 0
  %v770 = vsel %vm732, %v691, 0
  %v773 = vsel %vm732, %v692, 0
  %v776 = vsel %vm732, %v693, 0
  %v779 = vsel %vm732, %v694, 0
  %v782 = vsel %vm732, %v695, 0
  %v785 = vsel %vm732, %v696, 0
  %v788 = vsel %vm732, %v697, 0
  %v791 = vsel %vm732, %v698, 0
  %v794 = vsel %vm732, %v699, 0
  %v797 = vsel %vm732, %v700, 0
  %v800 = vsel %vm732, %v701, 0
  %v803 = vsel %vm732, %v702, 0
  %v806 = vsel %vm732, %v703, 0
  %v809 = vsel %vm732, %v704, 0
  %v812 = vsel %vm732, %v705, 0
  %v815 = vsel %vm732, %v706, 0
  %v818 = vsel %vm732, %v707, 0
  %v821 = vsel %vm732, %v708, 0
  %v824 = vsel %vm732, %v709, 0
  %v827 = vsel %vm732, %v710, 0
  %v830 = vsel %vm732, %v711, 0
  %v833 = vsel %vm732, %v712, 0
  %v836 = vsel %vm732, %v713, 0
  %v839 = vsel %vm732, %v714, 0
  %841 = vmatprep.subr.mxu0 0.0
  %842 = vmatpush1.msra.mxu0 %v715
  %843 = vmatprep.subr.mxu0 0.0
  %844 = vmatpush1.msra.mxu0 %v716
  %845 = vmatprep.subr.mxu0 0.0
  %846 = vmatpush1.msra.mxu0 %v717
  %847 = vmatprep.subr.mxu0 0.0
  %848 = vmatpush1.msra.mxu0 %v718
  %849 = vmatprep.subr.mxu0 0.0
  %850 = vmatpush1.msra.mxu0 %v719
  %851 = vmatprep.subr.mxu0 0.0
  %852 = vmatpush1.msra.mxu0 %v720
  %853 = vmatprep.subr.mxu0 0.0
  %854 = vmatpush1.msra.mxu0 %v721
  %855 = vmatprep.subr.mxu0 0.0
  %856 = vmatpush1.msra.mxu0 %v722
  %857 = vmatprep.subr.mxu0 0.0
  %858 = vmatpush1.msra.mxu0 %v723
  %859 = vmatprep.subr.mxu0 0.0
  %860 = vmatpush1.msra.mxu0 %v724
  %861 = vmatprep.subr.mxu0 0.0
  %862 = vmatpush1.msra.mxu0 0.0
  %863 = vmatprep.subr.mxu0 0.0
  %864 = vmatpush1.msra.mxu0 0.0
  %865 = vmatprep.subr.mxu0 0.0
  %866 = vmatpush1.msra.mxu0 0.0
  %867 = vmatprep.subr.mxu0 0.0
  %868 = vmatpush1.msra.mxu0 0.0
  %869 = vmatprep.subr.mxu0 0.0
  %870 = vmatpush1.msra.mxu0 0.0
  %871 = vmatprep.subr.mxu0 0.0
  %872 = vmatpush1.msra.mxu0 0.0
  %873 = vmatprep.subr.mxu0 0.0
  %874 = vmatpush1.msra.mxu0 0.0
  %875 = vmatprep.subr.mxu0 0.0
  %876 = vmatpush1.msra.mxu0 0.0
  %877 = vmatprep.subr.mxu0 0.0
  %878 = vmatpush1.msra.mxu0 0.0
  %879 = vmatprep.subr.mxu0 0.0
  %880 = vmatpush1.msra.mxu0 0.0
  %881 = vmatprep.subr.mxu0 0.0
  %882 = vmatpush1.msra.mxu0 0.0
  %883 = vmatprep.subr.mxu0 0.0
  %884 = vmatpush1.msra.mxu0 0.0
  %885 = vmatprep.subr.mxu0 0.0
  %886 = vmatpush1.msra.mxu0 0.0
  %887 = vmatprep.subr.mxu0 0.0
  %888 = vmatpush1.msra.mxu0 0.0
  %889 = vmatprep.subr.mxu0 0.0
  %890 = vmatpush1.msra.mxu0 0.0
  %891 = vmatprep.subr.mxu0 0.0
  %892 = vmatpush1.msra.mxu0 0.0
  %893 = vmatprep.subr.mxu0 0.0
  %894 = vmatpush1.msra.mxu0 0.0
  %895 = vmatprep.subr.mxu0 0.0
  %896 = vmatpush1.msra.mxu0 0.0
  %897 = vmatprep.subr.mxu0 0.0
  %898 = vmatpush1.msra.mxu0 0.0
  %899 = vmatprep.subr.mxu0 0.0
  %900 = vmatpush1.msra.mxu0 0.0
  %901 = vmatprep.subr.mxu0 0.0
  %902 = vmatpush1.msra.mxu0 0.0
  %903 = vmatprep.subr.mxu0 0.0
  %904 = vmatpush1.msra.mxu0 0.0
  %905 = vmatprep.mubr.f32.mxu0 0.0
  %906 = vmatmul.mubr.f32.gmra.mrb[0].mxu0 %v734
  %v907 = vpop.f32.mrb[0].mxu0
  %v908 = vadd.f32 %v730, %v907
  %v909 = vpop.f32.mrb[0].mxu0
  %910 = vmatprep.mubr.f32.mxu0 0.0
  %911 = vmatmul.mubr.f32.gmra.mrb[0].mxu0 %v737
  %v912 = vpop.f32.mrb[0].mxu0
  %v913 = vadd.f32 %v730, %v912
  %v914 = vpop.f32.mrb[0].mxu0
  %915 = vmatprep.mubr.f32.mxu0 0.0
  %916 = vmatmul.mubr.f32.gmra.mrb[0].mxu0 %v740
  %v917 = vpop.f32.mrb[0].mxu0
  %v918 = vadd.f32 %v730, %v917
  %v919 = vpop.f32.mrb[0].mxu0
  %920 = vmatprep.mubr.f32.mxu0 0.0
  %921 = vmatmul.mubr.f32.gmra.mrb[0].mxu0 %v743
  %v922 = vpop.f32.mrb[0].mxu0
  %v923 = vadd.f32 %v730, %v922
  %v924 = vpop.f32.mrb[0].mxu0
  %925 = vmatprep.mubr.f32.mxu0 0.0
  %926 = vmatmul.mubr.f32.gmra.mrb[0].mxu0 %v746
  %v927 = vpop.f32.mrb[0].mxu0
  %v928 = vadd.f32 %v730, %v927
  %v929 = vpop.f32.mrb[0].mxu0
  %930 = vmatprep.mubr.f32.mxu0 0.0
  %931 = vmatmul.mubr.f32.gmra.mrb[0].mxu0 %v749
  %v932 = vpop.f32.mrb[0].mxu0
  %v933 = vadd.f32 %v730, %v932
  %v934 = vpop.f32.mrb[0].mxu0
  %935 = vmatprep.mubr.f32.mxu0 0.0
  %936 = vmatmul.mubr.f32.gmra.mrb[0].mxu0 %v752
  %v937 = vpop.f32.mrb[0].mxu0
  %v938 = vadd.f32 %v730, %v937
  %v939 = vpop.f32.mrb[0].mxu0
  %940 = vmatprep.mubr.f32.mxu0 0.0
  %941 = vmatmul.mubr.f32.gmra.mrb[0].mxu0 %v755
  %v942 = vpop.f32.mrb[0].mxu0
  %v943 = vadd.f32 %v730, %v942
  %v944 = vpop.f32.mrb[0].mxu0
  %945 = vmatprep.mubr.f32.mxu0 0.0
  %946 = vmatmul.mubr.f32.gmra.mrb[0].mxu0 %v758
  %v947 = vpop.f32.mrb[0].mxu0
  %v948 = vadd.f32 %v730, %v947
  %v949 = vpop.f32.mrb[0].mxu0
  %950 = vmatprep.mubr.f32.mxu0 0.0
  %951 = vmatmul.mubr.f32.gmra.mrb[0].mxu0 %v761
  %v952 = vpop.f32.mrb[0].mxu0
  %v953 = vadd.f32 %v730, %v952
  %v954 = vpop.f32.mrb[0].mxu0
  %955 = vmatprep.mubr.f32.mxu0 0.0
  %956 = vmatmul.mubr.f32.gmra.mrb[0].mxu0 %v764
  %v957 = vpop.f32.mrb[0].mxu0
  %v958 = vadd.f32 %v730, %v957
  %v959 = vpop.f32.mrb[0].mxu0
  %960 = vmatprep.mubr.f32.mxu0 0.0
  %961 = vmatmul.mubr.f32.gmra.mrb[0].mxu0 %v767
  %v962 = vpop.f32.mrb[0].mxu0
  %v963 = vadd.f32 %v730, %v962
  %v964 = vpop.f32.mrb[0].mxu0
  %965 = vmatprep.mubr.f32.mxu0 0.0
  %966 = vmatmul.mubr.f32.gmra.mrb[0].mxu0 %v770
  %v967 = vpop.f32.mrb[0].mxu0
  %v968 = vadd.f32 %v730, %v967
  %v969 = vpop.f32.mrb[0].mxu0
  %970 = vmatprep.mubr.f32.mxu0 0.0
  %971 = vmatmul.mubr.f32.gmra.mrb[0].mxu0 %v773
  %v972 = vpop.f32.mrb[0].mxu0
  %v973 = vadd.f32 %v730, %v972
  %v974 = vpop.f32.mrb[0].mxu0
  %975 = vmatprep.mubr.f32.mxu0 0.0
  %976 = vmatmul.mubr.f32.gmra.mrb[0].mxu0 %v776
  %v977 = vpop.f32.mrb[0].mxu0
  %v978 = vadd.f32 %v730, %v977
  %v979 = vpop.f32.mrb[0].mxu0
  %980 = vmatprep.mubr.f32.mxu0 0.0
  %981 = vmatmul.mubr.f32.gmra.mrb[0].mxu0 %v779
  %v982 = vpop.f32.mrb[0].mxu0
  %v983 = vadd.f32 %v730, %v982
  %v984 = vpop.f32.mrb[0].mxu0
  %985 = vmatprep.mubr.f32.mxu0 0.0
  %986 = vmatmul.mubr.f32.gmra.mrb[0].mxu0 %v782
  %v987 = vpop.f32.mrb[0].mxu0
  %v988 = vadd.f32 %v730, %v987
  %v989 = vpop.f32.mrb[0].mxu0
  %990 = vmatprep.mubr.f32.mxu0 0.0
  %991 = vmatmul.mubr.f32.gmra.mrb[0].mxu0 %v785
  %v992 = vpop.f32.mrb[0].mxu0
  %v993 = vadd.f32 %v730, %v992
  %v994 = vpop.f32.mrb[0].mxu0
  %995 = vmatprep.mubr.f32.mxu0 0.0
  %996 = vmatmul.mubr.f32.gmra.mrb[0].mxu0 %v788
  %v997 = vpop.f32.mrb[0].mxu0
  %v998 = vadd.f32 %v730, %v997
  %v999 = vpop.f32.mrb[0].mxu0
  %1000 = vmatprep.mubr.f32.mxu0 0.0
  %1001 = vmatmul.mubr.f32.gmra.mrb[0].mxu0 %v791
  %v1002 = vpop.f32.mrb[0].mxu0
  %v1003 = vadd.f32 %v730, %v1002
  %v1004 = vpop.f32.mrb[0].mxu0
  %1005 = vmatprep.mubr.f32.mxu0 0.0
  %1006 = vmatmul.mubr.f32.gmra.mrb[0].mxu0 %v794
  %v1007 = vpop.f32.mrb[0].mxu0
  %v1008 = vadd.f32 %v730, %v1007
  %v1009 = vpop.f32.mrb[0].mxu0
  %1010 = vmatprep.mubr.f32.mxu0 0.0
  %1011 = vmatmul.mubr.f32.gmra.mrb[0].mxu0 %v797
  %v1012 = vpop.f32.mrb[0].mxu0
  %v1013 = vadd.f32 %v730, %v1012
  %v1014 = vpop.f32.mrb[0].mxu0
  %1015 = vmatprep.mubr.f32.mxu0 0.0
  %1016 = vmatmul.mubr.f32.gmra.mrb[0].mxu0 %v800
  %v1017 = vpop.f32.mrb[0].mxu0
  %v1018 = vadd.f32 %v730, %v1017
  %v1019 = vpop.f32.mrb[0].mxu0
  %1020 = vmatprep.mubr.f32.mxu0 0.0
  %1021 = vmatmul.mubr.f32.gmra.mrb[0].mxu0 %v803
  %v1022 = vpop.f32.mrb[0].mxu0
  %v1023 = vadd.f32 %v730, %v1022
  %v1024 = vpop.f32.mrb[0].mxu0
  %1025 = vmatprep.mubr.f32.mxu0 0.0
  %1026 = vmatmul.mubr.f32.gmra.mrb[0].mxu0 %v806
  %v1027 = vpop.f32.mrb[0].mxu0
  %v1028 = vadd.f32 %v730, %v1027
  %v1029 = vpop.f32.mrb[0].mxu0
  %1030 = vmatprep.mubr.f32.mxu0 0.0
  %1031 = vmatmul.mubr.f32.gmra.mrb[0].mxu0 %v809
  %v1032 = vpop.f32.mrb[0].mxu0
  %v1033 = vadd.f32 %v730, %v1032
  %v1034 = vpop.f32.mrb[0].mxu0
  %1035 = vmatprep.mubr.f32.mxu0 0.0
  %1036 = vmatmul.mubr.f32.gmra.mrb[0].mxu0 %v812
  %v1037 = vpop.f32.mrb[0].mxu0
  %v1038 = vadd.f32 %v730, %v1037
  %v1039 = vpop.f32.mrb[0].mxu0
  %1040 = vmatprep.mubr.f32.mxu0 0.0
  %1041 = vmatmul.mubr.f32.gmra.mrb[0].mxu0 %v815
  %v1042 = vpop.f32.mrb[0].mxu0
  %v1043 = vadd.f32 %v730, %v1042
  %v1044 = vpop.f32.mrb[0].mxu0
  %1045 = vmatprep.mubr.f32.mxu0 0.0
  %1046 = vmatmul.mubr.f32.gmra.mrb[0].mxu0 %v818
  %v1047 = vpop.f32.mrb[0].mxu0
  %v1048 = vadd.f32 %v730, %v1047
  %v1049 = vpop.f32.mrb[0].mxu0
  %1050 = vmatprep.mubr.f32.mxu0 0.0
  %1051 = vmatmul.mubr.f32.gmra.mrb[0].mxu0 %v821
  %v1052 = vpop.f32.mrb[0].mxu0
  %v1053 = vadd.f32 %v730, %v1052
  %v1054 = vpop.f32.mrb[0].mxu0
  %1055 = vmatprep.mubr.f32.mxu0 0.0
  %1056 = vmatmul.mubr.f32.gmra.mrb[0].mxu0 %v824
  %v1057 = vpop.f32.mrb[0].mxu0
  %v1058 = vadd.f32 %v730, %v1057
  %v1059 = vpop.f32.mrb[0].mxu0
  %1060 = vmatprep.mubr.f32.mxu0 0.0
  %1061 = vmatmul.mubr.f32.gmra.mrb[0].mxu0 %v827
  %v1062 = vpop.f32.mrb[0].mxu0
  %v1063 = vadd.f32 %v730, %v1062
  %v1064 = vpop.f32.mrb[0].mxu0
  %1065 = vmatprep.mubr.f32.mxu0 0.0
  %1066 = vmatmul.mubr.f32.gmra.mrb[0].mxu0 %v830
  %v1067 = vpop.f32.mrb[0].mxu0
  %v1068 = vadd.f32 %v730, %v1067
  %v1069 = vpop.f32.mrb[0].mxu0
  %1070 = vmatprep.mubr.f32.mxu0 0.0
  %1071 = vmatmul.mubr.f32.gmra.mrb[0].mxu0 %v833
  %v1072 = vpop.f32.mrb[0].mxu0
  %v1073 = vadd.f32 %v730, %v1072
  %v1074 = vpop.f32.mrb[0].mxu0
  %1075 = vmatprep.mubr.f32.mxu0 0.0
  %1076 = vmatmul.mubr.f32.gmra.mrb[0].mxu0 %v836
  %v1077 = vpop.f32.mrb[0].mxu0
  %v1078 = vadd.f32 %v730, %v1077
  %v1079 = vpop.f32.mrb[0].mxu0
  %1080 = vmatprep.mubr.f32.mxu0 0.0
  %1081 = vmatmul.mubr.f32.gmra.mrb[0].mxu0 %v839
  %v1082 = vpop.f32.mrb[0].mxu0
  %v1083 = vadd.f32 %v730, %v1082
  %v1084 = vpop.f32.mrb[0].mxu0
  %1085 = vdwg.mxu0
  %v1086 = vmax.f32 %v908, 0.0
  %v1087 = vmax.f32 %v913, 0.0
  %v1088 = vmax.f32 %v918, 0.0
  %v1089 = vmax.f32 %v923, 0.0
  %v1090 = vmax.f32 %v928, 0.0
  %v1091 = vmax.f32 %v933, 0.0
  %v1092 = vmax.f32 %v938, 0.0
  %v1093 = vmax.f32 %v943, 0.0
  %v1094 = vmax.f32 %v948, 0.0
  %v1095 = vmax.f32 %v953, 0.0
  %v1096 = vmax.f32 %v958, 0.0
  %v1097 = vmax.f32 %v963, 0.0
  %v1098 = vmax.f32 %v968, 0.0
  %v1099 = vmax.f32 %v973, 0.0
  %v1100 = vmax.f32 %v978, 0.0
  %v1101 = vmax.f32 %v983, 0.0
  %v1102 = vmax.f32 %v988, 0.0
  %v1103 = vmax.f32 %v993, 0.0
  %v1104 = vmax.f32 %v998, 0.0
  %v1105 = vmax.f32 %v1003, 0.0
  %v1106 = vmax.f32 %v1008, 0.0
  %v1107 = vmax.f32 %v1013, 0.0
  %v1108 = vmax.f32 %v1018, 0.0
  %v1109 = vmax.f32 %v1023, 0.0
  %v1110 = vmax.f32 %v1028, 0.0
  %v1111 = vmax.f32 %v1033, 0.0
  %v1112 = vmax.f32 %v1038, 0.0
  %v1113 = vmax.f32 %v1043, 0.0
  %v1114 = vmax.f32 %v1048, 0.0
  %v1115 = vmax.f32 %v1053, 0.0
  %v1116 = vmax.f32 %v1058, 0.0
  %v1117 = vmax.f32 %v1063, 0.0
  %v1118 = vmax.f32 %v1068, 0.0
  %v1119 = vmax.f32 %v1073, 0.0
  %v1120 = vmax.f32 %v1078, 0.0
  %v1121 = vmax.f32 %v1083, 0.0
  %vm1122 = vcmask 261120
  %v1123 = vsel %vm1122, %v1086, 0.0
  %v1124 = vsel %vm1122, %v1087, 0.0
  %v1125 = vadd.f32 %v1123, %v1124
  %v1126 = vsel %vm1122, %v1088, 0.0
  %v1127 = vadd.f32 %v1125, %v1126
  %v1128 = vsel %vm1122, %v1089, 0.0
  %v1129 = vadd.f32 %v1127, %v1128
  %v1130 = vsel %vm1122, %v1090, 0.0
  %v1131 = vadd.f32 %v1129, %v1130
  %v1132 = vsel %vm1122, %v1091, 0.0
  %v1133 = vadd.f32 %v1131, %v1132
  %v1134 = vsel %vm1122, %v1092, 0.0
  %v1135 = vadd.f32 %v1133, %v1134
  %v1136 = vsel %vm1122, %v1093, 0.0
  %v1137 = vadd.f32 %v1135, %v1136
  %v1138 = vsel %vm1122, %v1094, 0.0
  %v1139 = vadd.f32 %v1137, %v1138
  %v1140 = vsel %vm1122, %v1095, 0.0
  %v1141 = vadd.f32 %v1139, %v1140
  %v1142 = vsel %vm1122, %v1096, 0.0
  %v1143 = vadd.f32 %v1141, %v1142
  %v1144 = vsel %vm1122, %v1097, 0.0
  %v1145 = vadd.f32 %v1143, %v1144
  %v1146 = vsel %vm1122, %v1098, 0.0
  %v1147 = vadd.f32 %v1145, %v1146
  %v1148 = vsel %vm1122, %v1099, 0.0
  %v1149 = vadd.f32 %v1147, %v1148
  %v1150 = vsel %vm1122, %v1100, 0.0
  %v1151 = vadd.f32 %v1149, %v1150
  %v1152 = vsel %vm1122, %v1101, 0.0
  %v1153 = vadd.f32 %v1151, %v1152
  %v1154 = vsel %vm1122, %v1102, 0.0
  %v1155 = vadd.f32 %v1153, %v1154
  %v1156 = vsel %vm1122, %v1103, 0.0
  %v1157 = vadd.f32 %v1155, %v1156
  %v1158 = vsel %vm1122, %v1104, 0.0
  %v1159 = vadd.f32 %v1157, %v1158
  %v1160 = vsel %vm1122, %v1105, 0.0
  %v1161 = vadd.f32 %v1159, %v1160
  %v1162 = vsel %vm1122, %v1106, 0.0
  %v1163 = vadd.f32 %v1161, %v1162
  %v1164 = vsel %vm1122, %v1107, 0.0
  %v1165 = vadd.f32 %v1163, %v1164
  %v1166 = vsel %vm1122, %v1108, 0.0
  %v1167 = vadd.f32 %v1165, %v1166
  %v1168 = vsel %vm1122, %v1109, 0.0
  %v1169 = vadd.f32 %v1167, %v1168
  %v1170 = vsel %vm1122, %v1110, 0.0
  %v1171 = vadd.f32 %v1169, %v1170
  %v1172 = vsel %vm1122, %v1111, 0.0
  %v1173 = vadd.f32 %v1171, %v1172
  %v1174 = vsel %vm1122, %v1112, 0.0
  %v1175 = vadd.f32 %v1173, %v1174
  %v1176 = vsel %vm1122, %v1113, 0.0
  %v1177 = vadd.f32 %v1175, %v1176
  %v1178 = vsel %vm1122, %v1114, 0.0
  %v1179 = vadd.f32 %v1177, %v1178
  %v1180 = vsel %vm1122, %v1115, 0.0
  %v1181 = vadd.f32 %v1179, %v1180
  %v1182 = vsel %vm1122, %v1116, 0.0
  %v1183 = vadd.f32 %v1181, %v1182
  %v1184 = vsel %vm1122, %v1117, 0.0
  %v1185 = vadd.f32 %v1183, %v1184
  %v1186 = vsel %vm1122, %v1118, 0.0
  %v1187 = vadd.f32 %v1185, %v1186
  %v1188 = vsel %vm1122, %v1119, 0.0
  %v1189 = vadd.f32 %v1187, %v1188
  %v1190 = vsel %vm1122, %v1120, 0.0
  %v1191 = vadd.f32 %v1189, %v1190
  %v1192 = vsel %vm1122, %v1121, 0.0
  %v1193 = vadd.f32 %v1191, %v1192
  %v1194 = vrot.slane %v1193, 4
  %v1195 = vadd.f32 %v1193, %v1194
  %v1196 = vrot.slane %v1195, 2
  %v1197 = vadd.f32 %v1195, %v1196
  %v1198 = vrot.slane %v1197, 1
  %v1199 = vadd.f32 %v1197, %v1198
  %v1200 = vrcp.pop 288.0
  %v1201 = vmul.f32 %v1199, %v1200
  %v1202 = vsub.f32 %v1086, %v1201
  %v1203 = vsub.f32 %v1087, %v1201
  %v1204 = vsub.f32 %v1088, %v1201
  %v1205 = vsub.f32 %v1089, %v1201
  %v1206 = vsub.f32 %v1090, %v1201
  %v1207 = vsub.f32 %v1091, %v1201
  %v1208 = vsub.f32 %v1092, %v1201
  %v1209 = vsub.f32 %v1093, %v1201
  %v1210 = vsub.f32 %v1094, %v1201
  %v1211 = vsub.f32 %v1095, %v1201
  %v1212 = vsub.f32 %v1096, %v1201
  %v1213 = vsub.f32 %v1097, %v1201
  %v1214 = vsub.f32 %v1098, %v1201
  %v1215 = vsub.f32 %v1099, %v1201
  %v1216 = vsub.f32 %v1100, %v1201
  %v1217 = vsub.f32 %v1101, %v1201
  %v1218 = vsub.f32 %v1102, %v1201
  %v1219 = vsub.f32 %v1103, %v1201
  %v1220 = vsub.f32 %v1104, %v1201
  %v1221 = vsub.f32 %v1105, %v1201
  %v1222 = vsub.f32 %v1106, %v1201
  %v1223 = vsub.f32 %v1107, %v1201
  %v1224 = vsub.f32 %v1108, %v1201
  %v1225 = vsub.f32 %v1109, %v1201
  %v1226 = vsub.f32 %v1110, %v1201
  %v1227 = vsub.f32 %v1111, %v1201
  %v1228 = vsub.f32 %v1112, %v1201
  %v1229 = vsub.f32 %v1113, %v1201
  %v1230 = vsub.f32 %v1114, %v1201
  %v1231 = vsub.f32 %v1115, %v1201
  %v1232 = vsub.f32 %v1116, %v1201
  %v1233 = vsub.f32 %v1117, %v1201
  %v1234 = vsub.f32 %v1118, %v1201
  %v1235 = vsub.f32 %v1119, %v1201
  %v1236 = vsub.f32 %v1120, %v1201
  %v1237 = vsub.f32 %v1121, %v1201
  %v1238 = vmul.f32 %v1202, %v1202
  %v1239 = vmul.f32 %v1203, %v1203
  %v1240 = vmul.f32 %v1204, %v1204
  %v1241 = vmul.f32 %v1205, %v1205
  %v1242 = vmul.f32 %v1206, %v1206
  %v1243 = vmul.f32 %v1207, %v1207
  %v1244 = vmul.f32 %v1208, %v1208
  %v1245 = vmul.f32 %v1209, %v1209
  %v1246 = vmul.f32 %v1210, %v1210
  %v1247 = vmul.f32 %v1211, %v1211
  %v1248 = vmul.f32 %v1212, %v1212
  %v1249 = vmul.f32 %v1213, %v1213
  %v1250 = vmul.f32 %v1214, %v1214
  %v1251 = vmul.f32 %v1215, %v1215
  %v1252 = vmul.f32 %v1216, %v1216
  %v1253 = vmul.f32 %v1217, %v1217
  %v1254 = vmul.f32 %v1218, %v1218
  %v1255 = vmul.f32 %v1219, %v1219
  %v1256 = vmul.f32 %v1220, %v1220
  %v1257 = vmul.f32 %v1221, %v1221
  %v1258 = vmul.f32 %v1222, %v1222
  %v1259 = vmul.f32 %v1223, %v1223
  %v1260 = vmul.f32 %v1224, %v1224
  %v1261 = vmul.f32 %v1225, %v1225
  %v1262 = vmul.f32 %v1226, %v1226
  %v1263 = vmul.f32 %v1227, %v1227
  %v1264 = vmul.f32 %v1228, %v1228
  %v1265 = vmul.f32 %v1229, %v1229
  %v1266 = vmul.f32 %v1230, %v1230
  %v1267 = vmul.f32 %v1231, %v1231
  %v1268 = vmul.f32 %v1232, %v1232
  %v1269 = vmul.f32 %v1233, %v1233
  %v1270 = vmul.f32 %v1234, %v1234
  %v1271 = vmul.f32 %v1235, %v1235
  %v1272 = vmul.f32 %v1236, %v1236
  %v1273 = vmul.f32 %v1237, %v1237
  %v1274 = vsel %vm1122, %v1238, 0.0
  %v1275 = vsel %vm1122, %v1239, 0.0
  %v1276 = vadd.f32 %v1274, %v1275
  %v1277 = vsel %vm1122, %v1240, 0.0
  %v1278 = vadd.f32 %v1276, %v1277
  %v1279 = vsel %vm1122, %v1241, 0.0
  %v1280 = vadd.f32 %v1278, %v1279
  %v1281 = vsel %vm1122, %v1242, 0.0
  %v1282 = vadd.f32 %v1280, %v1281
  %v1283 = vsel %vm1122, %v1243, 0.0
  %v1284 = vadd.f32 %v1282, %v1283
  %v1285 = vsel %vm1122, %v1244, 0.0
  %v1286 = vadd.f32 %v1284, %v1285
  %v1287 = vsel %vm1122, %v1245, 0.0
  %v1288 = vadd.f32 %v1286, %v1287
  %v1289 = vsel %vm1122, %v1246, 0.0
  %v1290 = vadd.f32 %v1288, %v1289
  %v1291 = vsel %vm1122, %v1247, 0.0
  %v1292 = vadd.f32 %v1290, %v1291
  %v1293 = vsel %vm1122, %v1248, 0.0
  %v1294 = vadd.f32 %v1292, %v1293
  %v1295 = vsel %vm1122, %v1249, 0.0
  %v1296 = vadd.f32 %v1294, %v1295
  %v1297 = vsel %vm1122, %v1250, 0.0
  %v1298 = vadd.f32 %v1296, %v1297
  %v1299 = vsel %vm1122, %v1251, 0.0
  %v1300 = vadd.f32 %v1298, %v1299
  %v1301 = vsel %vm1122, %v1252, 0.0
  %v1302 = vadd.f32 %v1300, %v1301
  %v1303 = vsel %vm1122, %v1253, 0.0
  %v1304 = vadd.f32 %v1302, %v1303
  %v1305 = vsel %vm1122, %v1254, 0.0
  %v1306 = vadd.f32 %v1304, %v1305
  %v1307 = vsel %vm1122, %v1255, 0.0
  %v1308 = vadd.f32 %v1306, %v1307
  %v1309 = vsel %vm1122, %v1256, 0.0
  %v1310 = vadd.f32 %v1308, %v1309
  %v1311 = vsel %vm1122, %v1257, 0.0
  %v1312 = vadd.f32 %v1310, %v1311
  %v1313 = vsel %vm1122, %v1258, 0.0
  %v1314 = vadd.f32 %v1312, %v1313
  %v1315 = vsel %vm1122, %v1259, 0.0
  %v1316 = vadd.f32 %v1314, %v1315
  %v1317 = vsel %vm1122, %v1260, 0.0
  %v1318 = vadd.f32 %v1316, %v1317
  %v1319 = vsel %vm1122, %v1261, 0.0
  %v1320 = vadd.f32 %v1318, %v1319
  %v1321 = vsel %vm1122, %v1262, 0.0
  %v1322 = vadd.f32 %v1320, %v1321
  %v1323 = vsel %vm1122, %v1263, 0.0
  %v1324 = vadd.f32 %v1322, %v1323
  %v1325 = vsel %vm1122, %v1264, 0.0
  %v1326 = vadd.f32 %v1324, %v1325
  %v1327 = vsel %vm1122, %v1265, 0.0
  %v1328 = vadd.f32 %v1326, %v1327
  %v1329 = vsel %vm1122, %v1266, 0.0
  %v1330 = vadd.f32 %v1328, %v1329
  %v1331 = vsel %vm1122, %v1267, 0.0
  %v1332 = vadd.f32 %v1330, %v1331
  %v1333 = vsel %vm1122, %v1268, 0.0
  %v1334 = vadd.f32 %v1332, %v1333
  %v1335 = vsel %vm1122, %v1269, 0.0
  %v1336 = vadd.f32 %v1334, %v1335
  %v1337 = vsel %vm1122, %v1270, 0.0
  %v1338 = vadd.f32 %v1336, %v1337
  %v1339 = vsel %vm1122, %v1271, 0.0
  %v1340 = vadd.f32 %v1338, %v1339
  %v1341 = vsel %vm1122, %v1272, 0.0
  %v1342 = vadd.f32 %v1340, %v1341
  %v1343 = vsel %vm1122, %v1273, 0.0
  %v1344 = vadd.f32 %v1342, %v1343
  %v1345 = vrot.slane %v1344, 4
  %v1346 = vadd.f32 %v1344, %v1345
  %v1347 = vrot.slane %v1346, 2
  %v1348 = vadd.f32 %v1346, %v1347
  %v1349 = vrot.slane %v1348, 1
  %v1350 = vadd.f32 %v1348, %v1349
  %v1351 = vmul.f32 %v1350, %v1200
  %v1352 = vadd.f32 %v1351, 1e-05
  %v1353 = vrsqrt.pop %v1352
  %v1354 = vmul.f32 %v1202, %v1353
  %v1355 = vmul.f32 %v1203, %v1353
  %v1356 = vmul.f32 %v1204, %v1353
  %v1357 = vmul.f32 %v1205, %v1353
  %v1358 = vmul.f32 %v1206, %v1353
  %v1359 = vmul.f32 %v1207, %v1353
  %v1360 = vmul.f32 %v1208, %v1353
  %v1361 = vmul.f32 %v1209, %v1353
  %v1362 = vmul.f32 %v1210, %v1353
  %v1363 = vmul.f32 %v1211, %v1353
  %v1364 = vmul.f32 %v1212, %v1353
  %v1365 = vmul.f32 %v1213, %v1353
  %v1366 = vmul.f32 %v1214, %v1353
  %v1367 = vmul.f32 %v1215, %v1353
  %v1368 = vmul.f32 %v1216, %v1353
  %v1369 = vmul.f32 %v1217, %v1353
  %v1370 = vmul.f32 %v1218, %v1353
  %v1371 = vmul.f32 %v1219, %v1353
  %v1372 = vmul.f32 %v1220, %v1353
  %v1373 = vmul.f32 %v1221, %v1353
  %v1374 = vmul.f32 %v1222, %v1353
  %v1375 = vmul.f32 %v1223, %v1353
  %v1376 = vmul.f32 %v1224, %v1353
  %v1377 = vmul.f32 %v1225, %v1353
  %v1378 = vmul.f32 %v1226, %v1353
  %v1379 = vmul.f32 %v1227, %v1353
  %v1380 = vmul.f32 %v1228, %v1353
  %v1381 = vmul.f32 %v1229, %v1353
  %v1382 = vmul.f32 %v1230, %v1353
  %v1383 = vmul.f32 %v1231, %v1353
  %v1384 = vmul.f32 %v1232, %v1353
  %v1385 = vmul.f32 %v1233, %v1353
  %v1386 = vmul.f32 %v1234, %v1353
  %v1387 = vmul.f32 %v1235, %v1353
  %v1388 = vmul.f32 %v1236, %v1353
  %v1389 = vmul.f32 %v1237, %v1353
  %v1390 = vmax.f32 %v1354, %v1357
  %v1391 = vmax.f32 %v1355, %v1358
  %v1392 = vmax.f32 %v1356, %v1359
  %v1393 = vmax.f32 %v1360, %v1363
  %v1394 = vmax.f32 %v1361, %v1364
  %v1395 = vmax.f32 %v1362, %v1365
  %v1396 = vmax.f32 %v1366, %v1369
  %v1397 = vmax.f32 %v1367, %v1370
  %v1398 = vmax.f32 %v1368, %v1371
  %v1399 = vmax.f32 %v1372, %v1375
  %v1400 = vmax.f32 %v1373, %v1376
  %v1401 = vmax.f32 %v1374, %v1377
  %v1402 = vmax.f32 %v1378, %v1381
  %v1403 = vmax.f32 %v1379, %v1382
  %v1404 = vmax.f32 %v1380, %v1383
  %v1405 = vmax.f32 %v1384, %v1387
  %v1406 = vmax.f32 %v1385, %v1388
  %v1407 = vmax.f32 %v1386, %v1389
  %1408 = vst.msk [vmem:[#allocation5] sm:$0xff] %vm1122, %v1390
  %1409 = vst.msk [vmem:[#allocation5 + $0x10] sm:$0xff] %vm1122, %v1391
  %1410 = vst.msk [vmem:[#allocation5 + $0x20] sm:$0xff] %vm1122, %v1392
  %1414 = vrot.lane.b32.xlu0 %v1393, 32
  %v1415 = vpop.permute.xlu0 %1414
  %1416 = vrot.lane.b32.xlu0 %v1394, 32
  %v1417 = vpop.permute.xlu0 %1416
  %1418 = vrot.lane.b32.xlu0 %v1395, 32
  %v1419 = vpop.permute.xlu0 %1418
  %vm1423 = vcmask 523520
  %1424 = vst.msk [vmem:[#allocation5] sm:$0xff] %vm1423, %v1415
  %1425 = vst.msk [vmem:[#allocation5 + $0x10] sm:$0xff] %vm1423, %v1417
  %1426 = vst.msk [vmem:[#allocation5 + $0x20] sm:$0xff] %vm1423, %v1419
  %1430 = vrot.lane.b32.xlu0 %v1396, 64
  %v1431 = vpop.permute.xlu0 %1430
  %1432 = vrot.lane.b32.xlu0 %v1397, 64
  %v1433 = vpop.permute.xlu0 %1432
  %1434 = vrot.lane.b32.xlu0 %v1398, 64
  %v1435 = vpop.permute.xlu0 %1434
  %vm1439 = vcmask 785920
  %1440 = vst.msk [vmem:[#allocation5] sm:$0xff] %vm1439, %v1431
  %1441 = vst.msk [vmem:[#allocation5 + $0x10] sm:$0xff] %vm1439, %v1433
  %1442 = vst.msk [vmem:[#allocation5 + $0x20] sm:$0xff] %vm1439, %v1435
  %1446 = vrot.lane.b32.xlu0 %v1399, 96
  %v1447 = vpop.permute.xlu0 %1446
  %1448 = vrot.lane.b32.xlu0 %v1400, 96
  %v1449 = vpop.permute.xlu0 %1448
  %1450 = vrot.lane.b32.xlu0 %v1401, 96
  %v1451 = vpop.permute.xlu0 %1450
  %vm1455 = vcmask 1048320
  %1456 = vst.msk [vmem:[#allocation5] sm:$0xff] %vm1455, %v1447
  %1457 = vst.msk [vmem:[#allocation5 + $0x10] sm:$0xff] %vm1455, %v1449
  %1458 = vst.msk [vmem:[#allocation5 + $0x20] sm:$0xff] %vm1455, %v1451
  %1459 = vst.msk [vmem:[#allocation5 + $0x8] sm:$0xff] %vm1122, %v1402
  %1460 = vst.msk [vmem:[#allocation5 + $0x18] sm:$0xff] %vm1122, %v1403
  %1461 = vst.msk [vmem:[#allocation5 + $0x28] sm:$0xff] %vm1122, %v1404
  %1462 = vst.msk [vmem:[#allocation5 + $0x30] sm:$0xff] %vm1122, %v1393
  %1463 = vst.msk [vmem:[#allocation5 + $0x40] sm:$0xff] %vm1122, %v1394
  %1464 = vst.msk [vmem:[#allocation5 + $0x50] sm:$0xff] %vm1122, %v1395
  %1465 = vrot.lane.b32.xlu0 %v1396, 32
  %v1466 = vpop.permute.xlu0 %1465
  %1467 = vrot.lane.b32.xlu0 %v1397, 32
  %v1468 = vpop.permute.xlu0 %1467
  %1469 = vrot.lane.b32.xlu0 %v1398, 32
  %v1470 = vpop.permute.xlu0 %1469
  %1474 = vst.msk [vmem:[#allocation5 + $0x30] sm:$0xff] %vm1423, %v1466
  %1475 = vst.msk [vmem:[#allocation5 + $0x40] sm:$0xff] %vm1423, %v1468
  %1476 = vst.msk [vmem:[#allocation5 + $0x50] sm:$0xff] %vm1423, %v1470
  %1477 = vrot.lane.b32.xlu0 %v1399, 64
  %v1478 = vpop.permute.xlu0 %1477
  %1479 = vrot.lane.b32.xlu0 %v1400, 64
  %v1480 = vpop.permute.xlu0 %1479
  %1481 = vrot.lane.b32.xlu0 %v1401, 64
  %v1482 = vpop.permute.xlu0 %1481
  %1486 = vst.msk [vmem:[#allocation5 + $0x30] sm:$0xff] %vm1439, %v1478
  %1487 = vst.msk [vmem:[#allocation5 + $0x40] sm:$0xff] %vm1439, %v1480
  %1488 = vst.msk [vmem:[#allocation5 + $0x50] sm:$0xff] %vm1439, %v1482
  %1492 = vrot.lane.b32.xlu0 %v1402, 96
  %v1493 = vpop.permute.xlu0 %1492
  %1494 = vrot.lane.b32.xlu0 %v1403, 96
  %v1495 = vpop.permute.xlu0 %1494
  %1496 = vrot.lane.b32.xlu0 %v1404, 96
  %v1497 = vpop.permute.xlu0 %1496
  %1501 = vst.msk [vmem:[#allocation5 + $0x30] sm:$0xff] %vm1455, %v1493
  %1502 = vst.msk [vmem:[#allocation5 + $0x40] sm:$0xff] %vm1455, %v1495
  %1503 = vst.msk [vmem:[#allocation5 + $0x50] sm:$0xff] %vm1455, %v1497
  %1504 = vst.msk [vmem:[#allocation5 + $0x38] sm:$0xff] %vm1122, %v1405
  %1505 = vst.msk [vmem:[#allocation5 + $0x48] sm:$0xff] %vm1122, %v1406
  %1506 = vst.msk [vmem:[#allocation5 + $0x58] sm:$0xff] %vm1122, %v1407
  %v1507 = vld [vmem:[#allocation5] sm:$0xff]
  %v1508 = vld [vmem:[#allocation5 + $0x8] sm:$0xff]
  %v1509 = vld [vmem:[#allocation5 + $0x10] sm:$0xff]
  %v1510 = vld [vmem:[#allocation5 + $0x18] sm:$0xff]
  %v1511 = vld [vmem:[#allocation5 + $0x20] sm:$0xff]
  %v1512 = vld [vmem:[#allocation5 + $0x28] sm:$0xff]
  %v1513 = vld [vmem:[#allocation5 + $0x30] sm:$0xff]
  %v1514 = vld [vmem:[#allocation5 + $0x38] sm:$0xff]
  %v1515 = vld [vmem:[#allocation5 + $0x40] sm:$0xff]
  %v1516 = vld [vmem:[#allocation5 + $0x48] sm:$0xff]
  %v1517 = vld [vmem:[#allocation5 + $0x50] sm:$0xff]
  %v1518 = vld [vmem:[#allocation5 + $0x58] sm:$0xff]
  %v1519 = vld [vmem:[%s6] sm:$0xff]
  %v1520 = vld [vmem:[%s6 + $0x8] sm:$0xff]
  %v1521 = vld [vmem:[%s6 + $0x10] sm:$0xff]
  %v1522 = vld [vmem:[%s6 + $0x18] sm:$0xff]
  %v1523 = vld [vmem:[%s6 + $0x20] sm:$0xff]
  %v1524 = vld [vmem:[%s6 + $0x28] sm:$0xff]
  %v1525 = vld [vmem:[%s6 + $0x30] sm:$0xff]
  %v1526 = vld [vmem:[%s6 + $0x38] sm:$0xff]
  %v1527 = vld [vmem:[%s6 + $0x40] sm:$0xff]
  %v1528 = vld [vmem:[%s6 + $0x48] sm:$0xff]
  %v1529 = vld [vmem:[%s6 + $0x50] sm:$0xff]
  %v1530 = vld [vmem:[%s6 + $0x58] sm:$0xff]
  %v1531 = vld [vmem:[%s6 + $0x60] sm:$0xff]
  %v1532 = vld [vmem:[%s6 + $0x68] sm:$0xff]
  %v1533 = vld [vmem:[%s6 + $0x70] sm:$0xff]
  %v1534 = vld [vmem:[%s6 + $0x78] sm:$0xff]
  %v1535 = vld [vmem:[%s6 + $0x80] sm:$0xff]
  %v1536 = vld [vmem:[%s6 + $0x88] sm:$0xff]
  %v1537 = vld [vmem:[%s6 + $0x90] sm:$0xff]
  %v1538 = vld [vmem:[%s6 + $0x98] sm:$0xff]
  %v1539 = vld [vmem:[%s7] sm:$0x1]
  %v1541 = vlaneseq
  %v1542 = vshrl.u32 %v1541, 7
  %v1543 = vsub.s32 0, %v1542
  %v1544 = vrot.slane %v1539, %v1543
  %v1547 = vsel %vm1122, %v1508, 0
  %v1550 = vsel %vm1122, %v1510, 0
  %v1553 = vsel %vm1122, %v1512, 0
  %v1556 = vsel %vm1122, %v1514, 0
  %v1559 = vsel %vm1122, %v1516, 0
  %v1562 = vsel %vm1122, %v1518, 0
  %1564 = vmatprep.subr.mxu0 0.0
  %1565 = vmatpush1.msra.mxu0 %v1519
  %1566 = vmatprep.subr.mxu0 0.0
  %1567 = vmatpush1.msra.mxu0 %v1520
  %1568 = vmatprep.subr.mxu0 0.0
  %1569 = vmatpush1.msra.mxu0 %v1521
  %1570 = vmatprep.subr.mxu0 0.0
  %1571 = vmatpush1.msra.mxu0 %v1522
  %1572 = vmatprep.subr.mxu0 0.0
  %1573 = vmatpush1.msra.mxu0 %v1523
  %1574 = vmatprep.subr.mxu0 0.0
  %1575 = vmatpush1.msra.mxu0 %v1524
  %1576 = vmatprep.subr.mxu0 0.0
  %1577 = vmatpush1.msra.mxu0 %v1525
  %1578 = vmatprep.subr.mxu0 0.0
  %1579 = vmatpush1.msra.mxu0 %v1526
  %1580 = vmatprep.subr.mxu0 0.0
  %1581 = vmatpush1.msra.mxu0 %v1527
  %1582 = vmatprep.subr.mxu0 0.0
  %1583 = vmatpush1.msra.mxu0 %v1528
  %1584 = vmatprep.subr.mxu0 0.0
  %1585 = vmatpush1.msra.mxu0 %v1529
  %1586 = vmatprep.subr.mxu0 0.0
  %1587 = vmatpush1.msra.mxu0 %v1530
  %1588 = vmatprep.subr.mxu0 0.0
  %1589 = vmatpush1.msra.mxu0 %v1531
  %1590 = vmatprep.subr.mxu0 0.0
  %1591 = vmatpush1.msra.mxu0 %v1532
  %1592 = vmatprep.subr.mxu0 0.0
  %1593 = vmatpush1.msra.mxu0 %v1533
  %1594 = vmatprep.subr.mxu0 0.0
  %1595 = vmatpush1.msra.mxu0 %v1534
  %1596 = vmatprep.subr.mxu0 0.0
  %1597 = vmatpush1.msra.mxu0 %v1535
  %1598 = vmatprep.subr.mxu0 0.0
  %1599 = vmatpush1.msra.mxu0 %v1536
  %1600 = vmatprep.subr.mxu0 0.0
  %1601 = vmatpush1.msra.mxu0 %v1537
  %1602 = vmatprep.subr.mxu0 0.0
  %1603 = vmatpush1.msra.mxu0 %v1538
  %1604 = vmatprep.subr.mxu0 0.0
  %1605 = vmatpush1.msra.mxu0 0.0
  %1606 = vmatprep.subr.mxu0 0.0
  %1607 = vmatpush1.msra.mxu0 0.0
  %1608 = vmatprep.subr.mxu0 0.0
  %1609 = vmatpush1.msra.mxu0 0.0
  %1610 = vmatprep.subr.mxu0 0.0
  %1611 = vmatpush1.msra.mxu0 0.0
  %1612 = vmatprep.subr.mxu0 0.0
  %1613 = vmatpush1.msra.mxu0 0.0
  %1614 = vmatprep.subr.mxu0 0.0
  %1615 = vmatpush1.msra.mxu0 0.0
  %1616 = vmatprep.subr.mxu0 0.0
  %1617 = vmatpush1.msra.mxu0 0.0
  %1618 = vmatprep.subr.mxu0 0.0
  %1619 = vmatpush1.msra.mxu0 0.0
  %1620 = vmatprep.subr.mxu0 0.0
  %1621 = vmatpush1.msra.mxu0 0.0
  %1622 = vmatprep.subr.mxu0 0.0
  %1623 = vmatpush1.msra.mxu0 0.0
  %1624 = vmatprep.subr.mxu0 0.0
  %1625 = vmatpush1.msra.mxu0 0.0
  %1626 = vmatprep.subr.mxu0 0.0
  %1627 = vmatpush1.msra.mxu0 0.0
  %1628 = vmatprep.mubr.f32.mxu0 %v1547
  %1629 = vmatmul.mubr.f32.gmra.mrb[0].mxu0 %v1507
  %v1630 = vpop.f32.mrb[0].mxu0
  %v1631 = vadd.f32 %v1544, %v1630
  %v1632 = vpop.f32.mrb[0].mxu0
  %1633 = vmatprep.mubr.f32.mxu0 %v1550
  %1634 = vmatmul.mubr.f32.gmra.mrb[0].mxu0 %v1509
  %v1635 = vpop.f32.mrb[0].mxu0
  %v1636 = vadd.f32 %v1544, %v1635
  %v1637 = vpop.f32.mrb[0].mxu0
  %1638 = vmatprep.mubr.f32.mxu0 %v1553
  %1639 = vmatmul.mubr.f32.gmra.mrb[0].mxu0 %v1511
  %v1640 = vpop.f32.mrb[0].mxu0
  %v1641 = vadd.f32 %v1544, %v1640
  %v1642 = vpop.f32.mrb[0].mxu0
  %1643 = vmatprep.mubr.f32.mxu0 %v1556
  %1644 = vmatmul.mubr.f32.gmra.mrb[0].mxu0 %v1513
  %v1645 = vpop.f32.mrb[0].mxu0
  %v1646 = vadd.f32 %v1544, %v1645
  %v1647 = vpop.f32.mrb[0].mxu0
  %1648 = vmatprep.mubr.f32.mxu0 %v1559
  %1649 = vmatmul.mubr.f32.gmra.mrb[0].mxu0 %v1515
  %v1650 = vpop.f32.mrb[0].mxu0
  %v1651 = vadd.f32 %v1544, %v1650
  %v1652 = vpop.f32.mrb[0].mxu0
  %1653 = vmatprep.mubr.f32.mxu0 %v1562
  %1654 = vmatmul.mubr.f32.gmra.mrb[0].mxu0 %v1517
  %v1655 = vpop.f32.mrb[0].mxu0
  %v1656 = vadd.f32 %v1544, %v1655
  %v1657 = vpop.f32.mrb[0].mxu0
  %1658 = vdwg.mxu0
  %v1659 = vmax.f32 %v1631, 0.0
  %v1660 = vmax.f32 %v1636, 0.0
  %v1661 = vmax.f32 %v1641, 0.0
  %v1662 = vmax.f32 %v1646, 0.0
  %v1663 = vmax.f32 %v1651, 0.0
  %v1664 = vmax.f32 %v1656, 0.0
  %v1665 = vsel %vm1122, %v1659, 0.0
  %v1666 = vsel %vm1122, %v1660, 0.0
  %v1667 = vadd.f32 %v1665, %v1666
  %v1668 = vsel %vm1122, %v1661, 0.0
  %v1669 = vadd.f32 %v1667, %v1668
  %v1670 = vsel %vm1122, %v1662, 0.0
  %v1671 = vadd.f32 %v1669, %v1670
  %v1672 = vsel %vm1122, %v1663, 0.0
  %v1673 = vadd.f32 %v1671, %v1672
  %v1674 = vsel %vm1122, %v1664, 0.0
  %v1675 = vadd.f32 %v1673, %v1674
  %v1676 = vrot.slane %v1675, 4
  %v1677 = vadd.f32 %v1675, %v1676
  %v1678 = vrot.slane %v1677, 2
  %v1679 = vadd.f32 %v1677, %v1678
  %v1680 = vrot.slane %v1679, 1
  %v1681 = vadd.f32 %v1679, %v1680
  %v1682 = vrcp.pop 48.0
  %v1683 = vmul.f32 %v1681, %v1682
  %v1684 = vsub.f32 %v1659, %v1683
  %v1685 = vsub.f32 %v1660, %v1683
  %v1686 = vsub.f32 %v1661, %v1683
  %v1687 = vsub.f32 %v1662, %v1683
  %v1688 = vsub.f32 %v1663, %v1683
  %v1689 = vsub.f32 %v1664, %v1683
  %v1690 = vmul.f32 %v1684, %v1684
  %v1691 = vmul.f32 %v1685, %v1685
  %v1692 = vmul.f32 %v1686, %v1686
  %v1693 = vmul.f32 %v1687, %v1687
  %v1694 = vmul.f32 %v1688, %v1688
  %v1695 = vmul.f32 %v1689, %v1689
  %v1696 = vsel %vm1122, %v1690, 0.0
  %v1697 = vsel %vm1122, %v1691, 0.0
  %v1698 = vadd.f32 %v1696, %v1697
  %v1699 = vsel %vm1122, %v1692, 0.0
  %v1700 = vadd.f32 %v1698, %v1699
  %v1701 = vsel %vm1122, %v1693, 0.0
  %v1702 = vadd.f32 %v1700, %v1701
  %v1703 = vsel %vm1122, %v1694, 0.0
  %v1704 = vadd.f32 %v1702, %v1703
  %v1705 = vsel %vm1122, %v1695, 0.0
  %v1706 = vadd.f32 %v1704, %v1705
  %v1707 = vrot.slane %v1706, 4
  %v1708 = vadd.f32 %v1706, %v1707
  %v1709 = vrot.slane %v1708, 2
  %v1710 = vadd.f32 %v1708, %v1709
  %v1711 = vrot.slane %v1710, 1
  %v1712 = vadd.f32 %v1710, %v1711
  %v1713 = vmul.f32 %v1712, %v1682
  %v1714 = vadd.f32 %v1713, 1e-05
  %v1715 = vrsqrt.pop %v1714
  %v1716 = vmul.f32 %v1684, %v1715
  %v1717 = vmul.f32 %v1685, %v1715
  %v1718 = vmul.f32 %v1686, %v1715
  %v1719 = vmul.f32 %v1687, %v1715
  %v1720 = vmul.f32 %v1688, %v1715
  %v1721 = vmul.f32 %v1689, %v1715
  %v1722 = vadd.f32 %v1716, %v1719
  %v1723 = vadd.f32 %v1717, %v1720
  %v1724 = vadd.f32 %v1718, %v1721
  %v1725 = vmul.f32 %v1722, 0.5
  %v1726 = vmul.f32 %v1723, 0.5
  %v1727 = vmul.f32 %v1724, 0.5
  %v1728 = vld [vmem:[%s8] sm:$0xff]
  %v1729 = vld [vmem:[%s8 + $0x8] sm:$0xff]
  %v1730 = vld [vmem:[%s8 + $0x10] sm:$0xff]
  %v1731 = vld [vmem:[%s8 + $0x18] sm:$0xff]
  %v1732 = vld [vmem:[%s9] sm:$0x1]
  %v1734 = vlaneseq
  %v1735 = vshrl.u32 %v1734, 7
  %v1736 = vsub.s32 0, %v1735
  %v1737 = vrot.slane %v1732, %v1736
  %v1740 = vsel %vm1122, %v1725, 0
  %v1743 = vsel %vm1122, %v1726, 0
  %v1746 = vsel %vm1122, %v1727, 0
  %1748 = vmatprep.subr.mxu0 0.0
  %1749 = vmatpush1.msra.mxu0 %v1728
  %1750 = vmatprep.subr.mxu0 0.0
  %1751 = vmatpush1.msra.mxu0 %v1729
  %1752 = vmatprep.subr.mxu0 0.0
  %1753 = vmatpush1.msra.mxu0 %v1730
  %1754 = vmatprep.subr.mxu0 0.0
  %1755 = vmatpush1.msra.mxu0 %v1731
  %1756 = vmatprep.subr.mxu0 0.0
  %1757 = vmatpush1.msra.mxu0 0.0
  %1758 = vmatprep.subr.mxu0 0.0
  %1759 = vmatpush1.msra.mxu0 0.0
  %1760 = vmatprep.subr.mxu0 0.0
  %1761 = vmatpush1.msra.mxu0 0.0
  %1762 = vmatprep.subr.mxu0 0.0
  %1763 = vmatpush1.msra.mxu0 0.0
  %1764 = vmatprep.subr.mxu0 0.0
  %1765 = vmatpush1.msra.mxu0 0.0
  %1766 = vmatprep.subr.mxu0 0.0
  %1767 = vmatpush1.msra.mxu0 0.0
  %1768 = vmatprep.subr.mxu0 0.0
  %1769 = vmatpush1.msra.mxu0 0.0
  %1770 = vmatprep.subr.mxu0 0.0
  %1771 = vmatpush1.msra.mxu0 0.0
  %1772 = vmatprep.subr.mxu0 0.0
  %1773 = vmatpush1.msra.mxu0 0.0
  %1774 = vmatprep.subr.mxu0 0.0
  %1775 = vmatpush1.msra.mxu0 0.0
  %1776 = vmatprep.subr.mxu0 0.0
  %1777 = vmatpush1.msra.mxu0 0.0
  %1778 = vmatprep.subr.mxu0 0.0
  %1779 = vmatpush1.msra.mxu0 0.0
  %1780 = vmatprep.subr.mxu0 0.0
  %1781 = vmatpush1.msra.mxu0 0.0
  %1782 = vmatprep.subr.mxu0 0.0
  %1783 = vmatpush1.msra.mxu0 0.0
  %1784 = vmatprep.subr.mxu0 0.0
  %1785 = vmatpush1.msra.mxu0 0.0
  %1786 = vmatprep.subr.mxu0 0.0
  %1787 = vmatpush1.msra.mxu0 0.0
  %1788 = vmatprep.subr.mxu0 0.0
  %1789 = vmatpush1.msra.mxu0 0.0
  %1790 = vmatprep.subr.mxu0 0.0
  %1791 = vmatpush1.msra.mxu0 0.0
  %1792 = vmatprep.subr.mxu0 0.0
  %1793 = vmatpush1.msra.mxu0 0.0
  %1794 = vmatprep.subr.mxu0 0.0
  %1795 = vmatpush1.msra.mxu0 0.0
  %1796 = vmatprep.subr.mxu0 0.0
  %1797 = vmatpush1.msra.mxu0 0.0
  %1798 = vmatprep.subr.mxu0 0.0
  %1799 = vmatpush1.msra.mxu0 0.0
  %1800 = vmatprep.subr.mxu0 0.0
  %1801 = vmatpush1.msra.mxu0 0.0
  %1802 = vmatprep.subr.mxu0 0.0
  %1803 = vmatpush1.msra.mxu0 0.0
  %1804 = vmatprep.subr.mxu0 0.0
  %1805 = vmatpush1.msra.mxu0 0.0
  %1806 = vmatprep.subr.mxu0 0.0
  %1807 = vmatpush1.msra.mxu0 0.0
  %1808 = vmatprep.subr.mxu0 0.0
  %1809 = vmatpush1.msra.mxu0 0.0
  %1810 = vmatprep.subr.mxu0 0.0
  %1811 = vmatpush1.msra.mxu0 0.0
  %1812 = vmatprep.mubr.f32.mxu0 0.0
  %1813 = vmatmul.mubr.f32.gmra.mrb[0].mxu0 %v1740
  %v1814 = vpop.f32.mrb[0].mxu0
  %v1815 = vadd.f32 %v1737, %v1814
  %v1816 = vpop.f32.mrb[0].mxu0
  %1817 = vmatprep.mubr.f32.mxu0 0.0
  %1818 = vmatmul.mubr.f32.gmra.mrb[0].mxu0 %v1743
  %v1819 = vpop.f32.mrb[0].mxu0
  %v1820 = vadd.f32 %v1737, %v1819
  %v1821 = vpop.f32.mrb[0].mxu0
  %1822 = vmatprep.mubr.f32.mxu0 0.0
  %1823 = vmatmul.mubr.f32.gmra.mrb[0].mxu0 %v1746
  %v1824 = vpop.f32.mrb[0].mxu0
  %v1825 = vadd.f32 %v1737, %v1824
  %v1826 = vpop.f32.mrb[0].mxu0
  %1827 = vdwg.mxu0
  %v1828 = vld [vmem:[%s10] sm:$0xff]
  %v1829 = vld [vmem:[%s10 + $0x8] sm:$0xff]
  %v1830 = vld [vmem:[%s10 + $0x10] sm:$0xff]
  %v1831 = vld [vmem:[%s10 + $0x18] sm:$0xff]
  %v1832 = vld [vmem:[%s11] sm:$0x1]
  %v1833 = vld [vmem:[%s12] sm:$0xff]
  %v1834 = vld [vmem:[%s12 + $0x8] sm:$0xff]
  %v1835 = vld [vmem:[%s12 + $0x10] sm:$0xff]
  %v1836 = vld [vmem:[%s12 + $0x18] sm:$0xff]
  %v1837 = vld [vmem:[%s13] sm:$0x1]
  %v1839 = vlaneseq
  %v1840 = vshrl.u32 %v1839, 7
  %v1841 = vsub.s32 0, %v1840
  %v1842 = vrot.slane %v1832, %v1841
  %v1845 = vsel %vm1122, %v1815, 0
  %v1848 = vsel %vm1122, %v1820, 0
  %v1851 = vsel %vm1122, %v1825, 0
  %1853 = vmatprep.subr.mxu0 0.0
  %1854 = vmatpush1.msra.mxu0 %v1828
  %1855 = vmatprep.subr.mxu0 0.0
  %1856 = vmatpush1.msra.mxu0 %v1829
  %1857 = vmatprep.subr.mxu0 0.0
  %1858 = vmatpush1.msra.mxu0 %v1830
  %1859 = vmatprep.subr.mxu0 0.0
  %1860 = vmatpush1.msra.mxu0 %v1831
  %1861 = vmatprep.subr.mxu0 0.0
  %1862 = vmatpush1.msra.mxu0 0.0
  %1863 = vmatprep.subr.mxu0 0.0
  %1864 = vmatpush1.msra.mxu0 0.0
  %1865 = vmatprep.subr.mxu0 0.0
  %1866 = vmatpush1.msra.mxu0 0.0
  %1867 = vmatprep.subr.mxu0 0.0
  %1868 = vmatpush1.msra.mxu0 0.0
  %1869 = vmatprep.subr.mxu0 0.0
  %1870 = vmatpush1.msra.mxu0 0.0
  %1871 = vmatprep.subr.mxu0 0.0
  %1872 = vmatpush1.msra.mxu0 0.0
  %1873 = vmatprep.subr.mxu0 0.0
  %1874 = vmatpush1.msra.mxu0 0.0
  %1875 = vmatprep.subr.mxu0 0.0
  %1876 = vmatpush1.msra.mxu0 0.0
  %1877 = vmatprep.subr.mxu0 0.0
  %1878 = vmatpush1.msra.mxu0 0.0
  %1879 = vmatprep.subr.mxu0 0.0
  %1880 = vmatpush1.msra.mxu0 0.0
  %1881 = vmatprep.subr.mxu0 0.0
  %1882 = vmatpush1.msra.mxu0 0.0
  %1883 = vmatprep.subr.mxu0 0.0
  %1884 = vmatpush1.msra.mxu0 0.0
  %1885 = vmatprep.subr.mxu0 0.0
  %1886 = vmatpush1.msra.mxu0 0.0
  %1887 = vmatprep.subr.mxu0 0.0
  %1888 = vmatpush1.msra.mxu0 0.0
  %1889 = vmatprep.subr.mxu0 0.0
  %1890 = vmatpush1.msra.mxu0 0.0
  %1891 = vmatprep.subr.mxu0 0.0
  %1892 = vmatpush1.msra.mxu0 0.0
  %1893 = vmatprep.subr.mxu0 0.0
  %1894 = vmatpush1.msra.mxu0 0.0
  %1895 = vmatprep.subr.mxu0 0.0
  %1896 = vmatpush1.msra.mxu0 0.0
  %1897 = vmatprep.subr.mxu0 0.0
  %1898 = vmatpush1.msra.mxu0 0.0
  %1899 = vmatprep.subr.mxu0 0.0
  %1900 = vmatpush1.msra.mxu0 0.0
  %1901 = vmatprep.subr.mxu0 0.0
  %1902 = vmatpush1.msra.mxu0 0.0
  %1903 = vmatprep.subr.mxu0 0.0
  %1904 = vmatpush1.msra.mxu0 0.0
  %1905 = vmatprep.subr.mxu0 0.0
  %1906 = vmatpush1.msra.mxu0 0.0
  %1907 = vmatprep.subr.mxu0 0.0
  %1908 = vmatpush1.msra.mxu0 0.0
  %1909 = vmatprep.subr.mxu0 0.0
  %1910 = vmatpush1.msra.mxu0 0.0
  %1911 = vmatprep.subr.mxu0 0.0
  %1912 = vmatpush1.msra.mxu0 0.0
  %1913 = vmatprep.subr.mxu0 0.0
  %1914 = vmatpush1.msra.mxu0 0.0
  %1915 = vmatprep.subr.mxu0 0.0
  %1916 = vmatpush1.msra.mxu0 0.0
  %1917 = vmatprep.mubr.f32.mxu0 0.0
  %1918 = vmatmul.mubr.f32.gmra.mrb[0].mxu0 %v1845
  %v1919 = vpop.f32.mrb[0].mxu0
  %v1920 = vadd.f32 %v1842, %v1919
  %v1921 = vpop.f32.mrb[0].mxu0
  %1922 = vmatprep.mubr.f32.mxu0 0.0
  %1923 = vmatmul.mubr.f32.gmra.mrb[0].mxu0 %v1848
  %v1924 = vpop.f32.mrb[0].mxu0
  %v1925 = vadd.f32 %v1842, %v1924
  %v1926 = vpop.f32.mrb[0].mxu0
  %1927 = vmatprep.mubr.f32.mxu0 0.0
  %1928 = vmatmul.mubr.f32.gmra.mrb[0].mxu0 %v1851
  %v1929 = vpop.f32.mrb[0].mxu0
  %v1930 = vadd.f32 %v1842, %v1929
  %v1931 = vpop.f32.mrb[0].mxu0
  %1932 = vdwg.mxu0
  %vm1933 = vcmp.gt.f32.partialorder %v1920, 0.0
  %vm1934 = vcmp.gt.f32.partialorder %v1925, 0.0
  %vm1935 = vcmp.gt.f32.partialorder %v1930, 0.0
  %v1936 = vmin.f32 %v1920, 0.0
  %v1937 = vmin.f32 %v1925, 0.0
  %v1938 = vmin.f32 %v1930, 0.0
  %v1939 = vmul.f32 %v1936, 1.442695
  %v1940 = vpow.pop %v1939
  %v1941 = vmul.f32 %v1937, 1.442695
  %v1942 = vpow.pop %v1941
  %v1943 = vmul.f32 %v1938, 1.442695
  %v1944 = vpow.pop %v1943
  %v1945 = vsub.f32 %v1940, 1.0
  %v1946 = vsub.f32 %v1942, 1.0
  %v1947 = vsub.f32 %v1944, 1.0
  %v1948 = vsel %vm1933, %v1920, %v1945
  %v1949 = vsel %vm1934, %v1925, %v1946
  %v1950 = vsel %vm1935, %v1930, %v1947
  %v1952 = vlaneseq
  %v1953 = vshrl.u32 %v1952, 7
  %v1954 = vsub.s32 0, %v1953
  %v1955 = vrot.slane %v1837, %v1954
  %v1958 = vsel %vm1122, %v1948, 0
  %v1961 = vsel %vm1122, %v1949, 0
  %v1964 = vsel %vm1122, %v1950, 0
  %1966 = vmatprep.subr.mxu0 0.0
  %1967 = vmatpush1.msra.mxu0 %v1833
  %1968 = vmatprep.subr.mxu0 0.0
  %1969 = vmatpush1.msra.mxu0 %v1834
  %1970 = vmatprep.subr.mxu0 0.0
  %1971 = vmatpush1.msra.mxu0 %v1835
  %1972 = vmatprep.subr.mxu0 0.0
  %1973 = vmatpush1.msra.mxu0 %v1836
  %1974 = vmatprep.subr.mxu0 0.0
  %1975 = vmatpush1.msra.mxu0 0.0
  %1976 = vmatprep.subr.mxu0 0.0
  %1977 = vmatpush1.msra.mxu0 0.0
  %1978 = vmatprep.subr.mxu0 0.0
  %1979 = vmatpush1.msra.mxu0 0.0
  %1980 = vmatprep.subr.mxu0 0.0
  %1981 = vmatpush1.msra.mxu0 0.0
  %1982 = vmatprep.subr.mxu0 0.0
  %1983 = vmatpush1.msra.mxu0 0.0
  %1984 = vmatprep.subr.mxu0 0.0
  %1985 = vmatpush1.msra.mxu0 0.0
  %1986 = vmatprep.subr.mxu0 0.0
  %1987 = vmatpush1.msra.mxu0 0.0
  %1988 = vmatprep.subr.mxu0 0.0
  %1989 = vmatpush1.msra.mxu0 0.0
  %1990 = vmatprep.subr.mxu0 0.0
  %1991 = vmatpush1.msra.mxu0 0.0
  %1992 = vmatprep.subr.mxu0 0.0
  %1993 = vmatpush1.msra.mxu0 0.0
  %1994 = vmatprep.subr.mxu0 0.0
  %1995 = vmatpush1.msra.mxu0 0.0
  %1996 = vmatprep.subr.mxu0 0.0
  %1997 = vmatpush1.msra.mxu0 0.0
  %1998 = vmatprep.subr.mxu0 0.0
  %1999 = vmatpush1.msra.mxu0 0.0
  %2000 = vmatprep.subr.mxu0 0.0
  %2001 = vmatpush1.msra.mxu0 0.0
  %2002 = vmatprep.subr.mxu0 0.0
  %2003 = vmatpush1.msra.mxu0 0.0
  %2004 = vmatprep.subr.mxu0 0.0
  %2005 = vmatpush1.msra.mxu0 0.0
  %2006 = vmatprep.subr.mxu0 0.0
  %2007 = vmatpush1.msra.mxu0 0.0
  %2008 = vmatprep.subr.mxu0 0.0
  %2009 = vmatpush1.msra.mxu0 0.0
  %2010 = vmatprep.subr.mxu0 0.0
  %2011 = vmatpush1.msra.mxu0 0.0
  %2012 = vmatprep.subr.mxu0 0.0
  %2013 = vmatpush1.msra.mxu0 0.0
  %2014 = vmatprep.subr.mxu0 0.0
  %2015 = vmatpush1.msra.mxu0 0.0
  %2016 = vmatprep.subr.mxu0 0.0
  %2017 = vmatpush1.msra.mxu0 0.0
  %2018 = vmatprep.subr.mxu0 0.0
  %2019 = vmatpush1.msra.mxu0 0.0
  %2020 = vmatprep.subr.mxu0 0.0
  %2021 = vmatpush1.msra.mxu0 0.0
  %2022 = vmatprep.subr.mxu0 0.0
  %2023 = vmatpush1.msra.mxu0 0.0
  %2024 = vmatprep.subr.mxu0 0.0
  %2025 = vmatpush1.msra.mxu0 0.0
  %2026 = vmatprep.subr.mxu0 0.0
  %2027 = vmatpush1.msra.mxu0 0.0
  %2028 = vmatprep.subr.mxu0 0.0
  %2029 = vmatpush1.msra.mxu0 0.0
  %2030 = vmatprep.mubr.f32.mxu0 0.0
  %2031 = vmatmul.mubr.f32.gmra.mrb[0].mxu0 %v1958
  %v2032 = vpop.f32.mrb[0].mxu0
  %v2033 = vadd.f32 %v1955, %v2032
  %v2034 = vpop.f32.mrb[0].mxu0
  %2035 = vmatprep.mubr.f32.mxu0 0.0
  %2036 = vmatmul.mubr.f32.gmra.mrb[0].mxu0 %v1961
  %v2037 = vpop.f32.mrb[0].mxu0
  %v2038 = vadd.f32 %v1955, %v2037
  %v2039 = vpop.f32.mrb[0].mxu0
  %2040 = vmatprep.mubr.f32.mxu0 0.0
  %2041 = vmatmul.mubr.f32.gmra.mrb[0].mxu0 %v1964
  %v2042 = vpop.f32.mrb[0].mxu0
  %v2043 = vadd.f32 %v1955, %v2042
  %v2044 = vpop.f32.mrb[0].mxu0
  %2045 = vdwg.mxu0
  %vm2046 = vcmp.gt.f32.partialorder %v2033, 0.0
  %vm2047 = vcmp.gt.f32.partialorder %v2038, 0.0
  %vm2048 = vcmp.gt.f32.partialorder %v2043, 0.0
  %v2049 = vmin.f32 %v2033, 0.0
  %v2050 = vmin.f32 %v2038, 0.0
  %v2051 = vmin.f32 %v2043, 0.0
  %v2052 = vmul.f32 %v2049, 1.442695
  %v2053 = vpow.pop %v2052
  %v2054 = vmul.f32 %v2050, 1.442695
  %v2055 = vpow.pop %v2054
  %v2056 = vmul.f32 %v2051, 1.442695
  %v2057 = vpow.pop %v2056
  %v2058 = vsub.f32 %v2053, 1.0
  %v2059 = vsub.f32 %v2055, 1.0
  %v2060 = vsub.f32 %v2057, 1.0
  %v2061 = vsel %vm2046, %v2033, %v2058
  %v2062 = vsel %vm2047, %v2038, %v2059
  %v2063 = vsel %vm2048, %v2043, %v2060
  %v2064 = vsel %vm1122, %v2061, 0.0
  %v2065 = vsel %vm1122, %v2062, 0.0
  %v2066 = vadd.f32 %v2064, %v2065
  %v2067 = vsel %vm1122, %v2063, 0.0
  %v2068 = vadd.f32 %v2066, %v2067
  %v2069 = vrot.slane %v2068, 4
  %v2070 = vadd.f32 %v2068, %v2069
  %v2071 = vrot.slane %v2070, 2
  %v2072 = vadd.f32 %v2070, %v2071
  %v2073 = vrot.slane %v2072, 1
  %v2074 = vadd.f32 %v2072, %v2073
  %v2075 = vrcp.pop 24.0
  %v2076 = vmul.f32 %v2074, %v2075
  %v2077 = vsub.f32 %v2061, %v2076
  %v2078 = vsub.f32 %v2062, %v2076
  %v2079 = vsub.f32 %v2063, %v2076
  %v2080 = vmul.f32 %v2077, %v2077
  %v2081 = vmul.f32 %v2078, %v2078
  %v2082 = vmul.f32 %v2079, %v2079
  %v2083 = vsel %vm1122, %v2080, 0.0
  %v2084 = vsel %vm1122, %v2081, 0.0
  %v2085 = vadd.f32 %v2083, %v2084
  %v2086 = vsel %vm1122, %v2082, 0.0
  %v2087 = vadd.f32 %v2085, %v2086
  %v2088 = vrot.slane %v2087, 4
  %v2089 = vadd.f32 %v2087, %v2088
  %v2090 = vrot.slane %v2089, 2
  %v2091 = vadd.f32 %v2089, %v2090
  %v2092 = vrot.slane %v2091, 1
  %v2093 = vadd.f32 %v2091, %v2092
  %v2094 = vmul.f32 %v2093, %v2075
  %v2095 = vadd.f32 %v2094, 1e-05
  %v2096 = vrsqrt.pop %v2095
  %v2097 = vmul.f32 %v2077, %v2096
  %v2098 = vmul.f32 %v2078, %v2096
  %v2099 = vmul.f32 %v2079, %v2096
  %v2100 = vld [vmem:[%s3] sm:$0xff]
  %vm2101 = vcmask 195584
  %v2103 = vsel %vm2101, %v2100, 0
  %2105 = vmatprep.subr.mxu0 0.0
  %2106 = vmatpush1.msra.mxu0 %v2097
  %2107 = vmatprep.subr.mxu0 0.0
  %2108 = vmatpush1.msra.mxu0 %v2098
  %2109 = vmatprep.subr.mxu0 0.0
  %2110 = vmatpush1.msra.mxu0 %v2099
  %2111 = vmatprep.subr.mxu0 0.0
  %2112 = vmatpush1.msra.mxu0 0.0
  %2113 = vmatprep.subr.mxu0 0.0
  %2114 = vmatpush1.msra.mxu0 0.0
  %2115 = vmatprep.subr.mxu0 0.0
  %2116 = vmatpush1.msra.mxu0 0.0
  %2117 = vmatprep.subr.mxu0 0.0
  %2118 = vmatpush1.msra.mxu0 0.0
  %2119 = vmatprep.subr.mxu0 0.0
  %2120 = vmatpush1.msra.mxu0 0.0
  %2121 = vmatprep.subr.mxu0 0.0
  %2122 = vmatpush1.msra.mxu0 0.0
  %2123 = vmatprep.subr.mxu0 0.0
  %2124 = vmatpush1.msra.mxu0 0.0
  %2125 = vmatprep.subr.mxu0 0.0
  %2126 = vmatpush1.msra.mxu0 0.0
  %2127 = vmatprep.subr.mxu0 0.0
  %2128 = vmatpush1.msra.mxu0 0.0
  %2129 = vmatprep.subr.mxu0 0.0
  %2130 = vmatpush1.msra.mxu0 0.0
  %2131 = vmatprep.subr.mxu0 0.0
  %2132 = vmatpush1.msra.mxu0 0.0
  %2133 = vmatprep.subr.mxu0 0.0
  %2134 = vmatpush1.msra.mxu0 0.0
  %2135 = vmatprep.subr.mxu0 0.0
  %2136 = vmatpush1.msra.mxu0 0.0
  %2137 = vmatprep.subr.mxu0 0.0
  %2138 = vmatpush1.msra.mxu0 0.0
  %2139 = vmatprep.subr.mxu0 0.0
  %2140 = vmatpush1.msra.mxu0 0.0
  %2141 = vmatprep.subr.mxu0 0.0
  %2142 = vmatpush1.msra.mxu0 0.0
  %2143 = vmatprep.subr.mxu0 0.0
  %2144 = vmatpush1.msra.mxu0 0.0
  %2145 = vmatprep.subr.mxu0 0.0
  %2146 = vmatpush1.msra.mxu0 0.0
  %2147 = vmatprep.subr.mxu0 0.0
  %2148 = vmatpush1.msra.mxu0 0.0
  %2149 = vmatprep.subr.mxu0 0.0
  %2150 = vmatpush1.msra.mxu0 0.0
  %2151 = vmatprep.subr.mxu0 0.0
  %2152 = vmatpush1.msra.mxu0 0.0
  %2153 = vmatprep.subr.mxu0 0.0
  %2154 = vmatpush1.msra.mxu0 0.0
  %2155 = vmatprep.subr.mxu0 0.0
  %2156 = vmatpush1.msra.mxu0 0.0
  %2157 = vmatprep.subr.mxu0 0.0
  %2158 = vmatpush1.msra.mxu0 0.0
  %2159 = vmatprep.subr.mxu0 0.0
  %2160 = vmatpush1.msra.mxu0 0.0
  %2161 = vmatprep.subr.mxu0 0.0
  %2162 = vmatpush1.msra.mxu0 0.0
  %2163 = vmatprep.subr.mxu0 0.0
  %2164 = vmatpush1.msra.mxu0 0.0
  %2165 = vmatprep.subr.mxu0 0.0
  %2166 = vmatpush1.msra.mxu0 0.0
  %2167 = vmatprep.subr.mxu0 0.0
  %2168 = vmatpush1.msra.mxu0 0.0
  %2169 = vmatprep.mubr.f32.mxu0 0.0
  %2170 = vmatmul.mubr.f32.gmra.mrb[0].mxu0 %v2103
  %v2171 = vpop.f32.mrb[0].mxu0
  %v2172 = vadd.f32 0.0, %v2171
  %v2173 = vpop.f32.mrb[0].mxu0
  %2174 = vdwg.mxu0
  %v2175 = vmul.f32 %v2172, 0.25
  %v2176 = vld [vmem:[%s14] sm:$0xff]
  %v2177 = vld [vmem:[%s14 + $0x8] sm:$0xff]
  %v2178 = vld [vmem:[%s14 + $0x10] sm:$0xff]
  %v2179 = vld [vmem:[%s14 + $0x18] sm:$0xff]
  %v2180 = vld [vmem:[%s15] sm:$0x1]
  %v2181 = vld [vmem:[%s16] sm:$0xff]
  %v2182 = vld [vmem:[%s16 + $0x8] sm:$0xff]
  %v2183 = vld [vmem:[%s16 + $0x10] sm:$0xff]
  %v2184 = vld [vmem:[%s16 + $0x18] sm:$0xff]
  %v2185 = vld [vmem:[%s17] sm:$0x1]
  %v2187 = vlaneseq
  %v2188 = vshrl.u32 %v2187, 7
  %v2189 = vsub.s32 0, %v2188
  %v2190 = vrot.slane %v2180, %v2189
  %v2193 = vsel %vm1122, %v2175, 0
  %2195 = vmatprep.subr.mxu0 0.0
  %2196 = vmatpush1.msra.mxu0 %v2176
  %2197 = vmatprep.subr.mxu0 0.0
  %2198 = vmatpush1.msra.mxu0 %v2177
  %2199 = vmatprep.subr.mxu0 0.0
  %2200 = vmatpush1.msra.mxu0 %v2178
  %2201 = vmatprep.subr.mxu0 0.0
  %2202 = vmatpush1.msra.mxu0 %v2179
  %2203 = vmatprep.subr.mxu0 0.0
  %2204 = vmatpush1.msra.mxu0 0.0
  %2205 = vmatprep.subr.mxu0 0.0
  %2206 = vmatpush1.msra.mxu0 0.0
  %2207 = vmatprep.subr.mxu0 0.0
  %2208 = vmatpush1.msra.mxu0 0.0
  %2209 = vmatprep.subr.mxu0 0.0
  %2210 = vmatpush1.msra.mxu0 0.0
  %2211 = vmatprep.subr.mxu0 0.0
  %2212 = vmatpush1.msra.mxu0 0.0
  %2213 = vmatprep.subr.mxu0 0.0
  %2214 = vmatpush1.msra.mxu0 0.0
  %2215 = vmatprep.subr.mxu0 0.0
  %2216 = vmatpush1.msra.mxu0 0.0
  %2217 = vmatprep.subr.mxu0 0.0
  %2218 = vmatpush1.msra.mxu0 0.0
  %2219 = vmatprep.subr.mxu0 0.0
  %2220 = vmatpush1.msra.mxu0 0.0
  %2221 = vmatprep.subr.mxu0 0.0
  %2222 = vmatpush1.msra.mxu0 0.0
  %2223 = vmatprep.subr.mxu0 0.0
  %2224 = vmatpush1.msra.mxu0 0.0
  %2225 = vmatprep.subr.mxu0 0.0
  %2226 = vmatpush1.msra.mxu0 0.0
  %2227 = vmatprep.subr.mxu0 0.0
  %2228 = vmatpush1.msra.mxu0 0.0
  %2229 = vmatprep.subr.mxu0 0.0
  %2230 = vmatpush1.msra.mxu0 0.0
  %2231 = vmatprep.subr.mxu0 0.0
  %2232 = vmatpush1.msra.mxu0 0.0
  %2233 = vmatprep.subr.mxu0 0.0
  %2234 = vmatpush1.msra.mxu0 0.0
  %2235 = vmatprep.subr.mxu0 0.0
  %2236 = vmatpush1.msra.mxu0 0.0
  %2237 = vmatprep.subr.mxu0 0.0
  %2238 = vmatpush1.msra.mxu0 0.0
  %2239 = vmatprep.subr.mxu0 0.0
  %2240 = vmatpush1.msra.mxu0 0.0
  %2241 = vmatprep.subr.mxu0 0.0
  %2242 = vmatpush1.msra.mxu0 0.0
  %2243 = vmatprep.subr.mxu0 0.0
  %2244 = vmatpush1.msra.mxu0 0.0
  %2245 = vmatprep.subr.mxu0 0.0
  %2246 = vmatpush1.msra.mxu0 0.0
  %2247 = vmatprep.subr.mxu0 0.0
  %2248 = vmatpush1.msra.mxu0 0.0
  %2249 = vmatprep.subr.mxu0 0.0
  %2250 = vmatpush1.msra.mxu0 0.0
  %2251 = vmatprep.subr.mxu0 0.0
  %2252 = vmatpush1.msra.mxu0 0.0
  %2253 = vmatprep.subr.mxu0 0.0
  %2254 = vmatpush1.msra.mxu0 0.0
  %2255 = vmatprep.subr.mxu0 0.0
  %2256 = vmatpush1.msra.mxu0 0.0
  %2257 = vmatprep.subr.mxu0 0.0
  %2258 = vmatpush1.msra.mxu0 0.0
  %2259 = vmatprep.mubr.f32.mxu0 0.0
  %2260 = vmatmul.mubr.f32.gmra.mrb[0].mxu0 %v2193
  %v2261 = vpop.f32.mrb[0].mxu0
  %v2262 = vadd.f32 %v2190, %v2261
  %v2263 = vpop.f32.mrb[0].mxu0
  %2264 = vdwg.mxu0
  %vm2265 = vcmp.gt.f32.partialorder %v2262, 0.0
  %v2266 = vmin.f32 %v2262, 0.0
  %v2267 = vmul.f32 %v2266, 1.442695
  %v2268 = vpow.pop %v2267
  %v2269 = vsub.f32 %v2268, 1.0
  %v2270 = vsel %vm2265, %v2262, %v2269
  %v2272 = vlaneseq
  %v2273 = vshrl.u32 %v2272, 7
  %v2274 = vsub.s32 0, %v2273
  %v2275 = vrot.slane %v2185, %v2274
  %v2278 = vsel %vm1122, %v2270, 0
  %2280 = vmatprep.subr.mxu0 0.0
  %2281 = vmatpush1.msra.mxu0 %v2181
  %2282 = vmatprep.subr.mxu0 0.0
  %2283 = vmatpush1.msra.mxu0 %v2182
  %2284 = vmatprep.subr.mxu0 0.0
  %2285 = vmatpush1.msra.mxu0 %v2183
  %2286 = vmatprep.subr.mxu0 0.0
  %2287 = vmatpush1.msra.mxu0 %v2184
  %2288 = vmatprep.subr.mxu0 0.0
  %2289 = vmatpush1.msra.mxu0 0.0
  %2290 = vmatprep.subr.mxu0 0.0
  %2291 = vmatpush1.msra.mxu0 0.0
  %2292 = vmatprep.subr.mxu0 0.0
  %2293 = vmatpush1.msra.mxu0 0.0
  %2294 = vmatprep.subr.mxu0 0.0
  %2295 = vmatpush1.msra.mxu0 0.0
  %2296 = vmatprep.subr.mxu0 0.0
  %2297 = vmatpush1.msra.mxu0 0.0
  %2298 = vmatprep.subr.mxu0 0.0
  %2299 = vmatpush1.msra.mxu0 0.0
  %2300 = vmatprep.subr.mxu0 0.0
  %2301 = vmatpush1.msra.mxu0 0.0
  %2302 = vmatprep.subr.mxu0 0.0
  %2303 = vmatpush1.msra.mxu0 0.0
  %2304 = vmatprep.subr.mxu0 0.0
  %2305 = vmatpush1.msra.mxu0 0.0
  %2306 = vmatprep.subr.mxu0 0.0
  %2307 = vmatpush1.msra.mxu0 0.0
  %2308 = vmatprep.subr.mxu0 0.0
  %2309 = vmatpush1.msra.mxu0 0.0
  %2310 = vmatprep.subr.mxu0 0.0
  %2311 = vmatpush1.msra.mxu0 0.0
  %2312 = vmatprep.subr.mxu0 0.0
  %2313 = vmatpush1.msra.mxu0 0.0
  %2314 = vmatprep.subr.mxu0 0.0
  %2315 = vmatpush1.msra.mxu0 0.0
  %2316 = vmatprep.subr.mxu0 0.0
  %2317 = vmatpush1.msra.mxu0 0.0
  %2318 = vmatprep.subr.mxu0 0.0
  %2319 = vmatpush1.msra.mxu0 0.0
  %2320 = vmatprep.subr.mxu0 0.0
  %2321 = vmatpush1.msra.mxu0 0.0
  %2322 = vmatprep.subr.mxu0 0.0
  %2323 = vmatpush1.msra.mxu0 0.0
  %2324 = vmatprep.subr.mxu0 0.0
  %2325 = vmatpush1.msra.mxu0 0.0
  %2326 = vmatprep.subr.mxu0 0.0
  %2327 = vmatpush1.msra.mxu0 0.0
  %2328 = vmatprep.subr.mxu0 0.0
  %2329 = vmatpush1.msra.mxu0 0.0
  %2330 = vmatprep.subr.mxu0 0.0
  %2331 = vmatpush1.msra.mxu0 0.0
  %2332 = vmatprep.subr.mxu0 0.0
  %2333 = vmatpush1.msra.mxu0 0.0
  %2334 = vmatprep.subr.mxu0 0.0
  %2335 = vmatpush1.msra.mxu0 0.0
  %2336 = vmatprep.subr.mxu0 0.0
  %2337 = vmatpush1.msra.mxu0 0.0
  %2338 = vmatprep.subr.mxu0 0.0
  %2339 = vmatpush1.msra.mxu0 0.0
  %2340 = vmatprep.subr.mxu0 0.0
  %2341 = vmatpush1.msra.mxu0 0.0
  %2342 = vmatprep.subr.mxu0 0.0
  %2343 = vmatpush1.msra.mxu0 0.0
  %2344 = vmatprep.mubr.f32.mxu0 0.0
  %2345 = vmatmul.mubr.f32.gmra.mrb[0].mxu0 %v2278
  %v2346 = vpop.f32.mrb[0].mxu0
  %v2347 = vadd.f32 %v2275, %v2346
  %v2348 = vpop.f32.mrb[0].mxu0
  %2349 = vdwg.mxu0
  %vm2350 = vcmp.gt.f32.partialorder %v2347, 0.0
  %v2351 = vmin.f32 %v2347, 0.0
  %v2352 = vmul.f32 %v2351, 1.442695
  %v2353 = vpow.pop %v2352
  %v2354 = vsub.f32 %v2353, 1.0
  %v2355 = vsel %vm2350, %v2347, %v2354
  %v2356 = vsel %vm1122, %v2355, 0.0
  %v2357 = vrot.slane %v2356, 4
  %v2358 = vadd.f32 %v2356, %v2357
  %v2359 = vrot.slane %v2358, 2
  %v2360 = vadd.f32 %v2358, %v2359
  %v2361 = vrot.slane %v2360, 1
  %v2362 = vadd.f32 %v2360, %v2361
  %v2363 = vrcp.pop 8.0
  %v2364 = vmul.f32 %v2362, %v2363
  %v2365 = vsub.f32 %v2355, %v2364
  %v2366 = vmul.f32 %v2365, %v2365
  %v2367 = vsel %vm1122, %v2366, 0.0
  %v2368 = vrot.slane %v2367, 4
  %v2369 = vadd.f32 %v2367, %v2368
  %v2370 = vrot.slane %v2369, 2
  %v2371 = vadd.f32 %v2369, %v2370
  %v2372 = vrot.slane %v2371, 1
  %v2373 = vadd.f32 %v2371, %v2372
  %v2374 = vmul.f32 %v2373, %v2363
  %v2375 = vadd.f32 %v2374, 1e-05
  %v2376 = vrsqrt.pop %v2375
  %v2377 = vmul.f32 %v2365, %v2376
  %v2378 = vld [vmem:[%s1] sm:$0xff]
  %v2379 = vld [vmem:[%s1 + $0x8] sm:$0xff]
  %v2380 = vld [vmem:[%s1 + $0x10] sm:$0xff]
  %v2382 = vsel %vm81, %v2378, 0
  %v2385 = vsel %vm81, %v2379, 0
  %v2388 = vsel %vm81, %v2380, 0
  %2390 = vmatprep.subr.mxu0 0.0
  %2391 = vmatpush1.msra.mxu0 %v2377
  %2392 = vmatprep.subr.mxu0 0.0
  %2393 = vmatpush1.msra.mxu0 0.0
  %2394 = vmatprep.subr.mxu0 0.0
  %2395 = vmatpush1.msra.mxu0 0.0
  %2396 = vmatprep.subr.mxu0 0.0
  %2397 = vmatpush1.msra.mxu0 0.0
  %2398 = vmatprep.subr.mxu0 0.0
  %2399 = vmatpush1.msra.mxu0 0.0
  %2400 = vmatprep.subr.mxu0 0.0
  %2401 = vmatpush1.msra.mxu0 0.0
  %2402 = vmatprep.subr.mxu0 0.0
  %2403 = vmatpush1.msra.mxu0 0.0
  %2404 = vmatprep.subr.mxu0 0.0
  %2405 = vmatpush1.msra.mxu0 0.0
  %2406 = vmatprep.subr.mxu0 0.0
  %2407 = vmatpush1.msra.mxu0 0.0
  %2408 = vmatprep.subr.mxu0 0.0
  %2409 = vmatpush1.msra.mxu0 0.0
  %2410 = vmatprep.subr.mxu0 0.0
  %2411 = vmatpush1.msra.mxu0 0.0
  %2412 = vmatprep.subr.mxu0 0.0
  %2413 = vmatpush1.msra.mxu0 0.0
  %2414 = vmatprep.subr.mxu0 0.0
  %2415 = vmatpush1.msra.mxu0 0.0
  %2416 = vmatprep.subr.mxu0 0.0
  %2417 = vmatpush1.msra.mxu0 0.0
  %2418 = vmatprep.subr.mxu0 0.0
  %2419 = vmatpush1.msra.mxu0 0.0
  %2420 = vmatprep.subr.mxu0 0.0
  %2421 = vmatpush1.msra.mxu0 0.0
  %2422 = vmatprep.subr.mxu0 0.0
  %2423 = vmatpush1.msra.mxu0 0.0
  %2424 = vmatprep.subr.mxu0 0.0
  %2425 = vmatpush1.msra.mxu0 0.0
  %2426 = vmatprep.subr.mxu0 0.0
  %2427 = vmatpush1.msra.mxu0 0.0
  %2428 = vmatprep.subr.mxu0 0.0
  %2429 = vmatpush1.msra.mxu0 0.0
  %2430 = vmatprep.subr.mxu0 0.0
  %2431 = vmatpush1.msra.mxu0 0.0
  %2432 = vmatprep.subr.mxu0 0.0
  %2433 = vmatpush1.msra.mxu0 0.0
  %2434 = vmatprep.subr.mxu0 0.0
  %2435 = vmatpush1.msra.mxu0 0.0
  %2436 = vmatprep.subr.mxu0 0.0
  %2437 = vmatpush1.msra.mxu0 0.0
  %2438 = vmatprep.subr.mxu0 0.0
  %2439 = vmatpush1.msra.mxu0 0.0
  %2440 = vmatprep.subr.mxu0 0.0
  %2441 = vmatpush1.msra.mxu0 0.0
  %2442 = vmatprep.subr.mxu0 0.0
  %2443 = vmatpush1.msra.mxu0 0.0
  %2444 = vmatprep.subr.mxu0 0.0
  %2445 = vmatpush1.msra.mxu0 0.0
  %2446 = vmatprep.subr.mxu0 0.0
  %2447 = vmatpush1.msra.mxu0 0.0
  %2448 = vmatprep.subr.mxu0 0.0
  %2449 = vmatpush1.msra.mxu0 0.0
  %2450 = vmatprep.subr.mxu0 0.0
  %2451 = vmatpush1.msra.mxu0 0.0
  %2452 = vmatprep.subr.mxu0 0.0
  %2453 = vmatpush1.msra.mxu0 0.0
  %2454 = vmatprep.mubr.f32.mxu0 0.0
  %2455 = vmatmul.mubr.f32.gmra.mrb[0].mxu0 %v2382
  %v2456 = vpop.f32.mrb[0].mxu0
  %v2457 = vadd.f32 0.0, %v2456
  %v2458 = vpop.f32.mrb[0].mxu0
  %2459 = vmatprep.mubr.f32.mxu0 0.0
  %2460 = vmatmul.mubr.f32.gmra.mrb[0].mxu0 %v2385
  %v2461 = vpop.f32.mrb[0].mxu0
  %v2462 = vadd.f32 0.0, %v2461
  %v2463 = vpop.f32.mrb[0].mxu0
  %2464 = vmatprep.mubr.f32.mxu0 0.0
  %2465 = vmatmul.mubr.f32.gmra.mrb[0].mxu0 %v2388
  %v2466 = vpop.f32.mrb[0].mxu0
  %v2467 = vadd.f32 0.0, %v2466
  %v2468 = vpop.f32.mrb[0].mxu0
  %2469 = vdwg.mxu0
  %v2470 = vld [vmem:[%s2] sm:$0xff]
  %v2471 = vld [vmem:[%s2 + $0x8] sm:$0xff]
  %v2472 = vld [vmem:[%s2 + $0x10] sm:$0xff]
  %v2474 = vsel %vm81, %v2470, 0
  %v2477 = vsel %vm81, %v2471, 0
  %v2480 = vsel %vm81, %v2472, 0
  %2482 = vmatprep.subr.mxu0 0.0
  %2483 = vmatpush1.msra.mxu0 %v2377
  %2484 = vmatprep.subr.mxu0 0.0
  %2485 = vmatpush1.msra.mxu0 0.0
  %2486 = vmatprep.subr.mxu0 0.0
  %2487 = vmatpush1.msra.mxu0 0.0
  %2488 = vmatprep.subr.mxu0 0.0
  %2489 = vmatpush1.msra.mxu0 0.0
  %2490 = vmatprep.subr.mxu0 0.0
  %2491 = vmatpush1.msra.mxu0 0.0
  %2492 = vmatprep.subr.mxu0 0.0
  %2493 = vmatpush1.msra.mxu0 0.0
  %2494 = vmatprep.subr.mxu0 0.0
  %2495 = vmatpush1.msra.mxu0 0.0
  %2496 = vmatprep.subr.mxu0 0.0
  %2497 = vmatpush1.msra.mxu0 0.0
  %2498 = vmatprep.subr.mxu0 0.0
  %2499 = vmatpush1.msra.mxu0 0.0
  %2500 = vmatprep.subr.mxu0 0.0
  %2501 = vmatpush1.msra.mxu0 0.0
  %2502 = vmatprep.subr.mxu0 0.0
  %2503 = vmatpush1.msra.mxu0 0.0
  %2504 = vmatprep.subr.mxu0 0.0
  %2505 = vmatpush1.msra.mxu0 0.0
  %2506 = vmatprep.subr.mxu0 0.0
  %2507 = vmatpush1.msra.mxu0 0.0
  %2508 = vmatprep.subr.mxu0 0.0
  %2509 = vmatpush1.msra.mxu0 0.0
  %2510 = vmatprep.subr.mxu0 0.0
  %2511 = vmatpush1.msra.mxu0 0.0
  %2512 = vmatprep.subr.mxu0 0.0
  %2513 = vmatpush1.msra.mxu0 0.0
  %2514 = vmatprep.subr.mxu0 0.0
  %2515 = vmatpush1.msra.mxu0 0.0
  %2516 = vmatprep.subr.mxu0 0.0
  %2517 = vmatpush1.msra.mxu0 0.0
  %2518 = vmatprep.subr.mxu0 0.0
  %2519 = vmatpush1.msra.mxu0 0.0
  %2520 = vmatprep.subr.mxu0 0.0
  %2521 = vmatpush1.msra.mxu0 0.0
  %2522 = vmatprep.subr.mxu0 0.0
  %2523 = vmatpush1.msra.mxu0 0.0
  %2524 = vmatprep.subr.mxu0 0.0
  %2525 = vmatpush1.msra.mxu0 0.0
  %2526 = vmatprep.subr.mxu0 0.0
  %2527 = vmatpush1.msra.mxu0 0.0
  %2528 = vmatprep.subr.mxu0 0.0
  %2529 = vmatpush1.msra.mxu0 0.0
  %2530 = vmatprep.subr.mxu0 0.0
  %2531 = vmatpush1.msra.mxu0 0.0
  %2532 = vmatprep.subr.mxu0 0.0
  %2533 = vmatpush1.msra.mxu0 0.0
  %2534 = vmatprep.subr.mxu0 0.0
  %2535 = vmatpush1.msra.mxu0 0.0
  %2536 = vmatprep.subr.mxu0 0.0
  %2537 = vmatpush1.msra.mxu0 0.0
  %2538 = vmatprep.subr.mxu0 0.0
  %2539 = vmatpush1.msra.mxu0 0.0
  %2540 = vmatprep.subr.mxu0 0.0
  %2541 = vmatpush1.msra.mxu0 0.0
  %2542 = vmatprep.subr.mxu0 0.0
  %2543 = vmatpush1.msra.mxu0 0.0
  %2544 = vmatprep.subr.mxu0 0.0
  %2545 = vmatpush1.msra.mxu0 0.0
  %2546 = vmatprep.mubr.f32.mxu0 0.0
  %2547 = vmatmul.mubr.f32.gmra.mrb[0].mxu0 %v2474
  %v2548 = vpop.f32.mrb[0].mxu0
  %v2549 = vadd.f32 0.0, %v2548
  %v2550 = vpop.f32.mrb[0].mxu0
  %2551 = vmatprep.mubr.f32.mxu0 0.0
  %2552 = vmatmul.mubr.f32.gmra.mrb[0].mxu0 %v2477
  %v2553 = vpop.f32.mrb[0].mxu0
  %v2554 = vadd.f32 0.0, %v2553
  %v2555 = vpop.f32.mrb[0].mxu0
  %2556 = vmatprep.mubr.f32.mxu0 0.0
  %2557 = vmatmul.mubr.f32.gmra.mrb[0].mxu0 %v2480
  %v2558 = vpop.f32.mrb[0].mxu0
  %v2559 = vadd.f32 0.0, %v2558
  %v2560 = vpop.f32.mrb[0].mxu0
  %2561 = vdwg.mxu0
  %v2562 = vld [vmem:[%s18] sm:$0xff]
  %v2563 = vld [vmem:[%s18 + $0x8] sm:$0xff]
  %v2564 = vld [vmem:[%s18 + $0x10] sm:$0xff]
  %v2565 = vld [vmem:[%s18 + $0x18] sm:$0xff]
  %v2566 = vld [vmem:[%s18 + $0x20] sm:$0xff]
  %v2567 = vld [vmem:[%s18 + $0x28] sm:$0xff]
  %v2568 = vld [vmem:[%s18 + $0x30] sm:$0xff]
  %v2569 = vld [vmem:[%s18 + $0x38] sm:$0xff]
  %v2570 = vld [vmem:[%s18 + $0x40] sm:$0xff]
  %v2571 = vld [vmem:[%s18 + $0x48] sm:$0xff]
  %v2572 = vld [vmem:[%s18 + $0x50] sm:$0xff]
  %v2573 = vld [vmem:[%s18 + $0x58] sm:$0xff]
  %v2575 = vsel %vm1122, %v2549, 0
  %v2578 = vsel %vm1122, %v2554, 0
  %v2581 = vsel %vm1122, %v2559, 0
  %2583 = vmatprep.subr.mxu0 0.0
  %2584 = vmatpush1.msra.mxu0 %v2566
  %2585 = vmatprep.subr.mxu0 0.0
  %2586 = vmatpush1.msra.mxu0 %v2567
  %2587 = vmatprep.subr.mxu0 0.0
  %2588 = vmatpush1.msra.mxu0 %v2568
  %2589 = vmatprep.subr.mxu0 0.0
  %2590 = vmatpush1.msra.mxu0 %v2569
  %2591 = vmatprep.subr.mxu0 0.0
  %2592 = vmatpush1.msra.mxu0 0.0
  %2593 = vmatprep.subr.mxu0 0.0
  %2594 = vmatpush1.msra.mxu0 0.0
  %2595 = vmatprep.subr.mxu0 0.0
  %2596 = vmatpush1.msra.mxu0 0.0
  %2597 = vmatprep.subr.mxu0 0.0
  %2598 = vmatpush1.msra.mxu0 0.0
  %2599 = vmatprep.subr.mxu0 0.0
  %2600 = vmatpush1.msra.mxu0 0.0
  %2601 = vmatprep.subr.mxu0 0.0
  %2602 = vmatpush1.msra.mxu0 0.0
  %2603 = vmatprep.subr.mxu0 0.0
  %2604 = vmatpush1.msra.mxu0 0.0
  %2605 = vmatprep.subr.mxu0 0.0
  %2606 = vmatpush1.msra.mxu0 0.0
  %2607 = vmatprep.subr.mxu0 0.0
  %2608 = vmatpush1.msra.mxu0 0.0
  %2609 = vmatprep.subr.mxu0 0.0
  %2610 = vmatpush1.msra.mxu0 0.0
  %2611 = vmatprep.subr.mxu0 0.0
  %2612 = vmatpush1.msra.mxu0 0.0
  %2613 = vmatprep.subr.mxu0 0.0
  %2614 = vmatpush1.msra.mxu0 0.0
  %2615 = vmatprep.subr.mxu0 0.0
  %2616 = vmatpush1.msra.mxu0 0.0
  %2617 = vmatprep.subr.mxu0 0.0
  %2618 = vmatpush1.msra.mxu0 0.0
  %2619 = vmatprep.subr.mxu0 0.0
  %2620 = vmatpush1.msra.mxu0 0.0
  %2621 = vmatprep.subr.mxu0 0.0
  %2622 = vmatpush1.msra.mxu0 0.0
  %2623 = vmatprep.subr.mxu0 0.0
  %2624 = vmatpush1.msra.mxu0 0.0
  %2625 = vmatprep.subr.mxu0 0.0
  %2626 = vmatpush1.msra.mxu0 0.0
  %2627 = vmatprep.subr.mxu0 0.0
  %2628 = vmatpush1.msra.mxu0 0.0
  %2629 = vmatprep.subr.mxu0 0.0
  %2630 = vmatpush1.msra.mxu0 0.0
  %2631 = vmatprep.subr.mxu0 0.0
  %2632 = vmatpush1.msra.mxu0 0.0
  %2633 = vmatprep.subr.mxu0 0.0
  %2634 = vmatpush1.msra.mxu0 0.0
  %2635 = vmatprep.subr.mxu0 0.0
  %2636 = vmatpush1.msra.mxu0 0.0
  %2637 = vmatprep.subr.mxu0 0.0
  %2638 = vmatpush1.msra.mxu0 0.0
  %2639 = vmatprep.subr.mxu0 0.0
  %2640 = vmatpush1.msra.mxu0 0.0
  %2641 = vmatprep.subr.mxu0 0.0
  %2642 = vmatpush1.msra.mxu0 0.0
  %2643 = vmatprep.subr.mxu0 0.0
  %2644 = vmatpush1.msra.mxu0 0.0
  %2645 = vmatprep.subr.mxu0 0.0
  %2646 = vmatpush1.msra.mxu0 0.0
  %2647 = vmatprep.mubr.f32.mxu0 0.0
  %2648 = vmatmul.mubr.f32.gmra.mrb[0].mxu0 %v2575
  %v2649 = vpop.f32.mrb[0].mxu0
  %v2650 = vadd.f32 0.0, %v2649
  %v2651 = vpop.f32.mrb[0].mxu0
  %2652 = vmatprep.mubr.f32.mxu0 0.0
  %2653 = vmatmul.mubr.f32.gmra.mrb[0].mxu0 %v2578
  %v2654 = vpop.f32.mrb[0].mxu0
  %v2655 = vadd.f32 0.0, %v2654
  %v2656 = vpop.f32.mrb[0].mxu0
  %2657 = vmatprep.mubr.f32.mxu0 0.0
  %2658 = vmatmul.mubr.f32.gmra.mrb[0].mxu0 %v2581
  %v2659 = vpop.f32.mrb[0].mxu0
  %v2660 = vadd.f32 0.0, %v2659
  %v2661 = vpop.f32.mrb[0].mxu0
  %2662 = vdwg.mxu0
  %v2664 = vsel %vm1122, %v2457, 0
  %v2667 = vsel %vm1122, %v2462, 0
  %v2670 = vsel %vm1122, %v2467, 0
  %2672 = vmatprep.subr.mxu0 0.0
  %2673 = vmatpush1.msra.mxu0 %v2562
  %2674 = vmatprep.subr.mxu0 0.0
  %2675 = vmatpush1.msra.mxu0 %v2563
  %2676 = vmatprep.subr.mxu0 0.0
  %2677 = vmatpush1.msra.mxu0 %v2564
  %2678 = vmatprep.subr.mxu0 0.0
  %2679 = vmatpush1.msra.mxu0 %v2565
  %2680 = vmatprep.subr.mxu0 0.0
  %2681 = vmatpush1.msra.mxu0 0.0
  %2682 = vmatprep.subr.mxu0 0.0
  %2683 = vmatpush1.msra.mxu0 0.0
  %2684 = vmatprep.subr.mxu0 0.0
  %2685 = vmatpush1.msra.mxu0 0.0
  %2686 = vmatprep.subr.mxu0 0.0
  %2687 = vmatpush1.msra.mxu0 0.0
  %2688 = vmatprep.subr.mxu0 0.0
  %2689 = vmatpush1.msra.mxu0 0.0
  %2690 = vmatprep.subr.mxu0 0.0
  %2691 = vmatpush1.msra.mxu0 0.0
  %2692 = vmatprep.subr.mxu0 0.0
  %2693 = vmatpush1.msra.mxu0 0.0
  %2694 = vmatprep.subr.mxu0 0.0
  %2695 = vmatpush1.msra.mxu0 0.0
  %2696 = vmatprep.subr.mxu0 0.0
  %2697 = vmatpush1.msra.mxu0 0.0
  %2698 = vmatprep.subr.mxu0 0.0
  %2699 = vmatpush1.msra.mxu0 0.0
  %2700 = vmatprep.subr.mxu0 0.0
  %2701 = vmatpush1.msra.mxu0 0.0
  %2702 = vmatprep.subr.mxu0 0.0
  %2703 = vmatpush1.msra.mxu0 0.0
  %2704 = vmatprep.subr.mxu0 0.0
  %2705 = vmatpush1.msra.mxu0 0.0
  %2706 = vmatprep.subr.mxu0 0.0
  %2707 = vmatpush1.msra.mxu0 0.0
  %2708 = vmatprep.subr.mxu0 0.0
  %2709 = vmatpush1.msra.mxu0 0.0
  %2710 = vmatprep.subr.mxu0 0.0
  %2711 = vmatpush1.msra.mxu0 0.0
  %2712 = vmatprep.subr.mxu0 0.0
  %2713 = vmatpush1.msra.mxu0 0.0
  %2714 = vmatprep.subr.mxu0 0.0
  %2715 = vmatpush1.msra.mxu0 0.0
  %2716 = vmatprep.subr.mxu0 0.0
  %2717 = vmatpush1.msra.mxu0 0.0
  %2718 = vmatprep.subr.mxu0 0.0
  %2719 = vmatpush1.msra.mxu0 0.0
  %2720 = vmatprep.subr.mxu0 0.0
  %2721 = vmatpush1.msra.mxu0 0.0
  %2722 = vmatprep.subr.mxu0 0.0
  %2723 = vmatpush1.msra.mxu0 0.0
  %2724 = vmatprep.subr.mxu0 0.0
  %2725 = vmatpush1.msra.mxu0 0.0
  %2726 = vmatprep.subr.mxu0 0.0
  %2727 = vmatpush1.msra.mxu0 0.0
  %2728 = vmatprep.subr.mxu0 0.0
  %2729 = vmatpush1.msra.mxu0 0.0
  %2730 = vmatprep.subr.mxu0 0.0
  %2731 = vmatpush1.msra.mxu0 0.0
  %2732 = vmatprep.subr.mxu0 0.0
  %2733 = vmatpush1.msra.mxu0 0.0
  %2734 = vmatprep.subr.mxu0 0.0
  %2735 = vmatpush1.msra.mxu0 0.0
  %2736 = vmatprep.mubr.f32.mxu0 0.0
  %2737 = vmatmul.mubr.f32.gmra.mrb[0].mxu0 %v2664
  %v2738 = vpop.f32.mrb[0].mxu0
  %v2739 = vadd.f32 %v2650, %v2738
  %v2740 = vpop.f32.mrb[0].mxu0
  %2741 = vmatprep.mubr.f32.mxu0 0.0
  %2742 = vmatmul.mubr.f32.gmra.mrb[0].mxu0 %v2667
  %v2743 = vpop.f32.mrb[0].mxu0
  %v2744 = vadd.f32 %v2655, %v2743
  %v2745 = vpop.f32.mrb[0].mxu0
  %2746 = vmatprep.mubr.f32.mxu0 0.0
  %2747 = vmatmul.mubr.f32.gmra.mrb[0].mxu0 %v2670
  %v2748 = vpop.f32.mrb[0].mxu0
  %v2749 = vadd.f32 %v2660, %v2748
  %v2750 = vpop.f32.mrb[0].mxu0
  %2751 = vdwg.mxu0
  %v2753 = vsel %vm1122, %v2097, 0
  %v2756 = vsel %vm1122, %v2098, 0
  %v2759 = vsel %vm1122, %v2099, 0
  %2761 = vmatprep.subr.mxu0 0.0
  %2762 = vmatpush1.msra.mxu0 %v2570
  %2763 = vmatprep.subr.mxu0 0.0
  %2764 = vmatpush1.msra.mxu0 %v2571
  %2765 = vmatprep.subr.mxu0 0.0
  %2766 = vmatpush1.msra.mxu0 %v2572
  %2767 = vmatprep.subr.mxu0 0.0
  %2768 = vmatpush1.msra.mxu0 %v2573
  %2769 = vmatprep.subr.mxu0 0.0
  %2770 = vmatpush1.msra.mxu0 0.0
  %2771 = vmatprep.subr.mxu0 0.0
  %2772 = vmatpush1.msra.mxu0 0.0
  %2773 = vmatprep.subr.mxu0 0.0
  %2774 = vmatpush1.msra.mxu0 0.0
  %2775 = vmatprep.subr.mxu0 0.0
  %2776 = vmatpush1.msra.mxu0 0.0
  %2777 = vmatprep.subr.mxu0 0.0
  %2778 = vmatpush1.msra.mxu0 0.0
  %2779 = vmatprep.subr.mxu0 0.0
  %2780 = vmatpush1.msra.mxu0 0.0
  %2781 = vmatprep.subr.mxu0 0.0
  %2782 = vmatpush1.msra.mxu0 0.0
  %2783 = vmatprep.subr.mxu0 0.0
  %2784 = vmatpush1.msra.mxu0 0.0
  %2785 = vmatprep.subr.mxu0 0.0
  %2786 = vmatpush1.msra.mxu0 0.0
  %2787 = vmatprep.subr.mxu0 0.0
  %2788 = vmatpush1.msra.mxu0 0.0
  %2789 = vmatprep.subr.mxu0 0.0
  %2790 = vmatpush1.msra.mxu0 0.0
  %2791 = vmatprep.subr.mxu0 0.0
  %2792 = vmatpush1.msra.mxu0 0.0
  %2793 = vmatprep.subr.mxu0 0.0
  %2794 = vmatpush1.msra.mxu0 0.0
  %2795 = vmatprep.subr.mxu0 0.0
  %2796 = vmatpush1.msra.mxu0 0.0
  %2797 = vmatprep.subr.mxu0 0.0
  %2798 = vmatpush1.msra.mxu0 0.0
  %2799 = vmatprep.subr.mxu0 0.0
  %2800 = vmatpush1.msra.mxu0 0.0
  %2801 = vmatprep.subr.mxu0 0.0
  %2802 = vmatpush1.msra.mxu0 0.0
  %2803 = vmatprep.subr.mxu0 0.0
  %2804 = vmatpush1.msra.mxu0 0.0
  %2805 = vmatprep.subr.mxu0 0.0
  %2806 = vmatpush1.msra.mxu0 0.0
  %2807 = vmatprep.subr.mxu0 0.0
  %2808 = vmatpush1.msra.mxu0 0.0
  %2809 = vmatprep.subr.mxu0 0.0
  %2810 = vmatpush1.msra.mxu0 0.0
  %2811 = vmatprep.subr.mxu0 0.0
  %2812 = vmatpush1.msra.mxu0 0.0
  %2813 = vmatprep.subr.mxu0 0.0
  %2814 = vmatpush1.msra.mxu0 0.0
  %2815 = vmatprep.subr.mxu0 0.0
  %2816 = vmatpush1.msra.mxu0 0.0
  %2817 = vmatprep.subr.mxu0 0.0
  %2818 = vmatpush1.msra.mxu0 0.0
  %2819 = vmatprep.subr.mxu0 0.0
  %2820 = vmatpush1.msra.mxu0 0.0
  %2821 = vmatprep.subr.mxu0 0.0
  %2822 = vmatpush1.msra.mxu0 0.0
  %2823 = vmatprep.subr.mxu0 0.0
  %2824 = vmatpush1.msra.mxu0 0.0
  %2825 = vmatprep.mubr.f32.mxu0 0.0
  %2826 = vmatmul.mubr.f32.gmra.mrb[0].mxu0 %v2753
  %v2827 = vpop.f32.mrb[0].mxu0
  %v2828 = vadd.f32 0.0, %v2827
  %v2829 = vpop.f32.mrb[0].mxu0
  %2830 = vmatprep.mubr.f32.mxu0 0.0
  %2831 = vmatmul.mubr.f32.gmra.mrb[0].mxu0 %v2756
  %v2832 = vpop.f32.mrb[0].mxu0
  %v2833 = vadd.f32 0.0, %v2832
  %v2834 = vpop.f32.mrb[0].mxu0
  %2835 = vmatprep.mubr.f32.mxu0 0.0
  %2836 = vmatmul.mubr.f32.gmra.mrb[0].mxu0 %v2759
  %v2837 = vpop.f32.mrb[0].mxu0
  %v2838 = vadd.f32 0.0, %v2837
  %v2839 = vpop.f32.mrb[0].mxu0
  %2840 = vdwg.mxu0
  %v2841 = vadd.f32 %v2739, %v2828
  %v2842 = vadd.f32 %v2744, %v2833
  %v2843 = vadd.f32 %v2749, %v2838
  %v2844 = vld [vmem:[%s19] sm:$0x1]
  %v2846 = vlaneseq
  %v2847 = vshrl.u32 %v2846, 7
  %v2848 = vsub.s32 0, %v2847
  %v2849 = vrot.slane %v2844, %v2848
  %v2851 = vadd.f32 %v2841, %v2849
  %v2852 = vadd.f32 %v2842, %v2849
  %v2853 = vadd.f32 %v2843, %v2849
  %vm2854 = vcmp.gt.f32.partialorder %v2851, 0.0
  %vm2855 = vcmp.gt.f32.partialorder %v2852, 0.0
  %vm2856 = vcmp.gt.f32.partialorder %v2853, 0.0
  %v2857 = vmin.f32 %v2851, 0.0
  %v2858 = vmin.f32 %v2852, 0.0
  %v2859 = vmin.f32 %v2853, 0.0
  %v2860 = vmul.f32 %v2857, 1.442695
  %v2861 = vpow.pop %v2860
  %v2862 = vmul.f32 %v2858, 1.442695
  %v2863 = vpow.pop %v2862
  %v2864 = vmul.f32 %v2859, 1.442695
  %v2865 = vpow.pop %v2864
  %v2866 = vsub.f32 %v2861, 1.0
  %v2867 = vsub.f32 %v2863, 1.0
  %v2868 = vsub.f32 %v2865, 1.0
  %v2869 = vsel %vm2854, %v2851, %v2866
  %v2870 = vsel %vm2855, %v2852, %v2867
  %v2871 = vsel %vm2856, %v2853, %v2868
  %v2872 = vld [vmem:[%s20] sm:$0xff]
  %v2873 = vld [vmem:[%s20 + $0x8] sm:$0xff]
  %v2874 = vld [vmem:[%s20 + $0x10] sm:$0xff]
  %v2875 = vld [vmem:[%s20 + $0x18] sm:$0xff]
  %v2876 = vld [vmem:[%s21] sm:$0x1]
  %v2878 = vlaneseq
  %v2879 = vshrl.u32 %v2878, 7
  %v2880 = vsub.s32 0, %v2879
  %v2881 = vrot.slane %v2876, %v2880
  %v2884 = vsel %vm1122, %v2869, 0
  %v2887 = vsel %vm1122, %v2870, 0
  %v2890 = vsel %vm1122, %v2871, 0
  %2892 = vmatprep.subr.mxu0 0.0
  %2893 = vmatpush1.msra.mxu0 %v2872
  %2894 = vmatprep.subr.mxu0 0.0
  %2895 = vmatpush1.msra.mxu0 %v2873
  %2896 = vmatprep.subr.mxu0 0.0
  %2897 = vmatpush1.msra.mxu0 %v2874
  %2898 = vmatprep.subr.mxu0 0.0
  %2899 = vmatpush1.msra.mxu0 %v2875
  %2900 = vmatprep.subr.mxu0 0.0
  %2901 = vmatpush1.msra.mxu0 0.0
  %2902 = vmatprep.subr.mxu0 0.0
  %2903 = vmatpush1.msra.mxu0 0.0
  %2904 = vmatprep.subr.mxu0 0.0
  %2905 = vmatpush1.msra.mxu0 0.0
  %2906 = vmatprep.subr.mxu0 0.0
  %2907 = vmatpush1.msra.mxu0 0.0
  %2908 = vmatprep.subr.mxu0 0.0
  %2909 = vmatpush1.msra.mxu0 0.0
  %2910 = vmatprep.subr.mxu0 0.0
  %2911 = vmatpush1.msra.mxu0 0.0
  %2912 = vmatprep.subr.mxu0 0.0
  %2913 = vmatpush1.msra.mxu0 0.0
  %2914 = vmatprep.subr.mxu0 0.0
  %2915 = vmatpush1.msra.mxu0 0.0
  %2916 = vmatprep.subr.mxu0 0.0
  %2917 = vmatpush1.msra.mxu0 0.0
  %2918 = vmatprep.subr.mxu0 0.0
  %2919 = vmatpush1.msra.mxu0 0.0
  %2920 = vmatprep.subr.mxu0 0.0
  %2921 = vmatpush1.msra.mxu0 0.0
  %2922 = vmatprep.subr.mxu0 0.0
  %2923 = vmatpush1.msra.mxu0 0.0
  %2924 = vmatprep.subr.mxu0 0.0
  %2925 = vmatpush1.msra.mxu0 0.0
  %2926 = vmatprep.subr.mxu0 0.0
  %2927 = vmatpush1.msra.mxu0 0.0
  %2928 = vmatprep.subr.mxu0 0.0
  %2929 = vmatpush1.msra.mxu0 0.0
  %2930 = vmatprep.subr.mxu0 0.0
  %2931 = vmatpush1.msra.mxu0 0.0
  %2932 = vmatprep.subr.mxu0 0.0
  %2933 = vmatpush1.msra.mxu0 0.0
  %2934 = vmatprep.subr.mxu0 0.0
  %2935 = vmatpush1.msra.mxu0 0.0
  %2936 = vmatprep.subr.mxu0 0.0
  %2937 = vmatpush1.msra.mxu0 0.0
  %2938 = vmatprep.subr.mxu0 0.0
  %2939 = vmatpush1.msra.mxu0 0.0
  %2940 = vmatprep.subr.mxu0 0.0
  %2941 = vmatpush1.msra.mxu0 0.0
  %2942 = vmatprep.subr.mxu0 0.0
  %2943 = vmatpush1.msra.mxu0 0.0
  %2944 = vmatprep.subr.mxu0 0.0
  %2945 = vmatpush1.msra.mxu0 0.0
  %2946 = vmatprep.subr.mxu0 0.0
  %2947 = vmatpush1.msra.mxu0 0.0
  %2948 = vmatprep.subr.mxu0 0.0
  %2949 = vmatpush1.msra.mxu0 0.0
  %2950 = vmatprep.subr.mxu0 0.0
  %2951 = vmatpush1.msra.mxu0 0.0
  %2952 = vmatprep.subr.mxu0 0.0
  %2953 = vmatpush1.msra.mxu0 0.0
  %2954 = vmatprep.subr.mxu0 0.0
  %2955 = vmatpush1.msra.mxu0 0.0
  %2956 = vmatprep.mubr.f32.mxu0 0.0
  %2957 = vmatmul.mubr.f32.gmra.mrb[0].mxu0 %v2884
  %v2958 = vpop.f32.mrb[0].mxu0
  %v2959 = vadd.f32 %v2881, %v2958
  %v2960 = vpop.f32.mrb[0].mxu0
  %2961 = vmatprep.mubr.f32.mxu0 0.0
  %2962 = vmatmul.mubr.f32.gmra.mrb[0].mxu0 %v2887
  %v2963 = vpop.f32.mrb[0].mxu0
  %v2964 = vadd.f32 %v2881, %v2963
  %v2965 = vpop.f32.mrb[0].mxu0
  %2966 = vmatprep.mubr.f32.mxu0 0.0
  %2967 = vmatmul.mubr.f32.gmra.mrb[0].mxu0 %v2890
  %v2968 = vpop.f32.mrb[0].mxu0
  %v2969 = vadd.f32 %v2881, %v2968
  %v2970 = vpop.f32.mrb[0].mxu0
  %2971 = vdwg.mxu0
  %vm2972 = vcmp.gt.f32.partialorder %v2959, 0.0
  %vm2973 = vcmp.gt.f32.partialorder %v2964, 0.0
  %vm2974 = vcmp.gt.f32.partialorder %v2969, 0.0
  %v2975 = vmin.f32 %v2959, 0.0
  %v2976 = vmin.f32 %v2964, 0.0
  %v2977 = vmin.f32 %v2969, 0.0
  %v2978 = vmul.f32 %v2975, 1.442695
  %v2979 = vpow.pop %v2978
  %v2980 = vmul.f32 %v2976, 1.442695
  %v2981 = vpow.pop %v2980
  %v2982 = vmul.f32 %v2977, 1.442695
  %v2983 = vpow.pop %v2982
  %v2984 = vsub.f32 %v2979, 1.0
  %v2985 = vsub.f32 %v2981, 1.0
  %v2986 = vsub.f32 %v2983, 1.0
  %v2987 = vsel %vm2972, %v2959, %v2984
  %v2988 = vsel %vm2973, %v2964, %v2985
  %v2989 = vsel %vm2974, %v2969, %v2986
  %v2990 = vsel %vm1122, %v2987, 0.0
  %v2991 = vsel %vm1122, %v2988, 0.0
  %v2992 = vadd.f32 %v2990, %v2991
  %v2993 = vsel %vm1122, %v2989, 0.0
  %v2994 = vadd.f32 %v2992, %v2993
  %v2995 = vrot.slane %v2994, 4
  %v2996 = vadd.f32 %v2994, %v2995
  %v2997 = vrot.slane %v2996, 2
  %v2998 = vadd.f32 %v2996, %v2997
  %v2999 = vrot.slane %v2998, 1
  %v3000 = vadd.f32 %v2998, %v2999
  %v3001 = vmul.f32 %v3000, %v2075
  %v3002 = vsub.f32 %v2987, %v3001
  %v3003 = vsub.f32 %v2988, %v3001
  %v3004 = vsub.f32 %v2989, %v3001
  %v3005 = vmul.f32 %v3002, %v3002
  %v3006 = vmul.f32 %v3003, %v3003
  %v3007 = vmul.f32 %v3004, %v3004
  %v3008 = vsel %vm1122, %v3005, 0.0
  %v3009 = vsel %vm1122, %v3006, 0.0
  %v3010 = vadd.f32 %v3008, %v3009
  %v3011 = vsel %vm1122, %v3007, 0.0
  %v3012 = vadd.f32 %v3010, %v3011
  %v3013 = vrot.slane %v3012, 4
  %v3014 = vadd.f32 %v3012, %v3013
  %v3015 = vrot.slane %v3014, 2
  %v3016 = vadd.f32 %v3014, %v3015
  %v3017 = vrot.slane %v3016, 1
  %v3018 = vadd.f32 %v3016, %v3017
  %v3019 = vmul.f32 %v3018, %v2075
  %v3020 = vadd.f32 %v3019, 1e-05
  %v3021 = vrsqrt.pop %v3020
  %v3022 = vmul.f32 %v3002, %v3021
  %v3023 = vmul.f32 %v3003, %v3021
  %v3024 = vmul.f32 %v3004, %v3021
  %v3025 = vld [vmem:[%s22] sm:$0xff]
  %v3026 = vld [vmem:[%s22 + $0x8] sm:$0xff]
  %v3027 = vld [vmem:[%s22 + $0x10] sm:$0xff]
  %v3028 = vld [vmem:[%s22 + $0x18] sm:$0xff]
  %v3029 = vld [vmem:[%s23] sm:$0x1]
  %v3031 = vlaneseq
  %v3032 = vshrl.u32 %v3031, 7
  %v3033 = vsub.s32 0, %v3032
  %v3034 = vrot.slane %v3029, %v3033
  %v3037 = vsel %vm1122, %v3022, 0
  %v3040 = vsel %vm1122, %v3023, 0
  %v3043 = vsel %vm1122, %v3024, 0
  %3045 = vmatprep.subr.mxu0 0.0
  %3046 = vmatpush1.msra.mxu0 %v3025
  %3047 = vmatprep.subr.mxu0 0.0
  %3048 = vmatpush1.msra.mxu0 %v3026
  %3049 = vmatprep.subr.mxu0 0.0
  %3050 = vmatpush1.msra.mxu0 %v3027
  %3051 = vmatprep.subr.mxu0 0.0
  %3052 = vmatpush1.msra.mxu0 %v3028
  %3053 = vmatprep.subr.mxu0 0.0
  %3054 = vmatpush1.msra.mxu0 0.0
  %3055 = vmatprep.subr.mxu0 0.0
  %3056 = vmatpush1.msra.mxu0 0.0
  %3057 = vmatprep.subr.mxu0 0.0
  %3058 = vmatpush1.msra.mxu0 0.0
  %3059 = vmatprep.subr.mxu0 0.0
  %3060 = vmatpush1.msra.mxu0 0.0
  %3061 = vmatprep.subr.mxu0 0.0
  %3062 = vmatpush1.msra.mxu0 0.0
  %3063 = vmatprep.subr.mxu0 0.0
  %3064 = vmatpush1.msra.mxu0 0.0
  %3065 = vmatprep.subr.mxu0 0.0
  %3066 = vmatpush1.msra.mxu0 0.0
  %3067 = vmatprep.subr.mxu0 0.0
  %3068 = vmatpush1.msra.mxu0 0.0
  %3069 = vmatprep.subr.mxu0 0.0
  %3070 = vmatpush1.msra.mxu0 0.0
  %3071 = vmatprep.subr.mxu0 0.0
  %3072 = vmatpush1.msra.mxu0 0.0
  %3073 = vmatprep.subr.mxu0 0.0
  %3074 = vmatpush1.msra.mxu0 0.0
  %3075 = vmatprep.subr.mxu0 0.0
  %3076 = vmatpush1.msra.mxu0 0.0
  %3077 = vmatprep.subr.mxu0 0.0
  %3078 = vmatpush1.msra.mxu0 0.0
  %3079 = vmatprep.subr.mxu0 0.0
  %3080 = vmatpush1.msra.mxu0 0.0
  %3081 = vmatprep.subr.mxu0 0.0
  %3082 = vmatpush1.msra.mxu0 0.0
  %3083 = vmatprep.subr.mxu0 0.0
  %3084 = vmatpush1.msra.mxu0 0.0
  %3085 = vmatprep.subr.mxu0 0.0
  %3086 = vmatpush1.msra.mxu0 0.0
  %3087 = vmatprep.subr.mxu0 0.0
  %3088 = vmatpush1.msra.mxu0 0.0
  %3089 = vmatprep.subr.mxu0 0.0
  %3090 = vmatpush1.msra.mxu0 0.0
  %3091 = vmatprep.subr.mxu0 0.0
  %3092 = vmatpush1.msra.mxu0 0.0
  %3093 = vmatprep.subr.mxu0 0.0
  %3094 = vmatpush1.msra.mxu0 0.0
  %3095 = vmatprep.subr.mxu0 0.0
  %3096 = vmatpush1.msra.mxu0 0.0
  %3097 = vmatprep.subr.mxu0 0.0
  %3098 = vmatpush1.msra.mxu0 0.0
  %3099 = vmatprep.subr.mxu0 0.0
  %3100 = vmatpush1.msra.mxu0 0.0
  %3101 = vmatprep.subr.mxu0 0.0
  %3102 = vmatpush1.msra.mxu0 0.0
  %3103 = vmatprep.subr.mxu0 0.0
  %3104 = vmatpush1.msra.mxu0 0.0
  %3105 = vmatprep.subr.mxu0 0.0
  %3106 = vmatpush1.msra.mxu0 0.0
  %3107 = vmatprep.subr.mxu0 0.0
  %3108 = vmatpush1.msra.mxu0 0.0
  %3109 = vmatprep.mubr.f32.mxu0 0.0
  %3110 = vmatmul.mubr.f32.gmra.mrb[0].mxu0 %v3037
  %v3111 = vpop.f32.mrb[0].mxu0
  %v3112 = vadd.f32 %v3034, %v3111
  %v3113 = vpop.f32.mrb[0].mxu0
  %3114 = vmatprep.mubr.f32.mxu0 0.0
  %3115 = vmatmul.mubr.f32.gmra.mrb[0].mxu0 %v3040
  %v3116 = vpop.f32.mrb[0].mxu0
  %v3117 = vadd.f32 %v3034, %v3116
  %v3118 = vpop.f32.mrb[0].mxu0
  %3119 = vmatprep.mubr.f32.mxu0 0.0
  %3120 = vmatmul.mubr.f32.gmra.mrb[0].mxu0 %v3043
  %v3121 = vpop.f32.mrb[0].mxu0
  %v3122 = vadd.f32 %v3034, %v3121
  %v3123 = vpop.f32.mrb[0].mxu0
  %3124 = vdwg.mxu0
  %3125 = vst.msk [vmem:[%s24] sm:$0xff] %vm81, %v3112
  %3126 = vst.msk [vmem:[%s24 + $0x8] sm:$0xff] %vm81, %v3117
  %3127 = vst.msk [vmem:[%s24 + $0x10] sm:$0xff] %vm81, %v3122
  // Predicated region
  $region98: #{cnn_encoder_forward.1} parent=0 // pred_check
    _
  $region99: #{cnn_encoder_forward.1} parent=0 // pred_check_branch
    %3129 = sbr.rel (0) target = $region101
  $region100: #{cnn_encoder_forward.1} parent=0 // pred_region
    _
  $region101: #{cnn_encoder_forward.1} parent=0 // pred_fallthru
    _
  // Predicated region
  $region102: #{cnn_encoder_forward.1} parent=0 // pred_check
    _
  $region103: #{cnn_encoder_forward.1} parent=0 // pred_check_branch
    %3131 = sbr.rel (0) target = $region105
  $region104: #{cnn_encoder_forward.1} parent=0 // pred_region
    _
  $region105: #{cnn_encoder_forward.1} parent=0 // pred_fallthru
    _

</llo_original>
